<compile_context>
chip_gen: v5e
topology: v5e:2x2
jax: 0.10.0
libtpu: 0.0.40
codegen_flags: <defaults>
</compile_context>

<pallas_src>
import functools

import jax
import jax.numpy as jnp
from jax.experimental import pallas as pl
from jax.experimental.pallas import tpu as pltpu

# ----------------------------- config (small) -------------------------------
VOCAB = 64        # stand-in tokenizer vocab (real ids)
VPAD = 128        # vocab padded to lane width
D_MODEL = 32
D_FF = 64
MAX_GEN = 8       # stand-in for max_length=128
REP_PENALTY = 1.5


def _rms(h):
    return h * jax.lax.rsqrt(jnp.mean(h * h, axis=-1, keepdims=True) + 1e-6)


def _bf16(x):
    return x.astype(jnp.bfloat16)


# ----------------------------- Pallas kernels -------------------------------
def encoder_kernel(x_ref, mask_ref, wqkv_ref, wo_ref, w1_ref, w2_ref,
                   dec_wkv_ref, kv_ref):
    """One pre-norm encoder layer (self-attn + ReLU FFN) for one batch row,
    plus the hoisted decoder cross-attention K/V projection."""
    x = x_ref[...]              # (S, D) f32   (batch dim squeezed by BlockSpec)
    mask = mask_ref[...]        # (1, S) f32 in {0,1}
    S, D = x.shape
    inv_sqrt_d = 1.0 / float(D) ** 0.5

    xn = _rms(x)
    qkv = jnp.dot(_bf16(xn), wqkv_ref[...],
                  preferred_element_type=jnp.float32)        # (S, 3D)
    q, k, v = qkv[:, :D], qkv[:, D:2 * D], qkv[:, 2 * D:]

    scores = jnp.einsum('qd,kd->qk', _bf16(q), _bf16(k),
                        preferred_element_type=jnp.float32) * inv_sqrt_d
    scores = scores + (mask - 1.0) * 1e9                     # mask padded keys

    m = jnp.max(scores, axis=-1, keepdims=True)
    e = jnp.exp(scores - m)
    probs = e * pl.reciprocal(jnp.sum(e, axis=-1, keepdims=True), approx=True)

    attn = jnp.dot(_bf16(probs), _bf16(v),
                   preferred_element_type=jnp.float32)       # (S, D)
    h = x + jnp.dot(_bf16(attn), wo_ref[...],
                    preferred_element_type=jnp.float32)

    hn = _rms(h)
    ff = jnp.maximum(jnp.dot(_bf16(hn), w1_ref[...],
                             preferred_element_type=jnp.float32), 0.0)
    enc = h + jnp.dot(_bf16(ff), w2_ref[...],
                      preferred_element_type=jnp.float32)

    # Hoisted (loop-invariant) cross-attention K/V for the decoder.
    encn = _rms(enc)
    kv_ref[...] = jnp.dot(_bf16(encn), dec_wkv_ref[...],
                          preferred_element_type=jnp.float32)  # (S, 2D)


def decode_kernel(mask_ref, kv_ref, wq_ref, wo_ref, w1_ref, w2_ref,
                  emb_ref, embT_ref, out_ref, y_sc, seen_sc):
    """Fused greedy decode: one grid step == one generated token.

    Weights / KV / embeddings stay VMEM-resident across the whole grid; the last
    token's embedding (y_sc) and the repetition-penalty 'seen' mask (seen_sc)
    are carried in VMEM scratch. Only token ids are written to the output."""
    t = pl.program_id(0)
    B, Vp = seen_sc.shape
    D = y_sc.shape[1]
    inv_sqrt_d = 1.0 / float(D) ** 0.5

    lane = jax.lax.broadcasted_iota(jnp.int32, (B, Vp), 1)   # (B, Vpad)

    @pl.when(t == 0)
    def _():
        # decoder_start_token_id = 0 (pad), as in T5; it is marked "seen"
        start_onehot = (lane == 0).astype(jnp.float32)
        seen_sc[...] = start_onehot
        y_sc[...] = jnp.dot(_bf16(start_onehot), emb_ref[...],
                            preferred_element_type=jnp.float32)
        out_ref[...] = jnp.zeros_like(out_ref)

    y = y_sc[...]                                            # (B, D) f32
    kv = kv_ref[...]                                         # (B, S, 2D) f32
    k = kv[:, :, :D]
    v = kv[:, :, D:]
    mask = mask_ref[...]                                     # (B, S) f32

    # cross-attention over the (precomputed) encoder K/V
    yn = _rms(y)
    q = jnp.dot(_bf16(yn), wq_ref[...],
                preferred_element_type=jnp.float32)          # (B, D)
    scores = jnp.sum(q[:, None, :] * k, axis=-1) * inv_sqrt_d
    scores = scores + (mask - 1.0) * 1e9                     # (B, S)

    m = jnp.max(scores, axis=-1, keepdims=True)
    e = jnp.exp(scores - m)
    probs = e * pl.reciprocal(jnp.sum(e, axis=-1, keepdims=True), approx=True)
    ctx = jnp.sum(probs[:, :, None] * v, axis=1)             # (B, D)

    h = y + jnp.dot(_bf16(ctx), wo_ref[...],
                    preferred_element_type=jnp.float32)
    hn = _rms(h)
    ff = jnp.maximum(jnp.dot(_bf16(hn), w1_ref[...],
                             preferred_element_type=jnp.float32), 0.0)
    h = h + jnp.dot(_bf16(ff), w2_ref[...],
                    preferred_element_type=jnp.float32)

    # LM head (tied, pre-transposed embeddings) -> lane-dense (B, Vpad) logits
    logits = jnp.dot(_bf16(h), embT_ref[...],
                     preferred_element_type=jnp.float32)
    logits = jnp.where(lane < VOCAB, logits, -1e9)           # mask padded vocab

    # repetition penalty (HF semantics) on previously generated tokens
    seen = seen_sc[...]
    penalized = jnp.where(logits > 0, logits * (1.0 / REP_PENALTY),
                          logits * REP_PENALTY)
    logits = jnp.where(seen > 0, penalized, logits)

    # argmax via max + first-index-of-max (lane reductions only)
    mx = jnp.max(logits, axis=-1, keepdims=True)
    cand = jnp.where(logits >= mx, lane, Vp)
    nxt = jnp.min(cand, axis=-1).astype(jnp.int32)           # (B,)

    # update carried state: seen mask + next-step embedding (one-hot @ emb)
    onehot_nxt = (lane == nxt[:, None]).astype(jnp.float32)
    seen_sc[...] = jnp.maximum(seen, onehot_nxt)
    y_sc[...] = jnp.dot(_bf16(onehot_nxt), emb_ref[...],
                        preferred_element_type=jnp.float32)

    # write token t into the resident output block
    col = jax.lax.broadcasted_iota(jnp.int32, out_ref.shape, 1)
    out_ref[...] = jnp.where(col == t, nxt[:, None], out_ref[...])
    # TODO(synk): no EOS / early-stopping handling (generate() stopping criteria).


# ----------------------------- pallas_call wrappers -------------------------
def encoder_forward(x, mask_f, p):
    """Returns the fused cross-attention K/V tensor (B, S, 2D) f32."""
    B, S, D = x.shape
    mask3 = mask_f.reshape(B, 1, S)
    full2 = lambda b: (0, 0)
    return pl.pallas_call(
        encoder_kernel,
        out_shape=jax.ShapeDtypeStruct((B, S, 2 * D), jnp.float32),
        grid=(B,),
        in_specs=[
            pl.BlockSpec((None, S, D), lambda b: (b, 0, 0)),       # x
            pl.BlockSpec((None, 1, S), lambda b: (b, 0, 0)),       # mask
            pl.BlockSpec((D, 3 * D), full2),                       # enc_wqkv
            pl.BlockSpec((D, D), full2),                           # enc_wo
            pl.BlockSpec((D, D_FF), full2),                        # enc_w1
            pl.BlockSpec((D_FF, D), full2),                        # enc_w2
            pl.BlockSpec((D, 2 * D), full2),                       # dec_wkv
        ],
        out_specs=pl.BlockSpec((None, S, 2 * D), lambda b: (b, 0, 0)),
        compiler_params=pltpu.CompilerParams(
            dimension_semantics=("parallel",)),
    )(x, mask3, p['enc_wqkv'], p['enc_wo'], p['enc_w1'], p['enc_w2'],
      p['dec_wkv'])


def decode_loop(kv, mask_f, p, max_gen=MAX_GEN):
    """Single pallas_call running all greedy decode steps; returns (B, max_gen) int32."""
    B, S, twoD = kv.shape
    D = twoD // 2
    full2 = lambda t: (0, 0)
    full3 = lambda t: (0, 0, 0)
    return pl.pallas_call(
        decode_kernel,
        out_shape=jax.ShapeDtypeStruct((B, max_gen), jnp.int32),
        grid=(max_gen,),
        in_specs=[
            pl.BlockSpec((B, S), full2),                           # mask
            pl.BlockSpec((B, S, twoD), full3),                     # kv (resident)
            pl.BlockSpec((D, D), full2),                           # dec_wq
            pl.BlockSpec((D, D), full2),                           # dec_wo
            pl.BlockSpec((D, D_FF), full2),                        # dec_w1
            pl.BlockSpec((D_FF, D), full2),                        # dec_w2
            pl.BlockSpec((VPAD, D), full2),                        # emb
            pl.BlockSpec((D, VPAD), full2),                        # embT
        ],
        out_specs=pl.BlockSpec((B, max_gen), full2),
        scratch_shapes=[
            pltpu.VMEM((B, D), jnp.float32),                       # carried y
            pltpu.VMEM((B, VPAD), jnp.float32),                    # seen mask
        ],
        compiler_params=pltpu.CompilerParams(
            dimension_semantics=("arbitrary",)),
    )(mask_f, kv, p['dec_wq'], p['dec_wo'], p['dec_w1'], p['dec_w2'],
      p['emb'], p['embT'])


# ----------------------------- generation -----------------------------------
def generate(input_ids, attention_mask, params, max_gen=MAX_GEN):
    """Greedy generate() with repetition_penalty=1.5 on generated tokens."""
    x = jnp.take(params['emb'], input_ids, axis=0).astype(jnp.float32)  # (B,S,D)
    mask_f = attention_mask.astype(jnp.float32)
    kv = encoder_forward(x, mask_f, params)        # encoder + hoisted cross K/V
    return decode_loop(kv, mask_f, params, max_gen)


@functools.partial(jax.jit, static_argnums=())
def t5_text_to_latex(noisy_ids, noisy_mask, params_correct, params_tolatex):
    """Forward of T5TextToLatex on token ids."""
    corrected_ids = generate(noisy_ids, noisy_mask, params_correct)
    # TODO(synk): tokenizer.batch_decode + re-tokenize between the two models is
    # string-level; corrected ids are fed directly to the second model instead.
    latex_mask = jnp.ones_like(corrected_ids)
    latex_ids = generate(corrected_ids, latex_mask, params_tolatex)
    return corrected_ids, latex_ids


# ----------------------------- parameter init -------------------------------
def init_t5_params(key, vocab=VOCAB, vpad=VPAD, d_model=D_MODEL, d_ff=D_FF):
    names_shapes = [
        ('enc_wqkv', (d_model, 3 * d_model)),
        ('enc_wo', (d_model, d_model)),
        ('enc_w1', (d_model, d_ff)), ('enc_w2', (d_ff, d_model)),
        ('dec_wkv', (d_model, 2 * d_model)),
        ('dec_wq', (d_model, d_model)), ('dec_wo', (d_model, d_model)),
        ('dec_w1', (d_model, d_ff)), ('dec_w2', (d_ff, d_model)),
    ]
    params = {}
    for i, (name, shape) in enumerate(names_shapes):
        k = jax.random.fold_in(key, i)
        params[name] = (0.05 * jax.random.normal(k, shape, dtype=jnp.float32)
                        ).astype(jnp.bfloat16)
    # embedding table padded to lane width; padded rows are zero
    k_emb = jax.random.fold_in(key, 100)
    emb = 0.05 * jax.random.normal(k_emb, (vpad, d_model), dtype=jnp.float32)
    valid = (jnp.arange(vpad) < vocab)[:, None]
    emb = jnp.where(valid, emb, 0.0)
    params['emb'] = emb.astype(jnp.bfloat16)            # (Vpad, D)
    params['embT'] = emb.T.astype(jnp.bfloat16)         # (D, Vpad), pre-transposed once
    return params


# ---------------------------------- main -------------------------------------
if __name__ == "__main__":
    key = jax.random.PRNGKey(0)
    k_in, k_m1, k_m2 = jax.random.split(key, 3)

    B, S = 2, 8
    noisy_ids = jax.random.randint(k_in, (B, S), 2, VOCAB, dtype=jnp.int32)
    noisy_mask = jnp.ones((B, S), dtype=jnp.int32).at[1, 6:].set(0)  # some padding

    params_correct = init_t5_params(k_m1)
    params_tolatex = init_t5_params(k_m2)

    corrected_ids, latex_ids = t5_text_to_latex(
        noisy_ids, noisy_mask, params_correct, params_tolatex)
    jax.block_until_ready((corrected_ids, latex_ids))

    assert corrected_ids.shape == (B, MAX_GEN) and corrected_ids.dtype == jnp.int32
    assert latex_ids.shape == (B, MAX_GEN) and latex_ids.dtype == jnp.int32
    assert int(jnp.max(corrected_ids)) < VOCAB and int(jnp.min(corrected_ids)) >= 0
    assert int(jnp.max(latex_ids)) < VOCAB and int(jnp.min(latex_ids)) >= 0
    print("KERNEL_OK")
</pallas_src>

<mosaic_0001>
module attributes {stable_mosaic.version = 11 : i64} {
  func.func @decode_kernel(%arg0: i32, %arg1: memref<2x8xf32, #tpu.memory_space<vmem>>, %arg2: memref<2x8x64xf32, #tpu.memory_space<vmem>>, %arg3: memref<32x32xbf16, #tpu.memory_space<vmem>>, %arg4: memref<32x32xbf16, #tpu.memory_space<vmem>>, %arg5: memref<32x64xbf16, #tpu.memory_space<vmem>>, %arg6: memref<64x32xbf16, #tpu.memory_space<vmem>>, %arg7: memref<128x32xbf16, #tpu.memory_space<vmem>>, %arg8: memref<32x128xbf16, #tpu.memory_space<vmem>>, %arg9: memref<2x8xi32, #tpu.memory_space<vmem>>, %arg10: memref<2x32xf32, #tpu.memory_space<vmem>>, %arg11: memref<2x128xf32, #tpu.memory_space<vmem>>) attributes {dimension_semantics = [#tpu.dimension_semantics<arbitrary>], iteration_bounds = array<i64: 8>, scalar_prefetch = 0 : i64, scratch_operands = 2 : i64, tpu.core_type = #tpu.core_type<tc>, window_params = [{pipeline_mode = #tpu.pipeline_mode<synchronous>, transform_indices = @transform_0, window_bounds = array<i64: 2, 8>}, {pipeline_mode = #tpu.pipeline_mode<synchronous>, transform_indices = @transform_1, window_bounds = array<i64: 2, 8, 64>}, {pipeline_mode = #tpu.pipeline_mode<synchronous>, transform_indices = @transform_2, window_bounds = array<i64: 32, 32>}, {pipeline_mode = #tpu.pipeline_mode<synchronous>, transform_indices = @transform_3, window_bounds = array<i64: 32, 32>}, {pipeline_mode = #tpu.pipeline_mode<synchronous>, transform_indices = @transform_4, window_bounds = array<i64: 32, 64>}, {pipeline_mode = #tpu.pipeline_mode<synchronous>, transform_indices = @transform_5, window_bounds = array<i64: 64, 32>}, {pipeline_mode = #tpu.pipeline_mode<synchronous>, transform_indices = @transform_6, window_bounds = array<i64: 128, 32>}, {pipeline_mode = #tpu.pipeline_mode<synchronous>, transform_indices = @transform_7, window_bounds = array<i64: 32, 128>}, {pipeline_mode = #tpu.pipeline_mode<synchronous>, transform_indices = @transform_8, window_bounds = array<i64: 2, 8>}]} {
    %0 = tpu.iota {dimensions = array<i32: 1>} : vector<2x128xi32>
    %c0_i32 = arith.constant 0 : i32
    %1 = arith.cmpi eq, %arg0, %c0_i32 : i32
    %2 = arith.extui %1 : i1 to i32
    %c0_i32_0 = arith.constant 0 : i32
    %3 = arith.cmpi ne, %2, %c0_i32_0 : i32
    scf.if %3 {
      %c0_i32_55 = arith.constant 0 : i32
      %115 = vector.broadcast %c0_i32_55 : i32 to vector<2x128xi32>
      %116 = arith.cmpi eq, %0, %115 : vector<2x128xi32>
      %117 = arith.extui %116 : vector<2x128xi1> to vector<2x128xi32>
      %118 = arith.sitofp %117 : vector<2x128xi32> to vector<2x128xf32>
      %c0_56 = arith.constant 0 : index
      %c0_57 = arith.constant 0 : index
      %119 = vector.load %arg11[%c0_56, %c0_57] : memref<2x128xf32, #tpu.memory_space<vmem>>, vector<2x128xf32>
      tpu.vector_store %arg11[%c0_56, %c0_57], %118 {strides = array<i32>} : memref<2x128xf32, #tpu.memory_space<vmem>>, vector<2x128xf32>,
      %120 = arith.truncf %118 : vector<2x128xf32> to vector<2x128xbf16>
      %c0_58 = arith.constant 0 : index
      %c0_59 = arith.constant 0 : index
      %121 = vector.load %arg7[%c0_58, %c0_59] : memref<128x32xbf16, #tpu.memory_space<vmem>>, vector<128x32xbf16>
      %cst_60 = arith.constant dense<0.000000e+00> : vector<2x32xf32>
      %122 = tpu.matmul %120, %121, %cst_60 {dimension_numbers = #tpu.dot_dimension_numbers<[1], [0], [0], [1], [0, 0, 1, 1], [], []>} : vector<2x128xbf16>, vector<128x32xbf16>, vector<2x32xf32> -> vector<2x32xf32>
      %c0_61 = arith.constant 0 : index
      %c0_62 = arith.constant 0 : index
      %123 = vector.load %arg10[%c0_61, %c0_62] : memref<2x32xf32, #tpu.memory_space<vmem>>, vector<2x32xf32>
      tpu.vector_store %arg10[%c0_61, %c0_62], %122 {strides = array<i32>} : memref<2x32xf32, #tpu.memory_space<vmem>>, vector<2x32xf32>,
      %c0_i32_63 = arith.constant 0 : i32
      %124 = vector.broadcast %c0_i32_63 : i32 to vector<2x8xi32>
      %c0_64 = arith.constant 0 : index
      %c0_65 = arith.constant 0 : index
      %125 = vector.load %arg9[%c0_64, %c0_65] : memref<2x8xi32, #tpu.memory_space<vmem>>, vector<2x8xi32>
      tpu.vector_store %arg9[%c0_64, %c0_65], %124 {strides = array<i32>} : memref<2x8xi32, #tpu.memory_space<vmem>>, vector<2x8xi32>,
    } else {
    }
    %c0 = arith.constant 0 : index
    %c0_1 = arith.constant 0 : index
    %4 = vector.load %arg10[%c0, %c0_1] : memref<2x32xf32, #tpu.memory_space<vmem>>, vector<2x32xf32>
    %c0_2 = arith.constant 0 : index
    %c0_3 = arith.constant 0 : index
    %c0_4 = arith.constant 0 : index
    %5 = vector.load %arg2[%c0_2, %c0_3, %c0_4] : memref<2x8x64xf32, #tpu.memory_space<vmem>>, vector<2x8x64xf32>
    %6 = vector.extract_strided_slice %5 {offsets = [0, 0, 0], sizes = [2, 8, 32], strides = [1, 1, 1]} : vector<2x8x64xf32> to vector<2x8x32xf32>
    %7 = vector.extract_strided_slice %5 {offsets = [0, 0, 32], sizes = [2, 8, 32], strides = [1, 1, 1]} : vector<2x8x64xf32> to vector<2x8x32xf32>
    %c0_5 = arith.constant 0 : index
    %c0_6 = arith.constant 0 : index
    %8 = vector.load %arg1[%c0_5, %c0_6] : memref<2x8xf32, #tpu.memory_space<vmem>>, vector<2x8xf32>
    %9 = arith.mulf %4, %4 : vector<2x32xf32>
    %cst = arith.constant dense<0.000000e+00> : vector<2xf32>
    %10 = vector.multi_reduction <add>, %9, %cst [1] : vector<2x32xf32> to vector<2xf32>
    %11 = vector.shape_cast %10 : vector<2xf32> to vector<2x1xf32>
    %cst_7 = arith.constant 3.200000e+01 : f32
    %12 = vector.broadcast %cst_7 : f32 to vector<2x1xf32>
    %13 = arith.divf %11, %12 : vector<2x1xf32>
    %cst_8 = arith.constant 9.99999997E-7 : f32
    %14 = vector.broadcast %cst_8 : f32 to vector<2x1xf32>
    %15 = arith.addf %13, %14 : vector<2x1xf32>
    %16 = math.rsqrt %15 : vector<2x1xf32>
    %17 = vector.broadcast %16 : vector<2x1xf32> to vector<2x32xf32>
    %18 = arith.mulf %4, %17 : vector<2x32xf32>
    %19 = arith.truncf %18 : vector<2x32xf32> to vector<2x32xbf16>
    %c0_9 = arith.constant 0 : index
    %c0_10 = arith.constant 0 : index
    %20 = vector.load %arg3[%c0_9, %c0_10] : memref<32x32xbf16, #tpu.memory_space<vmem>>, vector<32x32xbf16>
    %cst_11 = arith.constant dense<0.000000e+00> : vector<2x32xf32>
    %21 = tpu.matmul %19, %20, %cst_11 {dimension_numbers = #tpu.dot_dimension_numbers<[1], [0], [0], [1], [0, 0, 1, 1], [], []>} : vector<2x32xbf16>, vector<32x32xbf16>, vector<2x32xf32> -> vector<2x32xf32>
    %22 = vector.shape_cast %21 : vector<2x32xf32> to vector<2x1x32xf32>
    %23 = vector.broadcast %22 : vector<2x1x32xf32> to vector<2x8x32xf32>
    %24 = arith.mulf %23, %6 : vector<2x8x32xf32>
    %cst_12 = arith.constant dense<0.000000e+00> : vector<2x8xf32>
    %25 = vector.multi_reduction <add>, %24, %cst_12 [2] : vector<2x8x32xf32> to vector<2x8xf32>
    %cst_13 = arith.constant 0.176776692 : f32
    %26 = vector.broadcast %cst_13 : f32 to vector<2x8xf32>
    %27 = arith.mulf %25, %26 : vector<2x8xf32>
    %cst_14 = arith.constant 1.000000e+00 : f32
    %28 = vector.broadcast %cst_14 : f32 to vector<2x8xf32>
    %29 = arith.subf %8, %28 : vector<2x8xf32>
    %cst_15 = arith.constant 1.000000e+09 : f32
    %30 = vector.broadcast %cst_15 : f32 to vector<2x8xf32>
    %31 = arith.mulf %29, %30 : vector<2x8xf32>
    %32 = arith.addf %27, %31 : vector<2x8xf32>
    %cst_16 = arith.constant dense<0xFF800000> : vector<2xf32>
    %33 = vector.multi_reduction <maximumf>, %32, %cst_16 [1] : vector<2x8xf32> to vector<2xf32>
    %34 = vector.shape_cast %33 : vector<2xf32> to vector<2x1xf32>
    %35 = vector.broadcast %34 : vector<2x1xf32> to vector<2x8xf32>
    %36 = arith.subf %32, %35 : vector<2x8xf32>
    %37 = math.exp %36 : vector<2x8xf32>
    %cst_17 = arith.constant dense<0.000000e+00> : vector<2xf32>
    %38 = vector.multi_reduction <add>, %37, %cst_17 [1] : vector<2x8xf32> to vector<2xf32>
    %39 = vector.shape_cast %38 : vector<2xf32> to vector<2x1xf32>
    %40 = tpu.reciprocal %39 {approx = true} : vector<2x1xf32> -> vector<2x1xf32>
    %41 = vector.broadcast %40 : vector<2x1xf32> to vector<2x8xf32>
    %42 = arith.mulf %37, %41 : vector<2x8xf32>
    %43 = vector.shape_cast %42 : vector<2x8xf32> to vector<2x8x1xf32>
    %44 = vector.broadcast %43 : vector<2x8x1xf32> to vector<2x8x32xf32>
    %45 = arith.mulf %44, %7 : vector<2x8x32xf32>
    %cst_18 = arith.constant dense<0.000000e+00> : vector<2x32xf32>
    %46 = vector.multi_reduction <add>, %45, %cst_18 [1] : vector<2x8x32xf32> to vector<2x32xf32>
    %47 = arith.truncf %46 : vector<2x32xf32> to vector<2x32xbf16>
    %c0_19 = arith.constant 0 : index
    %c0_20 = arith.constant 0 : index
    %48 = vector.load %arg4[%c0_19, %c0_20] : memref<32x32xbf16, #tpu.memory_space<vmem>>, vector<32x32xbf16>
    %cst_21 = arith.constant dense<0.000000e+00> : vector<2x32xf32>
    %49 = tpu.matmul %47, %48, %cst_21 {dimension_numbers = #tpu.dot_dimension_numbers<[1], [0], [0], [1], [0, 0, 1, 1], [], []>} : vector<2x32xbf16>, vector<32x32xbf16>, vector<2x32xf32> -> vector<2x32xf32>
    %50 = arith.addf %4, %49 : vector<2x32xf32>
    %51 = arith.mulf %50, %50 : vector<2x32xf32>
    %cst_22 = arith.constant dense<0.000000e+00> : vector<2xf32>
    %52 = vector.multi_reduction <add>, %51, %cst_22 [1] : vector<2x32xf32> to vector<2xf32>
    %53 = vector.shape_cast %52 : vector<2xf32> to vector<2x1xf32>
    %cst_23 = arith.constant 3.200000e+01 : f32
    %54 = vector.broadcast %cst_23 : f32 to vector<2x1xf32>
    %55 = arith.divf %53, %54 : vector<2x1xf32>
    %cst_24 = arith.constant 9.99999997E-7 : f32
    %56 = vector.broadcast %cst_24 : f32 to vector<2x1xf32>
    %57 = arith.addf %55, %56 : vector<2x1xf32>
    %58 = math.rsqrt %57 : vector<2x1xf32>
    %59 = vector.broadcast %58 : vector<2x1xf32> to vector<2x32xf32>
    %60 = arith.mulf %50, %59 : vector<2x32xf32>
    %61 = arith.truncf %60 : vector<2x32xf32> to vector<2x32xbf16>
    %c0_25 = arith.constant 0 : index
    %c0_26 = arith.constant 0 : index
    %62 = vector.load %arg5[%c0_25, %c0_26] : memref<32x64xbf16, #tpu.memory_space<vmem>>, vector<32x64xbf16>
    %cst_27 = arith.constant dense<0.000000e+00> : vector<2x64xf32>
    %63 = tpu.matmul %61, %62, %cst_27 {dimension_numbers = #tpu.dot_dimension_numbers<[1], [0], [0], [1], [0, 0, 1, 1], [], []>} : vector<2x32xbf16>, vector<32x64xbf16>, vector<2x64xf32> -> vector<2x64xf32>
    %cst_28 = arith.constant 0.000000e+00 : f32
    %64 = vector.broadcast %cst_28 : f32 to vector<2x64xf32>
    %65 = arith.maximumf %63, %64 : vector<2x64xf32>
    %66 = arith.truncf %65 : vector<2x64xf32> to vector<2x64xbf16>
    %c0_29 = arith.constant 0 : index
    %c0_30 = arith.constant 0 : index
    %67 = vector.load %arg6[%c0_29, %c0_30] : memref<64x32xbf16, #tpu.memory_space<vmem>>, vector<64x32xbf16>
    %cst_31 = arith.constant dense<0.000000e+00> : vector<2x32xf32>
    %68 = tpu.matmul %66, %67, %cst_31 {dimension_numbers = #tpu.dot_dimension_numbers<[1], [0], [0], [1], [0, 0, 1, 1], [], []>} : vector<2x64xbf16>, vector<64x32xbf16>, vector<2x32xf32> -> vector<2x32xf32>
    %69 = arith.addf %50, %68 : vector<2x32xf32>
    %70 = arith.truncf %69 : vector<2x32xf32> to vector<2x32xbf16>
    %c0_32 = arith.constant 0 : index
    %c0_33 = arith.constant 0 : index
    %71 = vector.load %arg8[%c0_32, %c0_33] : memref<32x128xbf16, #tpu.memory_space<vmem>>, vector<32x128xbf16>
    %cst_34 = arith.constant dense<0.000000e+00> : vector<2x128xf32>
    %72 = tpu.matmul %70, %71, %cst_34 {dimension_numbers = #tpu.dot_dimension_numbers<[1], [0], [0], [1], [0, 0, 1, 1], [], []>} : vector<2x32xbf16>, vector<32x128xbf16>, vector<2x128xf32> -> vector<2x128xf32>
    %c64_i32 = arith.constant 64 : i32
    %73 = vector.broadcast %c64_i32 : i32 to vector<2x128xi32>
    %74 = arith.cmpi slt, %0, %73 : vector<2x128xi32>
    %cst_35 = arith.constant -1.000000e+09 : f32
    %75 = vector.broadcast %cst_35 : f32 to vector<2x128xf32>
    %76 = arith.select %74, %72, %75 : vector<2x128xi1>, vector<2x128xf32>
    %c0_36 = arith.constant 0 : index
    %c0_37 = arith.constant 0 : index
    %77 = vector.load %arg11[%c0_36, %c0_37] : memref<2x128xf32, #tpu.memory_space<vmem>>, vector<2x128xf32>
    %cst_38 = arith.constant 0.000000e+00 : f32
    %78 = vector.broadcast %cst_38 : f32 to vector<2x128xf32>
    %79 = arith.cmpf ogt, %76, %78 : vector<2x128xf32>
    %cst_39 = arith.constant 0.666666686 : f32
    %80 = vector.broadcast %cst_39 : f32 to vector<2x128xf32>
    %81 = arith.mulf %76, %80 : vector<2x128xf32>
    %cst_40 = arith.constant 1.500000e+00 : f32
    %82 = vector.broadcast %cst_40 : f32 to vector<2x128xf32>
    %83 = arith.mulf %76, %82 : vector<2x128xf32>
    %84 = arith.select %79, %81, %83 : vector<2x128xi1>, vector<2x128xf32>
    %cst_41 = arith.constant 0.000000e+00 : f32
    %85 = vector.broadcast %cst_41 : f32 to vector<2x128xf32>
    %86 = arith.cmpf ogt, %77, %85 : vector<2x128xf32>
    %87 = arith.select %86, %84, %76 : vector<2x128xi1>, vector<2x128xf32>
    %cst_42 = arith.constant dense<0xFF800000> : vector<2xf32>
    %88 = vector.multi_reduction <maximumf>, %87, %cst_42 [1] : vector<2x128xf32> to vector<2xf32>
    %89 = vector.shape_cast %88 : vector<2xf32> to vector<2x1xf32>
    %90 = vector.broadcast %89 : vector<2x1xf32> to vector<2x128xf32>
    %91 = arith.cmpf oge, %87, %90 : vector<2x128xf32>
    %c128_i32 = arith.constant 128 : i32
    %92 = vector.broadcast %c128_i32 : i32 to vector<2x128xi32>
    %93 = arith.select %91, %0, %92 : vector<2x128xi1>, vector<2x128xi32>
    %cst_43 = arith.constant dense<2147483647> : vector<2xi32>
    %94 = vector.multi_reduction <minsi>, %93, %cst_43 [1] : vector<2x128xi32> to vector<2xi32>
    %95 = vector.shape_cast %94 : vector<2xi32> to vector<2x1xi32>
    %96 = vector.broadcast %95 : vector<2x1xi32> to vector<2x128xi32>
    %97 = arith.cmpi eq, %0, %96 : vector<2x128xi32>
    %98 = arith.extui %97 : vector<2x128xi1> to vector<2x128xi32>
    %99 = arith.sitofp %98 : vector<2x128xi32> to vector<2x128xf32>
    %100 = arith.maximumf %77, %99 : vector<2x128xf32>
    %c0_44 = arith.constant 0 : index
    %c0_45 = arith.constant 0 : index
    %101 = vector.load %arg11[%c0_44, %c0_45] : memref<2x128xf32, #tpu.memory_space<vmem>>, vector<2x128xf32>
    tpu.vector_store %arg11[%c0_44, %c0_45], %100 {strides = array<i32>} : memref<2x128xf32, #tpu.memory_space<vmem>>, vector<2x128xf32>,
    %102 = arith.truncf %99 : vector<2x128xf32> to vector<2x128xbf16>
    %c0_46 = arith.constant 0 : index
    %c0_47 = arith.constant 0 : index
    %103 = vector.load %arg7[%c0_46, %c0_47] : memref<128x32xbf16, #tpu.memory_space<vmem>>, vector<128x32xbf16>
    %cst_48 = arith.constant dense<0.000000e+00> : vector<2x32xf32>
    %104 = tpu.matmul %102, %103, %cst_48 {dimension_numbers = #tpu.dot_dimension_numbers<[1], [0], [0], [1], [0, 0, 1, 1], [], []>} : vector<2x128xbf16>, vector<128x32xbf16>, vector<2x32xf32> -> vector<2x32xf32>
    %c0_49 = arith.constant 0 : index
    %c0_50 = arith.constant 0 : index
    %105 = vector.load %arg10[%c0_49, %c0_50] : memref<2x32xf32, #tpu.memory_space<vmem>>, vector<2x32xf32>
    tpu.vector_store %arg10[%c0_49, %c0_50], %104 {strides = array<i32>} : memref<2x32xf32, #tpu.memory_space<vmem>>, vector<2x32xf32>,
    %106 = tpu.iota {dimensions = array<i32: 1>} : vector<2x8xi32>
    %107 = vector.broadcast %arg0 : i32 to vector<2x8xi32>
    %108 = arith.cmpi eq, %106, %107 : vector<2x8xi32>
    %109 = vector.shape_cast %94 : vector<2xi32> to vector<2x1xi32>
    %c0_51 = arith.constant 0 : index
    %c0_52 = arith.constant 0 : index
    %110 = vector.load %arg9[%c0_51, %c0_52] : memref<2x8xi32, #tpu.memory_space<vmem>>, vector<2x8xi32>
    %111 = vector.shape_cast %109 : vector<2x1xi32> to vector<2x1xi32>
    %112 = vector.broadcast %111 : vector<2x1xi32> to vector<2x8xi32>
    %113 = arith.select %108, %112, %110 : vector<2x8xi1>, vector<2x8xi32>
    %c0_53 = arith.constant 0 : index
    %c0_54 = arith.constant 0 : index
    %114 = vector.load %arg9[%c0_53, %c0_54] : memref<2x8xi32, #tpu.memory_space<vmem>>, vector<2x8xi32>
    tpu.vector_store %arg9[%c0_53, %c0_54], %113 {strides = array<i32>} : memref<2x8xi32, #tpu.memory_space<vmem>>, vector<2x8xi32>,
    return
  }
  func.func @transform_0(%arg0: i32) -> (i32, i32) {
    %c0_i32 = arith.constant 0 : i32
    %c0_i32_0 = arith.constant 0 : i32
    %c0_i32_1 = arith.constant 0 : i32
    return %c0_i32, %c0_i32_0 : i32, i32
  }
  func.func @transform_1(%arg0: i32) -> (i32, i32, i32) {
    %c0_i32 = arith.constant 0 : i32
    %c0_i32_0 = arith.constant 0 : i32
    %c0_i32_1 = arith.constant 0 : i32
    %c0_i32_2 = arith.constant 0 : i32
    return %c0_i32, %c0_i32_0, %c0_i32_1 : i32, i32, i32
  }
  func.func @transform_2(%arg0: i32) -> (i32, i32) {
    %c0_i32 = arith.constant 0 : i32
    %c0_i32_0 = arith.constant 0 : i32
    %c0_i32_1 = arith.constant 0 : i32
    return %c0_i32, %c0_i32_0 : i32, i32
  }
  func.func @transform_3(%arg0: i32) -> (i32, i32) {
    %c0_i32 = arith.constant 0 : i32
    %c0_i32_0 = arith.constant 0 : i32
    %c0_i32_1 = arith.constant 0 : i32
    return %c0_i32, %c0_i32_0 : i32, i32
  }
  func.func @transform_4(%arg0: i32) -> (i32, i32) {
    %c0_i32 = arith.constant 0 : i32
    %c0_i32_0 = arith.constant 0 : i32
    %c0_i32_1 = arith.constant 0 : i32
    return %c0_i32, %c0_i32_0 : i32, i32
  }
  func.func @transform_5(%arg0: i32) -> (i32, i32) {
    %c0_i32 = arith.constant 0 : i32
    %c0_i32_0 = arith.constant 0 : i32
    %c0_i32_1 = arith.constant 0 : i32
    return %c0_i32, %c0_i32_0 : i32, i32
  }
  func.func @transform_6(%arg0: i32) -> (i32, i32) {
    %c0_i32 = arith.constant 0 : i32
    %c0_i32_0 = arith.constant 0 : i32
    %c0_i32_1 = arith.constant 0 : i32
    return %c0_i32, %c0_i32_0 : i32, i32
  }
  func.func @transform_7(%arg0: i32) -> (i32, i32) {
    %c0_i32 = arith.constant 0 : i32
    %c0_i32_0 = arith.constant 0 : i32
    %c0_i32_1 = arith.constant 0 : i32
    return %c0_i32, %c0_i32_0 : i32, i32
  }
  func.func @transform_8(%arg0: i32) -> (i32, i32) {
    %c0_i32 = arith.constant 0 : i32
    %c0_i32_0 = arith.constant 0 : i32
    %c0_i32_1 = arith.constant 0 : i32
    return %c0_i32, %c0_i32_0 : i32, i32
  }
}

module attributes {stable_mosaic.version = 11 : i64} {
  func.func @decode_kernel(%arg0: i32, %arg1: memref<2x8xf32, #tpu.memory_space<vmem>>, %arg2: memref<2x8x64xf32, #tpu.memory_space<vmem>>, %arg3: memref<32x32xbf16, #tpu.memory_space<vmem>>, %arg4: memref<32x32xbf16, #tpu.memory_space<vmem>>, %arg5: memref<32x64xbf16, #tpu.memory_space<vmem>>, %arg6: memref<64x32xbf16, #tpu.memory_space<vmem>>, %arg7: memref<128x32xbf16, #tpu.memory_space<vmem>>, %arg8: memref<32x128xbf16, #tpu.memory_space<vmem>>, %arg9: memref<2x8xi32, #tpu.memory_space<vmem>>, %arg10: memref<2x32xf32, #tpu.memory_space<vmem>>, %arg11: memref<2x128xf32, #tpu.memory_space<vmem>>) attributes {dimension_semantics = [#tpu.dimension_semantics<arbitrary>], iteration_bounds = array<i64: 8>, scalar_prefetch = 0 : i64, scratch_operands = 2 : i64, tpu.core_type = #tpu.core_type<tc>, window_params = [{pipeline_mode = #tpu.pipeline_mode<synchronous>, transform_indices = @transform_0, window_bounds = array<i64: 2, 8>}, {pipeline_mode = #tpu.pipeline_mode<synchronous>, transform_indices = @transform_1, window_bounds = array<i64: 2, 8, 64>}, {pipeline_mode = #tpu.pipeline_mode<synchronous>, transform_indices = @transform_2, window_bounds = array<i64: 32, 32>}, {pipeline_mode = #tpu.pipeline_mode<synchronous>, transform_indices = @transform_3, window_bounds = array<i64: 32, 32>}, {pipeline_mode = #tpu.pipeline_mode<synchronous>, transform_indices = @transform_4, window_bounds = array<i64: 32, 64>}, {pipeline_mode = #tpu.pipeline_mode<synchronous>, transform_indices = @transform_5, window_bounds = array<i64: 64, 32>}, {pipeline_mode = #tpu.pipeline_mode<synchronous>, transform_indices = @transform_6, window_bounds = array<i64: 128, 32>}, {pipeline_mode = #tpu.pipeline_mode<synchronous>, transform_indices = @transform_7, window_bounds = array<i64: 32, 128>}, {pipeline_mode = #tpu.pipeline_mode<synchronous>, transform_indices = @transform_8, window_bounds = array<i64: 2, 8>}]} {
    %0 = tpu.iota {dimensions = array<i32: 1>} : vector<2x128xi32>
    %c0_i32 = arith.constant 0 : i32
    %1 = arith.cmpi eq, %arg0, %c0_i32 : i32
    %2 = arith.extui %1 : i1 to i32
    %c0_i32_0 = arith.constant 0 : i32
    %3 = arith.cmpi ne, %2, %c0_i32_0 : i32
    scf.if %3 {
      %c0_i32_55 = arith.constant 0 : i32
      %115 = vector.broadcast %c0_i32_55 : i32 to vector<2x128xi32>
      %116 = arith.cmpi eq, %0, %115 : vector<2x128xi32>
      %117 = arith.extui %116 : vector<2x128xi1> to vector<2x128xi32>
      %118 = arith.sitofp %117 : vector<2x128xi32> to vector<2x128xf32>
      %c0_56 = arith.constant 0 : index
      %c0_57 = arith.constant 0 : index
      %119 = vector.load %arg11[%c0_56, %c0_57] : memref<2x128xf32, #tpu.memory_space<vmem>>, vector<2x128xf32>
      tpu.vector_store %arg11[%c0_56, %c0_57], %118 {strides = array<i32>} : memref<2x128xf32, #tpu.memory_space<vmem>>, vector<2x128xf32>,
      %120 = arith.truncf %118 : vector<2x128xf32> to vector<2x128xbf16>
      %c0_58 = arith.constant 0 : index
      %c0_59 = arith.constant 0 : index
      %121 = vector.load %arg7[%c0_58, %c0_59] : memref<128x32xbf16, #tpu.memory_space<vmem>>, vector<128x32xbf16>
      %cst_60 = arith.constant dense<0.000000e+00> : vector<2x32xf32>
      %122 = tpu.matmul %120, %121, %cst_60 {dimension_numbers = #tpu.dot_dimension_numbers<[1], [0], [0], [1], [0, 0, 1, 1], [], []>} : vector<2x128xbf16>, vector<128x32xbf16>, vector<2x32xf32> -> vector<2x32xf32>
      %c0_61 = arith.constant 0 : index
      %c0_62 = arith.constant 0 : index
      %123 = vector.load %arg10[%c0_61, %c0_62] : memref<2x32xf32, #tpu.memory_space<vmem>>, vector<2x32xf32>
      tpu.vector_store %arg10[%c0_61, %c0_62], %122 {strides = array<i32>} : memref<2x32xf32, #tpu.memory_space<vmem>>, vector<2x32xf32>,
      %c0_i32_63 = arith.constant 0 : i32
      %124 = vector.broadcast %c0_i32_63 : i32 to vector<2x8xi32>
      %c0_64 = arith.constant 0 : index
      %c0_65 = arith.constant 0 : index
      %125 = vector.load %arg9[%c0_64, %c0_65] : memref<2x8xi32, #tpu.memory_space<vmem>>, vector<2x8xi32>
      tpu.vector_store %arg9[%c0_64, %c0_65], %124 {strides = array<i32>} : memref<2x8xi32, #tpu.memory_space<vmem>>, vector<2x8xi32>,
    } else {
    }
    %c0 = arith.constant 0 : index
    %c0_1 = arith.constant 0 : index
    %4 = vector.load %arg10[%c0, %c0_1] : memref<2x32xf32, #tpu.memory_space<vmem>>, vector<2x32xf32>
    %c0_2 = arith.constant 0 : index
    %c0_3 = arith.constant 0 : index
    %c0_4 = arith.constant 0 : index
    %5 = vector.load %arg2[%c0_2, %c0_3, %c0_4] : memref<2x8x64xf32, #tpu.memory_space<vmem>>, vector<2x8x64xf32>
    %6 = vector.extract_strided_slice %5 {offsets = [0, 0, 0], sizes = [2, 8, 32], strides = [1, 1, 1]} : vector<2x8x64xf32> to vector<2x8x32xf32>
    %7 = vector.extract_strided_slice %5 {offsets = [0, 0, 32], sizes = [2, 8, 32], strides = [1, 1, 1]} : vector<2x8x64xf32> to vector<2x8x32xf32>
    %c0_5 = arith.constant 0 : index
    %c0_6 = arith.constant 0 : index
    %8 = vector.load %arg1[%c0_5, %c0_6] : memref<2x8xf32, #tpu.memory_space<vmem>>, vector<2x8xf32>
    %9 = arith.mulf %4, %4 : vector<2x32xf32>
    %cst = arith.constant dense<0.000000e+00> : vector<2xf32>
    %10 = vector.multi_reduction <add>, %9, %cst [1] : vector<2x32xf32> to vector<2xf32>
    %11 = vector.shape_cast %10 : vector<2xf32> to vector<2x1xf32>
    %cst_7 = arith.constant 3.200000e+01 : f32
    %12 = vector.broadcast %cst_7 : f32 to vector<2x1xf32>
    %13 = arith.divf %11, %12 : vector<2x1xf32>
    %cst_8 = arith.constant 9.99999997E-7 : f32
    %14 = vector.broadcast %cst_8 : f32 to vector<2x1xf32>
    %15 = arith.addf %13, %14 : vector<2x1xf32>
    %16 = math.rsqrt %15 : vector<2x1xf32>
    %17 = vector.broadcast %16 : vector<2x1xf32> to vector<2x32xf32>
    %18 = arith.mulf %4, %17 : vector<2x32xf32>
    %19 = arith.truncf %18 : vector<2x32xf32> to vector<2x32xbf16>
    %c0_9 = arith.constant 0 : index
    %c0_10 = arith.constant 0 : index
    %20 = vector.load %arg3[%c0_9, %c0_10] : memref<32x32xbf16, #tpu.memory_space<vmem>>, vector<32x32xbf16>
    %cst_11 = arith.constant dense<0.000000e+00> : vector<2x32xf32>
    %21 = tpu.matmul %19, %20, %cst_11 {dimension_numbers = #tpu.dot_dimension_numbers<[1], [0], [0], [1], [0, 0, 1, 1], [], []>} : vector<2x32xbf16>, vector<32x32xbf16>, vector<2x32xf32> -> vector<2x32xf32>
    %22 = vector.shape_cast %21 : vector<2x32xf32> to vector<2x1x32xf32>
    %23 = vector.broadcast %22 : vector<2x1x32xf32> to vector<2x8x32xf32>
    %24 = arith.mulf %23, %6 : vector<2x8x32xf32>
    %cst_12 = arith.constant dense<0.000000e+00> : vector<2x8xf32>
    %25 = vector.multi_reduction <add>, %24, %cst_12 [2] : vector<2x8x32xf32> to vector<2x8xf32>
    %cst_13 = arith.constant 0.176776692 : f32
    %26 = vector.broadcast %cst_13 : f32 to vector<2x8xf32>
    %27 = arith.mulf %25, %26 : vector<2x8xf32>
    %cst_14 = arith.constant 1.000000e+00 : f32
    %28 = vector.broadcast %cst_14 : f32 to vector<2x8xf32>
    %29 = arith.subf %8, %28 : vector<2x8xf32>
    %cst_15 = arith.constant 1.000000e+09 : f32
    %30 = vector.broadcast %cst_15 : f32 to vector<2x8xf32>
    %31 = arith.mulf %29, %30 : vector<2x8xf32>
    %32 = arith.addf %27, %31 : vector<2x8xf32>
    %cst_16 = arith.constant dense<0xFF800000> : vector<2xf32>
    %33 = vector.multi_reduction <maximumf>, %32, %cst_16 [1] : vector<2x8xf32> to vector<2xf32>
    %34 = vector.shape_cast %33 : vector<2xf32> to vector<2x1xf32>
    %35 = vector.broadcast %34 : vector<2x1xf32> to vector<2x8xf32>
    %36 = arith.subf %32, %35 : vector<2x8xf32>
    %37 = math.exp %36 : vector<2x8xf32>
    %cst_17 = arith.constant dense<0.000000e+00> : vector<2xf32>
    %38 = vector.multi_reduction <add>, %37, %cst_17 [1] : vector<2x8xf32> to vector<2xf32>
    %39 = vector.shape_cast %38 : vector<2xf32> to vector<2x1xf32>
    %40 = tpu.reciprocal %39 {approx = true} : vector<2x1xf32> -> vector<2x1xf32>
    %41 = vector.broadcast %40 : vector<2x1xf32> to vector<2x8xf32>
    %42 = arith.mulf %37, %41 : vector<2x8xf32>
    %43 = vector.shape_cast %42 : vector<2x8xf32> to vector<2x8x1xf32>
    %44 = vector.broadcast %43 : vector<2x8x1xf32> to vector<2x8x32xf32>
    %45 = arith.mulf %44, %7 : vector<2x8x32xf32>
    %cst_18 = arith.constant dense<0.000000e+00> : vector<2x32xf32>
    %46 = vector.multi_reduction <add>, %45, %cst_18 [1] : vector<2x8x32xf32> to vector<2x32xf32>
    %47 = arith.truncf %46 : vector<2x32xf32> to vector<2x32xbf16>
    %c0_19 = arith.constant 0 : index
    %c0_20 = arith.constant 0 : index
    %48 = vector.load %arg4[%c0_19, %c0_20] : memref<32x32xbf16, #tpu.memory_space<vmem>>, vector<32x32xbf16>
    %cst_21 = arith.constant dense<0.000000e+00> : vector<2x32xf32>
    %49 = tpu.matmul %47, %48, %cst_21 {dimension_numbers = #tpu.dot_dimension_numbers<[1], [0], [0], [1], [0, 0, 1, 1], [], []>} : vector<2x32xbf16>, vector<32x32xbf16>, vector<2x32xf32> -> vector<2x32xf32>
    %50 = arith.addf %4, %49 : vector<2x32xf32>
    %51 = arith.mulf %50, %50 : vector<2x32xf32>
    %cst_22 = arith.constant dense<0.000000e+00> : vector<2xf32>
    %52 = vector.multi_reduction <add>, %51, %cst_22 [1] : vector<2x32xf32> to vector<2xf32>
    %53 = vector.shape_cast %52 : vector<2xf32> to vector<2x1xf32>
    %cst_23 = arith.constant 3.200000e+01 : f32
    %54 = vector.broadcast %cst_23 : f32 to vector<2x1xf32>
    %55 = arith.divf %53, %54 : vector<2x1xf32>
    %cst_24 = arith.constant 9.99999997E-7 : f32
    %56 = vector.broadcast %cst_24 : f32 to vector<2x1xf32>
    %57 = arith.addf %55, %56 : vector<2x1xf32>
    %58 = math.rsqrt %57 : vector<2x1xf32>
    %59 = vector.broadcast %58 : vector<2x1xf32> to vector<2x32xf32>
    %60 = arith.mulf %50, %59 : vector<2x32xf32>
    %61 = arith.truncf %60 : vector<2x32xf32> to vector<2x32xbf16>
    %c0_25 = arith.constant 0 : index
    %c0_26 = arith.constant 0 : index
    %62 = vector.load %arg5[%c0_25, %c0_26] : memref<32x64xbf16, #tpu.memory_space<vmem>>, vector<32x64xbf16>
    %cst_27 = arith.constant dense<0.000000e+00> : vector<2x64xf32>
    %63 = tpu.matmul %61, %62, %cst_27 {dimension_numbers = #tpu.dot_dimension_numbers<[1], [0], [0], [1], [0, 0, 1, 1], [], []>} : vector<2x32xbf16>, vector<32x64xbf16>, vector<2x64xf32> -> vector<2x64xf32>
    %cst_28 = arith.constant 0.000000e+00 : f32
    %64 = vector.broadcast %cst_28 : f32 to vector<2x64xf32>
    %65 = arith.maximumf %63, %64 : vector<2x64xf32>
    %66 = arith.truncf %65 : vector<2x64xf32> to vector<2x64xbf16>
    %c0_29 = arith.constant 0 : index
    %c0_30 = arith.constant 0 : index
    %67 = vector.load %arg6[%c0_29, %c0_30] : memref<64x32xbf16, #tpu.memory_space<vmem>>, vector<64x32xbf16>
    %cst_31 = arith.constant dense<0.000000e+00> : vector<2x32xf32>
    %68 = tpu.matmul %66, %67, %cst_31 {dimension_numbers = #tpu.dot_dimension_numbers<[1], [0], [0], [1], [0, 0, 1, 1], [], []>} : vector<2x64xbf16>, vector<64x32xbf16>, vector<2x32xf32> -> vector<2x32xf32>
    %69 = arith.addf %50, %68 : vector<2x32xf32>
    %70 = arith.truncf %69 : vector<2x32xf32> to vector<2x32xbf16>
    %c0_32 = arith.constant 0 : index
    %c0_33 = arith.constant 0 : index
    %71 = vector.load %arg8[%c0_32, %c0_33] : memref<32x128xbf16, #tpu.memory_space<vmem>>, vector<32x128xbf16>
    %cst_34 = arith.constant dense<0.000000e+00> : vector<2x128xf32>
    %72 = tpu.matmul %70, %71, %cst_34 {dimension_numbers = #tpu.dot_dimension_numbers<[1], [0], [0], [1], [0, 0, 1, 1], [], []>} : vector<2x32xbf16>, vector<32x128xbf16>, vector<2x128xf32> -> vector<2x128xf32>
    %c64_i32 = arith.constant 64 : i32
    %73 = vector.broadcast %c64_i32 : i32 to vector<2x128xi32>
    %74 = arith.cmpi slt, %0, %73 : vector<2x128xi32>
    %cst_35 = arith.constant -1.000000e+09 : f32
    %75 = vector.broadcast %cst_35 : f32 to vector<2x128xf32>
    %76 = arith.select %74, %72, %75 : vector<2x128xi1>, vector<2x128xf32>
    %c0_36 = arith.constant 0 : index
    %c0_37 = arith.constant 0 : index
    %77 = vector.load %arg11[%c0_36, %c0_37] : memref<2x128xf32, #tpu.memory_space<vmem>>, vector<2x128xf32>
    %cst_38 = arith.constant 0.000000e+00 : f32
    %78 = vector.broadcast %cst_38 : f32 to vector<2x128xf32>
    %79 = arith.cmpf ogt, %76, %78 : vector<2x128xf32>
    %cst_39 = arith.constant 0.666666686 : f32
    %80 = vector.broadcast %cst_39 : f32 to vector<2x128xf32>
    %81 = arith.mulf %76, %80 : vector<2x128xf32>
    %cst_40 = arith.constant 1.500000e+00 : f32
    %82 = vector.broadcast %cst_40 : f32 to vector<2x128xf32>
    %83 = arith.mulf %76, %82 : vector<2x128xf32>
    %84 = arith.select %79, %81, %83 : vector<2x128xi1>, vector<2x128xf32>
    %cst_41 = arith.constant 0.000000e+00 : f32
    %85 = vector.broadcast %cst_41 : f32 to vector<2x128xf32>
    %86 = arith.cmpf ogt, %77, %85 : vector<2x128xf32>
    %87 = arith.select %86, %84, %76 : vector<2x128xi1>, vector<2x128xf32>
    %cst_42 = arith.constant dense<0xFF800000> : vector<2xf32>
    %88 = vector.multi_reduction <maximumf>, %87, %cst_42 [1] : vector<2x128xf32> to vector<2xf32>
    %89 = vector.shape_cast %88 : vector<2xf32> to vector<2x1xf32>
    %90 = vector.broadcast %89 : vector<2x1xf32> to vector<2x128xf32>
    %91 = arith.cmpf oge, %87, %90 : vector<2x128xf32>
    %c128_i32 = arith.constant 128 : i32
    %92 = vector.broadcast %c128_i32 : i32 to vector<2x128xi32>
    %93 = arith.select %91, %0, %92 : vector<2x128xi1>, vector<2x128xi32>
    %cst_43 = arith.constant dense<2147483647> : vector<2xi32>
    %94 = vector.multi_reduction <minsi>, %93, %cst_43 [1] : vector<2x128xi32> to vector<2xi32>
    %95 = vector.shape_cast %94 : vector<2xi32> to vector<2x1xi32>
    %96 = vector.broadcast %95 : vector<2x1xi32> to vector<2x128xi32>
    %97 = arith.cmpi eq, %0, %96 : vector<2x128xi32>
    %98 = arith.extui %97 : vector<2x128xi1> to vector<2x128xi32>
    %99 = arith.sitofp %98 : vector<2x128xi32> to vector<2x128xf32>
    %100 = arith.maximumf %77, %99 : vector<2x128xf32>
    %c0_44 = arith.constant 0 : index
    %c0_45 = arith.constant 0 : index
    %101 = vector.load %arg11[%c0_44, %c0_45] : memref<2x128xf32, #tpu.memory_space<vmem>>, vector<2x128xf32>
    tpu.vector_store %arg11[%c0_44, %c0_45], %100 {strides = array<i32>} : memref<2x128xf32, #tpu.memory_space<vmem>>, vector<2x128xf32>,
    %102 = arith.truncf %99 : vector<2x128xf32> to vector<2x128xbf16>
    %c0_46 = arith.constant 0 : index
    %c0_47 = arith.constant 0 : index
    %103 = vector.load %arg7[%c0_46, %c0_47] : memref<128x32xbf16, #tpu.memory_space<vmem>>, vector<128x32xbf16>
    %cst_48 = arith.constant dense<0.000000e+00> : vector<2x32xf32>
    %104 = tpu.matmul %102, %103, %cst_48 {dimension_numbers = #tpu.dot_dimension_numbers<[1], [0], [0], [1], [0, 0, 1, 1], [], []>} : vector<2x128xbf16>, vector<128x32xbf16>, vector<2x32xf32> -> vector<2x32xf32>
    %c0_49 = arith.constant 0 : index
    %c0_50 = arith.constant 0 : index
    %105 = vector.load %arg10[%c0_49, %c0_50] : memref<2x32xf32, #tpu.memory_space<vmem>>, vector<2x32xf32>
    tpu.vector_store %arg10[%c0_49, %c0_50], %104 {strides = array<i32>} : memref<2x32xf32, #tpu.memory_space<vmem>>, vector<2x32xf32>,
    %106 = tpu.iota {dimensions = array<i32: 1>} : vector<2x8xi32>
    %107 = vector.broadcast %arg0 : i32 to vector<2x8xi32>
    %108 = arith.cmpi eq, %106, %107 : vector<2x8xi32>
    %109 = vector.shape_cast %94 : vector<2xi32> to vector<2x1xi32>
    %c0_51 = arith.constant 0 : index
    %c0_52 = arith.constant 0 : index
    %110 = vector.load %arg9[%c0_51, %c0_52] : memref<2x8xi32, #tpu.memory_space<vmem>>, vector<2x8xi32>
    %111 = vector.shape_cast %109 : vector<2x1xi32> to vector<2x1xi32>
    %112 = vector.broadcast %111 : vector<2x1xi32> to vector<2x8xi32>
    %113 = arith.select %108, %112, %110 : vector<2x8xi1>, vector<2x8xi32>
    %c0_53 = arith.constant 0 : index
    %c0_54 = arith.constant 0 : index
    %114 = vector.load %arg9[%c0_53, %c0_54] : memref<2x8xi32, #tpu.memory_space<vmem>>, vector<2x8xi32>
    tpu.vector_store %arg9[%c0_53, %c0_54], %113 {strides = array<i32>} : memref<2x8xi32, #tpu.memory_space<vmem>>, vector<2x8xi32>,
    return
  }
  func.func @transform_0(%arg0: i32) -> (i32, i32) {
    %c0_i32 = arith.constant 0 : i32
    %c0_i32_0 = arith.constant 0 : i32
    %c0_i32_1 = arith.constant 0 : i32
    return %c0_i32, %c0_i32_0 : i32, i32
  }
  func.func @transform_1(%arg0: i32) -> (i32, i32, i32) {
    %c0_i32 = arith.constant 0 : i32
    %c0_i32_0 = arith.constant 0 : i32
    %c0_i32_1 = arith.constant 0 : i32
    %c0_i32_2 = arith.constant 0 : i32
    return %c0_i32, %c0_i32_0, %c0_i32_1 : i32, i32, i32
  }
  func.func @transform_2(%arg0: i32) -> (i32, i32) {
    %c0_i32 = arith.constant 0 : i32
    %c0_i32_0 = arith.constant 0 : i32
    %c0_i32_1 = arith.constant 0 : i32
    return %c0_i32, %c0_i32_0 : i32, i32
  }
  func.func @transform_3(%arg0: i32) -> (i32, i32) {
    %c0_i32 = arith.constant 0 : i32
    %c0_i32_0 = arith.constant 0 : i32
    %c0_i32_1 = arith.constant 0 : i32
    return %c0_i32, %c0_i32_0 : i32, i32
  }
  func.func @transform_4(%arg0: i32) -> (i32, i32) {
    %c0_i32 = arith.constant 0 : i32
    %c0_i32_0 = arith.constant 0 : i32
    %c0_i32_1 = arith.constant 0 : i32
    return %c0_i32, %c0_i32_0 : i32, i32
  }
  func.func @transform_5(%arg0: i32) -> (i32, i32) {
    %c0_i32 = arith.constant 0 : i32
    %c0_i32_0 = arith.constant 0 : i32
    %c0_i32_1 = arith.constant 0 : i32
    return %c0_i32, %c0_i32_0 : i32, i32
  }
  func.func @transform_6(%arg0: i32) -> (i32, i32) {
    %c0_i32 = arith.constant 0 : i32
    %c0_i32_0 = arith.constant 0 : i32
    %c0_i32_1 = arith.constant 0 : i32
    return %c0_i32, %c0_i32_0 : i32, i32
  }
  func.func @transform_7(%arg0: i32) -> (i32, i32) {
    %c0_i32 = arith.constant 0 : i32
    %c0_i32_0 = arith.constant 0 : i32
    %c0_i32_1 = arith.constant 0 : i32
    return %c0_i32, %c0_i32_0 : i32, i32
  }
  func.func @transform_8(%arg0: i32) -> (i32, i32) {
    %c0_i32 = arith.constant 0 : i32
    %c0_i32_0 = arith.constant 0 : i32
    %c0_i32_1 = arith.constant 0 : i32
    return %c0_i32, %c0_i32_0 : i32, i32
  }
}

module attributes {stable_mosaic.version = 11 : i64} {
  func.func @encoder_kernel(%arg0: i32, %arg1: memref<1x8x32xf32, #tpu.memory_space<vmem>>, %arg2: memref<1x1x8xf32, #tpu.memory_space<vmem>>, %arg3: memref<32x96xbf16, #tpu.memory_space<vmem>>, %arg4: memref<32x32xbf16, #tpu.memory_space<vmem>>, %arg5: memref<32x64xbf16, #tpu.memory_space<vmem>>, %arg6: memref<64x32xbf16, #tpu.memory_space<vmem>>, %arg7: memref<32x64xbf16, #tpu.memory_space<vmem>>, %arg8: memref<1x8x64xf32, #tpu.memory_space<vmem>>) attributes {dimension_semantics = [#tpu.dimension_semantics<parallel>], iteration_bounds = array<i64: 2>, scalar_prefetch = 0 : i64, scratch_operands = 0 : i64, tpu.core_type = #tpu.core_type<tc>, window_params = [{transform_indices = @transform_0, window_bounds = array<i64: 1, 8, 32>}, {transform_indices = @transform_1, window_bounds = array<i64: 1, 1, 8>}, {pipeline_mode = #tpu.pipeline_mode<synchronous>, transform_indices = @transform_2, window_bounds = array<i64: 32, 96>}, {pipeline_mode = #tpu.pipeline_mode<synchronous>, transform_indices = @transform_3, window_bounds = array<i64: 32, 32>}, {pipeline_mode = #tpu.pipeline_mode<synchronous>, transform_indices = @transform_4, window_bounds = array<i64: 32, 64>}, {pipeline_mode = #tpu.pipeline_mode<synchronous>, transform_indices = @transform_5, window_bounds = array<i64: 64, 32>}, {pipeline_mode = #tpu.pipeline_mode<synchronous>, transform_indices = @transform_6, window_bounds = array<i64: 32, 64>}, {transform_indices = @transform_7, window_bounds = array<i64: 1, 8, 64>}]} {
    %c0 = arith.constant 0 : index
    %c0_0 = arith.constant 0 : index
    %c0_1 = arith.constant 0 : index
    %0 = vector.load %arg1[%c0, %c0_0, %c0_1] : memref<1x8x32xf32, #tpu.memory_space<vmem>>, vector<1x8x32xf32>
    %1 = vector.shape_cast %0 : vector<1x8x32xf32> to vector<8x32xf32>
    %c0_2 = arith.constant 0 : index
    %c0_3 = arith.constant 0 : index
    %c0_4 = arith.constant 0 : index
    %2 = vector.load %arg2[%c0_2, %c0_3, %c0_4] : memref<1x1x8xf32, #tpu.memory_space<vmem>>, vector<1x1x8xf32>
    %3 = vector.shape_cast %2 : vector<1x1x8xf32> to vector<1x8xf32>
    %4 = arith.mulf %1, %1 : vector<8x32xf32>
    %cst = arith.constant dense<0.000000e+00> : vector<8xf32>
    %5 = vector.multi_reduction <add>, %4, %cst [1] : vector<8x32xf32> to vector<8xf32>
    %6 = vector.shape_cast %5 : vector<8xf32> to vector<8x1xf32>
    %cst_5 = arith.constant 3.200000e+01 : f32
    %7 = vector.broadcast %cst_5 : f32 to vector<8x1xf32>
    %8 = arith.divf %6, %7 : vector<8x1xf32>
    %cst_6 = arith.constant 9.99999997E-7 : f32
    %9 = vector.broadcast %cst_6 : f32 to vector<8x1xf32>
    %10 = arith.addf %8, %9 : vector<8x1xf32>
    %11 = math.rsqrt %10 : vector<8x1xf32>
    %12 = vector.broadcast %11 : vector<8x1xf32> to vector<8x32xf32>
    %13 = arith.mulf %1, %12 : vector<8x32xf32>
    %14 = arith.truncf %13 : vector<8x32xf32> to vector<8x32xbf16>
    %c0_7 = arith.constant 0 : index
    %c0_8 = arith.constant 0 : index
    %15 = vector.load %arg3[%c0_7, %c0_8] : memref<32x96xbf16, #tpu.memory_space<vmem>>, vector<32x96xbf16>
    %cst_9 = arith.constant dense<0.000000e+00> : vector<8x96xf32>
    %16 = tpu.matmul %14, %15, %cst_9 {dimension_numbers = #tpu.dot_dimension_numbers<[1], [0], [0], [1], [0, 0, 1, 1], [], []>} : vector<8x32xbf16>, vector<32x96xbf16>, vector<8x96xf32> -> vector<8x96xf32>
    %17 = vector.extract_strided_slice %16 {offsets = [0, 0], sizes = [8, 32], strides = [1, 1]} : vector<8x96xf32> to vector<8x32xf32>
    %18 = vector.extract_strided_slice %16 {offsets = [0, 32], sizes = [8, 32], strides = [1, 1]} : vector<8x96xf32> to vector<8x32xf32>
    %19 = vector.extract_strided_slice %16 {offsets = [0, 64], sizes = [8, 32], strides = [1, 1]} : vector<8x96xf32> to vector<8x32xf32>
    %20 = arith.truncf %17 : vector<8x32xf32> to vector<8x32xbf16>
    %21 = arith.truncf %18 : vector<8x32xf32> to vector<8x32xbf16>
    "tpu.trace_start"() <{level = 10 : i32, message = "qd,kd->qk"}> : () -> ()
    %cst_10 = arith.constant dense<0.000000e+00> : vector<8x8xf32>
    %22 = tpu.matmul %20, %21, %cst_10 {dimension_numbers = #tpu.dot_dimension_numbers<[1], [1], [0], [0], [0, 0, 1, 0], [], []>} : vector<8x32xbf16>, vector<8x32xbf16>, vector<8x8xf32> -> vector<8x8xf32>
    "tpu.trace_stop"() : () -> ()
    %cst_11 = arith.constant 0.176776692 : f32
    %23 = vector.broadcast %cst_11 : f32 to vector<8x8xf32>
    %24 = arith.mulf %22, %23 : vector<8x8xf32>
    %cst_12 = arith.constant 1.000000e+00 : f32
    %25 = vector.broadcast %cst_12 : f32 to vector<1x8xf32>
    %26 = arith.subf %3, %25 : vector<1x8xf32>
    %cst_13 = arith.constant 1.000000e+09 : f32
    %27 = vector.broadcast %cst_13 : f32 to vector<1x8xf32>
    %28 = arith.mulf %26, %27 : vector<1x8xf32>
    %29 = vector.broadcast %28 : vector<1x8xf32> to vector<8x8xf32>
    %30 = arith.addf %24, %29 : vector<8x8xf32>
    %cst_14 = arith.constant dense<0xFF800000> : vector<8xf32>
    %31 = vector.multi_reduction <maximumf>, %30, %cst_14 [1] : vector<8x8xf32> to vector<8xf32>
    %32 = vector.shape_cast %31 : vector<8xf32> to vector<8x1xf32>
    %33 = vector.broadcast %32 : vector<8x1xf32> to vector<8x8xf32>
    %34 = arith.subf %30, %33 : vector<8x8xf32>
    %35 = math.exp %34 : vector<8x8xf32>
    %cst_15 = arith.constant dense<0.000000e+00> : vector<8xf32>
    %36 = vector.multi_reduction <add>, %35, %cst_15 [1] : vector<8x8xf32> to vector<8xf32>
    %37 = vector.shape_cast %36 : vector<8xf32> to vector<8x1xf32>
    %38 = tpu.reciprocal %37 {approx = true} : vector<8x1xf32> -> vector<8x1xf32>
    %39 = vector.broadcast %38 : vector<8x1xf32> to vector<8x8xf32>
    %40 = arith.mulf %35, %39 : vector<8x8xf32>
    %41 = arith.truncf %40 : vector<8x8xf32> to vector<8x8xbf16>
    %42 = arith.truncf %19 : vector<8x32xf32> to vector<8x32xbf16>
    %cst_16 = arith.constant dense<0.000000e+00> : vector<8x32xf32>
    %43 = tpu.matmul %41, %42, %cst_16 {dimension_numbers = #tpu.dot_dimension_numbers<[1], [0], [0], [1], [0, 0, 1, 1], [], []>} : vector<8x8xbf16>, vector<8x32xbf16>, vector<8x32xf32> -> vector<8x32xf32>
    %44 = arith.truncf %43 : vector<8x32xf32> to vector<8x32xbf16>
    %c0_17 = arith.constant 0 : index
    %c0_18 = arith.constant 0 : index
    %45 = vector.load %arg4[%c0_17, %c0_18] : memref<32x32xbf16, #tpu.memory_space<vmem>>, vector<32x32xbf16>
    %cst_19 = arith.constant dense<0.000000e+00> : vector<8x32xf32>
    %46 = tpu.matmul %44, %45, %cst_19 {dimension_numbers = #tpu.dot_dimension_numbers<[1], [0], [0], [1], [0, 0, 1, 1], [], []>} : vector<8x32xbf16>, vector<32x32xbf16>, vector<8x32xf32> -> vector<8x32xf32>
    %47 = arith.addf %1, %46 : vector<8x32xf32>
    %48 = arith.mulf %47, %47 : vector<8x32xf32>
    %cst_20 = arith.constant dense<0.000000e+00> : vector<8xf32>
    %49 = vector.multi_reduction <add>, %48, %cst_20 [1] : vector<8x32xf32> to vector<8xf32>
    %50 = vector.shape_cast %49 : vector<8xf32> to vector<8x1xf32>
    %cst_21 = arith.constant 3.200000e+01 : f32
    %51 = vector.broadcast %cst_21 : f32 to vector<8x1xf32>
    %52 = arith.divf %50, %51 : vector<8x1xf32>
    %cst_22 = arith.constant 9.99999997E-7 : f32
    %53 = vector.broadcast %cst_22 : f32 to vector<8x1xf32>
    %54 = arith.addf %52, %53 : vector<8x1xf32>
    %55 = math.rsqrt %54 : vector<8x1xf32>
    %56 = vector.broadcast %55 : vector<8x1xf32> to vector<8x32xf32>
    %57 = arith.mulf %47, %56 : vector<8x32xf32>
    %58 = arith.truncf %57 : vector<8x32xf32> to vector<8x32xbf16>
    %c0_23 = arith.constant 0 : index
    %c0_24 = arith.constant 0 : index
    %59 = vector.load %arg5[%c0_23, %c0_24] : memref<32x64xbf16, #tpu.memory_space<vmem>>, vector<32x64xbf16>
    %cst_25 = arith.constant dense<0.000000e+00> : vector<8x64xf32>
    %60 = tpu.matmul %58, %59, %cst_25 {dimension_numbers = #tpu.dot_dimension_numbers<[1], [0], [0], [1], [0, 0, 1, 1], [], []>} : vector<8x32xbf16>, vector<32x64xbf16>, vector<8x64xf32> -> vector<8x64xf32>
    %cst_26 = arith.constant 0.000000e+00 : f32
    %61 = vector.broadcast %cst_26 : f32 to vector<8x64xf32>
    %62 = arith.maximumf %60, %61 : vector<8x64xf32>
    %63 = arith.truncf %62 : vector<8x64xf32> to vector<8x64xbf16>
    %c0_27 = arith.constant 0 : index
    %c0_28 = arith.constant 0 : index
    %64 = vector.load %arg6[%c0_27, %c0_28] : memref<64x32xbf16, #tpu.memory_space<vmem>>, vector<64x32xbf16>
    %cst_29 = arith.constant dense<0.000000e+00> : vector<8x32xf32>
    %65 = tpu.matmul %63, %64, %cst_29 {dimension_numbers = #tpu.dot_dimension_numbers<[1], [0], [0], [1], [0, 0, 1, 1], [], []>} : vector<8x64xbf16>, vector<64x32xbf16>, vector<8x32xf32> -> vector<8x32xf32>
    %66 = arith.addf %47, %65 : vector<8x32xf32>
    %67 = arith.mulf %66, %66 : vector<8x32xf32>
    %cst_30 = arith.constant dense<0.000000e+00> : vector<8xf32>
    %68 = vector.multi_reduction <add>, %67, %cst_30 [1] : vector<8x32xf32> to vector<8xf32>
    %69 = vector.shape_cast %68 : vector<8xf32> to vector<8x1xf32>
    %cst_31 = arith.constant 3.200000e+01 : f32
    %70 = vector.broadcast %cst_31 : f32 to vector<8x1xf32>
    %71 = arith.divf %69, %70 : vector<8x1xf32>
    %cst_32 = arith.constant 9.99999997E-7 : f32
    %72 = vector.broadcast %cst_32 : f32 to vector<8x1xf32>
    %73 = arith.addf %71, %72 : vector<8x1xf32>
    %74 = math.rsqrt %73 : vector<8x1xf32>
    %75 = vector.broadcast %74 : vector<8x1xf32> to vector<8x32xf32>
    %76 = arith.mulf %66, %75 : vector<8x32xf32>
    %77 = arith.truncf %76 : vector<8x32xf32> to vector<8x32xbf16>
    %c0_33 = arith.constant 0 : index
    %c0_34 = arith.constant 0 : index
    %78 = vector.load %arg7[%c0_33, %c0_34] : memref<32x64xbf16, #tpu.memory_space<vmem>>, vector<32x64xbf16>
    %cst_35 = arith.constant dense<0.000000e+00> : vector<8x64xf32>
    %79 = tpu.matmul %77, %78, %cst_35 {dimension_numbers = #tpu.dot_dimension_numbers<[1], [0], [0], [1], [0, 0, 1, 1], [], []>} : vector<8x32xbf16>, vector<32x64xbf16>, vector<8x64xf32> -> vector<8x64xf32>
    %c0_36 = arith.constant 0 : index
    %c0_37 = arith.constant 0 : index
    %c0_38 = arith.constant 0 : index
    %80 = vector.load %arg8[%c0_36, %c0_37, %c0_38] : memref<1x8x64xf32, #tpu.memory_space<vmem>>, vector<1x8x64xf32>
    %81 = vector.shape_cast %80 : vector<1x8x64xf32> to vector<8x64xf32>
    %82 = vector.shape_cast %79 : vector<8x64xf32> to vector<1x8x64xf32>
    tpu.vector_store %arg8[%c0_36, %c0_37, %c0_38], %82 {strides = array<i32>} : memref<1x8x64xf32, #tpu.memory_space<vmem>>, vector<1x8x64xf32>,
    return
  }
  func.func @transform_0(%arg0: i32) -> (i32, i32, i32) {
    %c0_i32 = arith.constant 0 : i32
    %c0_i32_0 = arith.constant 0 : i32
    %c0_i32_1 = arith.constant 0 : i32
    return %arg0, %c0_i32, %c0_i32_0 : i32, i32, i32
  }
  func.func @transform_1(%arg0: i32) -> (i32, i32, i32) {
    %c0_i32 = arith.constant 0 : i32
    %c0_i32_0 = arith.constant 0 : i32
    %c0_i32_1 = arith.constant 0 : i32
    return %arg0, %c0_i32, %c0_i32_0 : i32, i32, i32
  }
  func.func @transform_2(%arg0: i32) -> (i32, i32) {
    %c0_i32 = arith.constant 0 : i32
    %c0_i32_0 = arith.constant 0 : i32
    %c0_i32_1 = arith.constant 0 : i32
    return %c0_i32, %c0_i32_0 : i32, i32
  }
  func.func @transform_3(%arg0: i32) -> (i32, i32) {
    %c0_i32 = arith.constant 0 : i32
    %c0_i32_0 = arith.constant 0 : i32
    %c0_i32_1 = arith.constant 0 : i32
    return %c0_i32, %c0_i32_0 : i32, i32
  }
  func.func @transform_4(%arg0: i32) -> (i32, i32) {
    %c0_i32 = arith.constant 0 : i32
    %c0_i32_0 = arith.constant 0 : i32
    %c0_i32_1 = arith.constant 0 : i32
    return %c0_i32, %c0_i32_0 : i32, i32
  }
  func.func @transform_5(%arg0: i32) -> (i32, i32) {
    %c0_i32 = arith.constant 0 : i32
    %c0_i32_0 = arith.constant 0 : i32
    %c0_i32_1 = arith.constant 0 : i32
    return %c0_i32, %c0_i32_0 : i32, i32
  }
  func.func @transform_6(%arg0: i32) -> (i32, i32) {
    %c0_i32 = arith.constant 0 : i32
    %c0_i32_0 = arith.constant 0 : i32
    %c0_i32_1 = arith.constant 0 : i32
    return %c0_i32, %c0_i32_0 : i32, i32
  }
  func.func @transform_7(%arg0: i32) -> (i32, i32, i32) {
    %c0_i32 = arith.constant 0 : i32
    %c0_i32_0 = arith.constant 0 : i32
    %c0_i32_1 = arith.constant 0 : i32
    return %arg0, %c0_i32, %c0_i32_0 : i32, i32, i32
  }
}

</mosaic_0001>

<llo_original>
// kernel: t5_text_to_latex.4
$region0: #{t5_text_to_latex.4}
  #allocation0 [shape = 'u32[]', space=smem, size = 0x4, offset = 0x4, fixed_abs, tag = 'smem constant byte address 0x4 - core index']
  #allocation1 [shape = 'u32[72,128]{1,0:T(1,128)}', space=vmem, size = 0x9000, scoped, tag = 'internal scratch']
  %s0 = inlined_call_operand.vmem [shape: f32[2,8,32], index: 0, kind: input, shape index: {}]
  %s1 = inlined_call_operand.vmem [shape: f32[2,1,8], index: 1, kind: input, shape index: {}]
  %s2 = inlined_call_operand.vmem [shape: bf16[32,96], index: 2, kind: input, shape index: {}]
  %s3 = inlined_call_operand.vmem [shape: bf16[32,32], index: 3, kind: input, shape index: {}]
  %s4 = inlined_call_operand.vmem [shape: bf16[32,64], index: 4, kind: input, shape index: {}]
  %s5 = inlined_call_operand.vmem [shape: bf16[64,32], index: 5, kind: input, shape index: {}]
  %s6 = inlined_call_operand.vmem [shape: bf16[32,64], index: 6, kind: input, shape index: {}]
  %s7 = inlined_call_operand.vmem [shape: f32[2,8,64], index: 7, kind: output, shape index: {}]
  %s8 = sld [smem:[#allocation0]]
  $region61: #{t5_text_to_latex.4} parent=0
    _
  %s10 = ssub.s32 1, %s8
  %s11 = scalar_select 0, %s10, %s8
  loop: start=0, step=1, limit=4
  $region2: #{t5_text_to_latex.4} parent=0 // loop_pre_header
    _
  $region3: #{t5_text_to_latex.4} parent=0 // loop_header
    %s13 = sphi 0, %s17
    %p14 = scmp.ge.s32.totalorder %s13, 4
    %s23 = sphi 0, %s25
    %s26 = sphi 0, %s23
    %s27 = sphi 0, %s26
    %s43 = sphi 0, %s27
    %s49 = sphi 0, %s51
    %s52 = sphi 0, %s49
    %s53 = sphi 0, %s52
    %s69 = sphi 0, %s53
    %s73 = sphi 0, %s73
    %s75 = sphi 0, %s73
    %s76 = sphi 0, %s75
    %s90 = sphi 0, %s76
    %s94 = sphi 0, %s94
    %s96 = sphi 0, %s94
    %s97 = sphi 0, %s96
    %s111 = sphi 0, %s97
    %s115 = sphi 0, %s115
    %s117 = sphi 0, %s115
    %s118 = sphi 0, %s117
    %s132 = sphi 0, %s118
    %s136 = sphi 0, %s136
    %s138 = sphi 0, %s136
    %s139 = sphi 0, %s138
    %s153 = sphi 0, %s139
    %s157 = sphi 0, %s157
    %s159 = sphi 0, %s157
    %s160 = sphi 0, %s159
    %s174 = sphi 0, %s160
    %s180 = sphi 0, %s182
    %s183 = sphi 0, %s180
    %s184 = sphi 0, %s183
    %s200 = sphi 0, %s184
  $region4: #{t5_text_to_latex.4} parent=0 // loop_header_branch
    %16 = sbr.rel (%p14) target = $region8
  $region5: #{t5_text_to_latex.4} parent=0 // loop_body
    %s18 = ssub.s32 %s13, 1
    %s19 = ssub.s32 %s13, 2
    %s20 = sadd.s32 %s13, 1
    %s21 = ssub.s32 %s13, %s20
    %p22 = scmp.eq.s32.totalorder %s21, 0
    %s24 = sadd.s32 %s23, 1
    %s25 = scalar_select %p22, %s23, %s24
    %p28 = pneg %p22
    %p29 = scmp.eq.s32.totalorder %s13, 1
    %p30 = por %p28, %p29
    %p31 = scmp.ne.s32.totalorder %s23, %s26
    %p32 = scmp.eq.s32.totalorder %s13, 0
    %p33 = por %p31, %p32
    %p34 = scmp.ne.s32.totalorder %s23, %s26
    %p35 = scmp.eq.s32.totalorder %s18, 1
    %p36 = por %p34, %p35
    %p37 = scmp.ne.s32.totalorder %s26, %s27
    %p38 = scmp.eq.s32.totalorder %s18, 0
    %p39 = por %p37, %p38
    %p40 = scmp.ne.s32.totalorder %s26, %s27
    %p41 = scmp.eq.s32.totalorder %s19, 1
    %p42 = por %p40, %p41
    %p44 = scmp.ne.s32.totalorder %s27, %s43
    %p45 = scmp.eq.s32.totalorder %s19, 0
    %p46 = por %p44, %p45
    %s47 = ssub.s32 %s13, %s20
    %p48 = scmp.eq.s32.totalorder %s47, 0
    %s50 = sadd.s32 %s49, 1
    %s51 = scalar_select %p48, %s49, %s50
    %p54 = pneg %p48
    %p55 = scmp.eq.s32.totalorder %s13, 1
    %p56 = por %p54, %p55
    %p57 = scmp.ne.s32.totalorder %s49, %s52
    %p58 = scmp.eq.s32.totalorder %s13, 0
    %p59 = por %p57, %p58
    %p60 = scmp.ne.s32.totalorder %s49, %s52
    %p61 = scmp.eq.s32.totalorder %s18, 1
    %p62 = por %p60, %p61
    %p63 = scmp.ne.s32.totalorder %s52, %s53
    %p64 = scmp.eq.s32.totalorder %s18, 0
    %p65 = por %p63, %p64
    %p66 = scmp.ne.s32.totalorder %s52, %s53
    %p67 = scmp.eq.s32.totalorder %s19, 1
    %p68 = por %p66, %p67
    %p70 = scmp.ne.s32.totalorder %s53, %s69
    %p71 = scmp.eq.s32.totalorder %s19, 0
    %p72 = por %p70, %p71
    %s74 = sadd.s32 %s73, 1
    %p77 = scmp.eq.s32.totalorder %s13, 1
    %p78 = scmp.ne.s32.totalorder %s73, %s75
    %p79 = scmp.eq.s32.totalorder %s13, 0
    %p80 = por %p78, %p79
    %p81 = scmp.ne.s32.totalorder %s73, %s75
    %p82 = scmp.eq.s32.totalorder %s18, 1
    %p83 = por %p81, %p82
    %p84 = scmp.ne.s32.totalorder %s75, %s76
    %p85 = scmp.eq.s32.totalorder %s18, 0
    %p86 = por %p84, %p85
    %p87 = scmp.ne.s32.totalorder %s75, %s76
    %p88 = scmp.eq.s32.totalorder %s19, 1
    %p89 = por %p87, %p88
    %p91 = scmp.ne.s32.totalorder %s76, %s90
    %p92 = scmp.eq.s32.totalorder %s19, 0
    %p93 = por %p91, %p92
    %s95 = sadd.s32 %s94, 1
    %p98 = scmp.eq.s32.totalorder %s13, 1
    %p99 = scmp.ne.s32.totalorder %s94, %s96
    %p100 = scmp.eq.s32.totalorder %s13, 0
    %p101 = por %p99, %p100
    %p102 = scmp.ne.s32.totalorder %s94, %s96
    %p103 = scmp.eq.s32.totalorder %s18, 1
    %p104 = por %p102, %p103
    %p105 = scmp.ne.s32.totalorder %s96, %s97
    %p106 = scmp.eq.s32.totalorder %s18, 0
    %p107 = por %p105, %p106
    %p108 = scmp.ne.s32.totalorder %s96, %s97
    %p109 = scmp.eq.s32.totalorder %s19, 1
    %p110 = por %p108, %p109
    %p112 = scmp.ne.s32.totalorder %s97, %s111
    %p113 = scmp.eq.s32.totalorder %s19, 0
    %p114 = por %p112, %p113
    %s116 = sadd.s32 %s115, 1
    %p119 = scmp.eq.s32.totalorder %s13, 1
    %p120 = scmp.ne.s32.totalorder %s115, %s117
    %p121 = scmp.eq.s32.totalorder %s13, 0
    %p122 = por %p120, %p121
    %p123 = scmp.ne.s32.totalorder %s115, %s117
    %p124 = scmp.eq.s32.totalorder %s18, 1
    %p125 = por %p123, %p124
    %p126 = scmp.ne.s32.totalorder %s117, %s118
    %p127 = scmp.eq.s32.totalorder %s18, 0
    %p128 = por %p126, %p127
    %p129 = scmp.ne.s32.totalorder %s117, %s118
    %p130 = scmp.eq.s32.totalorder %s19, 1
    %p131 = por %p129, %p130
    %p133 = scmp.ne.s32.totalorder %s118, %s132
    %p134 = scmp.eq.s32.totalorder %s19, 0
    %p135 = por %p133, %p134
    %s137 = sadd.s32 %s136, 1
    %p140 = scmp.eq.s32.totalorder %s13, 1
    %p141 = scmp.ne.s32.totalorder %s136, %s138
    %p142 = scmp.eq.s32.totalorder %s13, 0
    %p143 = por %p141, %p142
    %p144 = scmp.ne.s32.totalorder %s136, %s138
    %p145 = scmp.eq.s32.totalorder %s18, 1
    %p146 = por %p144, %p145
    %p147 = scmp.ne.s32.totalorder %s138, %s139
    %p148 = scmp.eq.s32.totalorder %s18, 0
    %p149 = por %p147, %p148
    %p150 = scmp.ne.s32.totalorder %s138, %s139
    %p151 = scmp.eq.s32.totalorder %s19, 1
    %p152 = por %p150, %p151
    %p154 = scmp.ne.s32.totalorder %s139, %s153
    %p155 = scmp.eq.s32.totalorder %s19, 0
    %p156 = por %p154, %p155
    %s158 = sadd.s32 %s157, 1
    %p161 = scmp.eq.s32.totalorder %s13, 1
    %p162 = scmp.ne.s32.totalorder %s157, %s159
    %p163 = scmp.eq.s32.totalorder %s13, 0
    %p164 = por %p162, %p163
    %p165 = scmp.ne.s32.totalorder %s157, %s159
    %p166 = scmp.eq.s32.totalorder %s18, 1
    %p167 = por %p165, %p166
    %p168 = scmp.ne.s32.totalorder %s159, %s160
    %p169 = scmp.eq.s32.totalorder %s18, 0
    %p170 = por %p168, %p169
    %p171 = scmp.ne.s32.totalorder %s159, %s160
    %p172 = scmp.eq.s32.totalorder %s19, 1
    %p173 = por %p171, %p172
    %p175 = scmp.ne.s32.totalorder %s160, %s174
    %p176 = scmp.eq.s32.totalorder %s19, 0
    %p177 = por %p175, %p176
    %s178 = ssub.s32 %s13, %s20
    %p179 = scmp.eq.s32.totalorder %s178, 0
    %s181 = sadd.s32 %s180, 1
    %s182 = scalar_select %p179, %s180, %s181
    %p185 = pneg %p179
    %p186 = scmp.eq.s32.totalorder %s13, 1
    %p187 = por %p185, %p186
    %p188 = scmp.ne.s32.totalorder %s180, %s183
    %p189 = scmp.eq.s32.totalorder %s13, 0
    %p190 = por %p188, %p189
    %p191 = scmp.ne.s32.totalorder %s180, %s183
    %p192 = scmp.eq.s32.totalorder %s18, 1
    %p193 = por %p191, %p192
    %p194 = scmp.ne.s32.totalorder %s183, %s184
    %p195 = scmp.eq.s32.totalorder %s18, 0
    %p196 = por %p194, %p195
    %p197 = scmp.ne.s32.totalorder %s183, %s184
    %p198 = scmp.eq.s32.totalorder %s19, 1
    %p199 = por %p197, %p198
    %p201 = scmp.ne.s32.totalorder %s184, %s200
    %p202 = scmp.eq.s32.totalorder %s19, 0
    %p203 = por %p201, %p202
    %p204 = scmp.le.s32.totalorder 1, %s13
    %p205 = scmp.lt.s32.totalorder %s13, 3
    %p206 = pnand %p204, %p205
    %p207 = pneg %p206
    // Predicated region
    $region9: #{t5_text_to_latex.4} parent=5 // pred_check
      _
    $region10: #{t5_text_to_latex.4} parent=5 // pred_check_branch
      %209 = sbr.rel (%p206) target = $region12
    $region11: #{t5_text_to_latex.4} parent=5 // pred_region
      %s210 = ssub.s32 %s13, 1
      // Predicated region
      $region13: #{t5_text_to_latex.4} parent=11 // pred_check
        %p211 = pneg %p86
      $region14: #{t5_text_to_latex.4} parent=11 // pred_check_branch
        %213 = sbr.rel (%p211) target = $region16
      $region15: #{t5_text_to_latex.4} parent=11 // pred_region
        _
      $region16: #{t5_text_to_latex.4} parent=11 // pred_fallthru
        _
      // Predicated region
      $region17: #{t5_text_to_latex.4} parent=11 // pred_check
        %p214 = pneg %p107
      $region18: #{t5_text_to_latex.4} parent=11 // pred_check_branch
        %216 = sbr.rel (%p214) target = $region20
      $region19: #{t5_text_to_latex.4} parent=11 // pred_region
        _
      $region20: #{t5_text_to_latex.4} parent=11 // pred_fallthru
        _
      // Predicated region
      $region21: #{t5_text_to_latex.4} parent=11 // pred_check
        %p217 = pneg %p128
      $region22: #{t5_text_to_latex.4} parent=11 // pred_check_branch
        %219 = sbr.rel (%p217) target = $region24
      $region23: #{t5_text_to_latex.4} parent=11 // pred_region
        _
      $region24: #{t5_text_to_latex.4} parent=11 // pred_fallthru
        _
      // Predicated region
      $region25: #{t5_text_to_latex.4} parent=11 // pred_check
        %p220 = pneg %p149
      $region26: #{t5_text_to_latex.4} parent=11 // pred_check_branch
        %222 = sbr.rel (%p220) target = $region28
      $region27: #{t5_text_to_latex.4} parent=11 // pred_region
        _
      $region28: #{t5_text_to_latex.4} parent=11 // pred_fallthru
        _
      // Predicated region
      $region29: #{t5_text_to_latex.4} parent=11 // pred_check
        %p223 = pneg %p170
      $region30: #{t5_text_to_latex.4} parent=11 // pred_check_branch
        %225 = sbr.rel (%p223) target = $region32
      $region31: #{t5_text_to_latex.4} parent=11 // pred_region
        _
      $region32: #{t5_text_to_latex.4} parent=11 // pred_fallthru
        _
    $region12: #{t5_text_to_latex.4} parent=5 // pred_fallthru
      _
    %p226 = scmp.lt.s32.totalorder %s13, 2
    // Predicated region
    $region33: #{t5_text_to_latex.4} parent=5 // pred_check
      %p227 = pneg %p226
    $region34: #{t5_text_to_latex.4} parent=5 // pred_check_branch
      %229 = sbr.rel (%p227) target = $region36
    $region35: #{t5_text_to_latex.4} parent=5 // pred_region
      // Predicated region
      $region37: #{t5_text_to_latex.4} parent=35 // pred_check
        %p230 = pneg %p33
      $region38: #{t5_text_to_latex.4} parent=35 // pred_check_branch
        %232 = sbr.rel (%p230) target = $region40
      $region39: #{t5_text_to_latex.4} parent=35 // pred_region
        %p233 = scmp.lt.s32.totalorder %s13, 1
        %s234 = scalar_select %p233, %s13, 1
        %s235 = smul.addr %s234, 8
        %s236 = scalar_lea.vmem %s0, %s235
      $region40: #{t5_text_to_latex.4} parent=35 // pred_fallthru
        _
      // Predicated region
      $region41: #{t5_text_to_latex.4} parent=35 // pred_check
        %p237 = pneg %p59
      $region42: #{t5_text_to_latex.4} parent=35 // pred_check_branch
        %239 = sbr.rel (%p237) target = $region44
      $region43: #{t5_text_to_latex.4} parent=35 // pred_region
        %p240 = scmp.lt.s32.totalorder %s13, 1
        %s241 = scalar_select %p240, %s13, 1
        %s242 = scalar_lea.vmem %s1, %s241
      $region44: #{t5_text_to_latex.4} parent=35 // pred_fallthru
        _
    $region36: #{t5_text_to_latex.4} parent=5 // pred_fallthru
      _
    %p243 = scmp.le.s32.totalorder 1, %s13
    %p244 = scmp.lt.s32.totalorder %s13, 3
    %p245 = pnand %p243, %p244
    %p246 = pneg %p245
    // Predicated region
    $region45: #{t5_text_to_latex.4} parent=5 // pred_check
      _
    $region46: #{t5_text_to_latex.4} parent=5 // pred_check_branch
      %248 = sbr.rel (%p245) target = $region48
    $region47: #{t5_text_to_latex.4} parent=5 // pred_region
      %s249 = ssub.s32 %s13, 1
      %p250 = scmp.lt.s32.totalorder %s18, 1
      %s251 = scalar_select %p250, %s18, 1
      %s252 = smul.addr %s251, 8
      %s253 = scalar_lea.vmem %s0, %s252
      %p254 = pneg %p39
      %p255 = pneg %p36
      %p256 = scmp.lt.s32.totalorder %s18, 1
      %s257 = scalar_select %p256, %s18, 1
      %s258 = scalar_lea.vmem %s1, %s257
      %p259 = pneg %p65
      %p260 = pneg %p62
      %p261 = pneg %p86
      %p262 = pneg %p83
      %p263 = pneg %p107
      %p264 = pneg %p104
      %p265 = pneg %p128
      %p266 = pneg %p125
      %p267 = pneg %p149
      %p268 = pneg %p146
      %p269 = pneg %p170
      %p270 = pneg %p167
      %p271 = pneg %p196
      %p272 = pneg %p193
      %p273 = scmp.lt.s32.totalorder %s18, 1
      %s274 = scalar_select %p273, %s18, 1
      %s275 = smul.addr %s274, 8
      %s276 = scalar_lea.vmem %s7, %s275
      %p277 = scmp.lt.s32.totalorder %s18, 1
      %s278 = scalar_select %p277, %s18, 1
      %s279 = smul.addr %s278, 8
      %s280 = scalar_lea.vmem %s0, %s279
      %p281 = scmp.lt.s32.totalorder %s18, 1
      %s282 = scalar_select %p281, %s18, 1
      %s283 = scalar_lea.vmem %s1, %s282
      %p284 = scmp.lt.s32.totalorder %s18, 1
      %s285 = scalar_select %p284, %s18, 1
      %s286 = smul.addr %s285, 8
      %s287 = scalar_lea.vmem %s7, %s286
      %v289 = vld [vmem:[%s280] sm:$0xff]
      %v290 = vld [vmem:[%s283] sm:$0x1]
      %v291 = vmul.f32 %v289, %v289
      %vm292 = vcmask 261120
      %v293 = vsel %vm292, %v291, 0.0
      %294 = vadd.xlane.f32.xlu0 %v293
      %v295 = vpop.xlane.xlu0 %294
      %v296 = vrcp.pop 32.0
      %v297 = vmul.f32 32.0, %v296
      %v298 = vsub.f32 1.0, %v297
      %v299 = vmul.f32 %v296, %v298
      %v300 = vadd.f32 %v296, %v299
      %vm301 = vweird.f32 %v296
      %v302 = vsel %vm301, %v296, %v300
      %v303 = vmul.f32 %v295, %v302
      %v304 = vadd.f32 %v303, 1e-06
      %v305 = vrsqrt.pop %v304
      %v306 = vmul.f32 %v305, %v304
      %v307 = vmul.f32 %v306, %v305
      %v308 = vmul.f32 0.5, %v307
      %v309 = vsub.f32 1.5, %v308
      %v310 = vmul.f32 %v305, %v309
      %vm311 = vweird.f32 %v304
      %vm312 = vweird.f32 %v305
      %vm313 = vmor %vm311, %vm312
      %v314 = vsel %vm313, %v305, %v310
      %v315 = vmul.f32 %v289, %v314
      %v316 = vpack.c.bf16 %v315, %v315
      %v317 = vld [vmem:[%s2] sm:$0xf]
      %v318 = vld [vmem:[%s2 + $0x4] sm:$0xf]
      %v319 = vld [vmem:[%s2 + $0x8] sm:$0xf]
      %v320 = vld [vmem:[%s2 + $0xc] sm:$0xf]
      %v325 = vunpack.c.l.b16 %v317
      %v326 = vunpack.c.l.b16 %v318
      %v327 = vunpack.c.l.b16 %v319
      %v328 = vunpack.c.l.b16 %v320
      %v329 = vpack.c.b16 %v326, %v325
      %v330 = vpack.c.b16 %v328, %v327
      %v334 = vsel %vm292, %v316, 0
      %336 = vmatpush.bf16.msra.mxu0 0
      %337 = vmatpush.bf16.msra.mxu0 0
      %338 = vmatpush.bf16.msra.mxu0 0
      %339 = vmatpush.bf16.msra.mxu0 0
      %340 = vmatpush.bf16.msra.mxu0 0
      %341 = vmatpush.bf16.msra.mxu0 0
      %342 = vmatpush.bf16.msra.mxu0 %v330
      %343 = vmatpush.bf16.msra.mxu0 %v329
      %344 = vmatmul.bf16.gmra.mxu0 %v334
      %v345 = vpop.f32.mrf.mxu0
      %v346 = vadd.f32 0.0, %v345
      %v347 = vpop.f32.mrf.mxu0
      %348 = vdwg.mxu0
      %v349 = vpack.c.bf16 %v346, %v346
      %351 = vrot.lane.b32.xlu0 %v349, 96
      %v352 = vpop.permute.xlu0 %351
      %v354 = vsel %vm292, %v349, 0
      %v357 = vsel %vm292, %v352, 0
      %359 = vmatpush.bf16.xpose.msra.mxu0 0
      %360 = vmatpush.bf16.xpose.msra.mxu0 0
      %361 = vmatpush.bf16.xpose.msra.mxu0 0
      %362 = vmatpush.bf16.xpose.msra.mxu0 0
      %363 = vmatpush.bf16.xpose.msra.mxu0 0
      %364 = vmatpush.bf16.xpose.msra.mxu0 0
      %365 = vmatpush.bf16.xpose.msra.mxu0 0
      %366 = vmatpush.bf16.xpose.msra.mxu0 %v357
      %367 = vmatmul.bf16.gmra.mxu0 %v354
      %v368 = vpop.f32.mrf.mxu0
      %v369 = vadd.f32 0.0, %v368
      %v370 = vpop.f32.mrf.mxu0
      %371 = vdwg.mxu0
      %v372 = vmul.f32 %v369, 0.17677669
      %v373 = vsub.f32 %v290, 1.0
      %v374 = vmul.f32 %v373, 1e+09
      %v376 = vperm.slane %v374, 0
      %v378 = vadd.f32 %v372, %v376
      %vm379 = vcmask 64512
      %v380 = vsel %vm379, %v378, -inf
      %381 = vmax.xlane.f32.xlu0 %v380
      %v382 = vpop.xlane.xlu0 %381
      %v383 = vsub.f32 %v378, %v382
      %v384 = vmul.f32 %v383, 1.442695
      %v385 = vpow.pop %v384
      %v386 = vsel %vm379, %v385, 0.0
      %387 = vadd.xlane.f32.xlu0 %v386
      %v388 = vpop.xlane.xlu0 %387
      %v389 = vrcp.pop %v388
      %v390 = vmul.f32 %v385, %v389
      %v391 = vpack.c.bf16 %v390, %v390
      %392 = vrot.lane.b32.xlu0 %v349, 64
      %v393 = vpop.permute.xlu0 %392
      %v395 = vsel %vm379, %v391, 0
      %vm397 = vcmask 1043456
      %v399 = vsel %vm397, %v393, 0
      %401 = vmatpush.bf16.msra.mxu0 0
      %402 = vmatpush.bf16.msra.mxu0 0
      %403 = vmatpush.bf16.msra.mxu0 0
      %404 = vmatpush.bf16.msra.mxu0 0
      %405 = vmatpush.bf16.msra.mxu0 0
      %406 = vmatpush.bf16.msra.mxu0 0
      %407 = vmatpush.bf16.msra.mxu0 0
      %408 = vmatpush.bf16.msra.mxu0 %v399
      %409 = vmatmul.bf16.gmra.mxu0 %v395
      %v410 = vpop.f32.mrf.mxu0
      %v411 = vadd.f32 0.0, %v410
      %v412 = vpop.f32.mrf.mxu0
      %413 = vdwg.mxu0
      %v414 = vpack.c.bf16 %v411, %v411
      %v415 = vld [vmem:[%s3] sm:$0xf]
      %v416 = vld [vmem:[%s3 + $0x4] sm:$0xf]
      %v417 = vld [vmem:[%s3 + $0x8] sm:$0xf]
      %v418 = vld [vmem:[%s3 + $0xc] sm:$0xf]
      %v423 = vunpack.c.l.b16 %v415
      %v424 = vunpack.c.l.b16 %v416
      %v425 = vunpack.c.l.b16 %v417
      %v426 = vunpack.c.l.b16 %v418
      %v427 = vpack.c.b16 %v424, %v423
      %v428 = vpack.c.b16 %v426, %v425
      %v432 = vsel %vm292, %v414, 0
      %434 = vmatpush.bf16.msra.mxu0 0
      %435 = vmatpush.bf16.msra.mxu0 0
      %436 = vmatpush.bf16.msra.mxu0 0
      %437 = vmatpush.bf16.msra.mxu0 0
      %438 = vmatpush.bf16.msra.mxu0 0
      %439 = vmatpush.bf16.msra.mxu0 0
      %440 = vmatpush.bf16.msra.mxu0 %v428
      %441 = vmatpush.bf16.msra.mxu0 %v427
      %442 = vmatmul.bf16.gmra.mxu0 %v432
      %v443 = vpop.f32.mrf.mxu0
      %v444 = vadd.f32 0.0, %v443
      %v445 = vpop.f32.mrf.mxu0
      %446 = vdwg.mxu0
      %v447 = vadd.f32 %v289, %v444
      %v448 = vmul.f32 %v447, %v447
      %v449 = vsel %vm292, %v448, 0.0
      %450 = vadd.xlane.f32.xlu0 %v449
      %v451 = vpop.xlane.xlu0 %450
      %v452 = vmul.f32 %v451, %v302
      %v453 = vadd.f32 %v452, 1e-06
      %v454 = vrsqrt.pop %v453
      %v455 = vmul.f32 %v454, %v453
      %v456 = vmul.f32 %v455, %v454
      %v457 = vmul.f32 0.5, %v456
      %v458 = vsub.f32 1.5, %v457
      %v459 = vmul.f32 %v454, %v458
      %vm460 = vweird.f32 %v453
      %vm461 = vweird.f32 %v454
      %vm462 = vmor %vm460, %vm461
      %v463 = vsel %vm462, %v454, %v459
      %v464 = vmul.f32 %v447, %v463
      %v465 = vpack.c.bf16 %v464, %v464
      %v466 = vld [vmem:[%s4] sm:$0xf]
      %v467 = vld [vmem:[%s4 + $0x4] sm:$0xf]
      %v468 = vld [vmem:[%s4 + $0x8] sm:$0xf]
      %v469 = vld [vmem:[%s4 + $0xc] sm:$0xf]
      %v474 = vunpack.c.l.b16 %v466
      %v475 = vunpack.c.l.b16 %v467
      %v476 = vunpack.c.l.b16 %v468
      %v477 = vunpack.c.l.b16 %v469
      %v478 = vpack.c.b16 %v475, %v474
      %v479 = vpack.c.b16 %v477, %v476
      %v483 = vsel %vm292, %v465, 0
      %485 = vmatpush.bf16.msra.mxu0 0
      %486 = vmatpush.bf16.msra.mxu0 0
      %487 = vmatpush.bf16.msra.mxu0 0
      %488 = vmatpush.bf16.msra.mxu0 0
      %489 = vmatpush.bf16.msra.mxu0 0
      %490 = vmatpush.bf16.msra.mxu0 0
      %491 = vmatpush.bf16.msra.mxu0 %v479
      %492 = vmatpush.bf16.msra.mxu0 %v478
      %493 = vmatmul.bf16.gmra.mxu0 %v483
      %v494 = vpop.f32.mrf.mxu0
      %v495 = vadd.f32 0.0, %v494
      %v496 = vpop.f32.mrf.mxu0
      %497 = vdwg.mxu0
      %v498 = vmax.f32 %v495, 0.0
      %v499 = vpack.c.bf16 %v498, %v498
      %v500 = vld [vmem:[%s5] sm:$0xf]
      %v501 = vld [vmem:[%s5 + $0x4] sm:$0xf]
      %v502 = vld [vmem:[%s5 + $0x8] sm:$0xf]
      %v503 = vld [vmem:[%s5 + $0xc] sm:$0xf]
      %v504 = vld [vmem:[%s5 + $0x10] sm:$0xf]
      %v505 = vld [vmem:[%s5 + $0x14] sm:$0xf]
      %v506 = vld [vmem:[%s5 + $0x18] sm:$0xf]
      %v507 = vld [vmem:[%s5 + $0x1c] sm:$0xf]
      %v516 = vunpack.c.l.b16 %v500
      %v517 = vunpack.c.l.b16 %v501
      %v518 = vunpack.c.l.b16 %v502
      %v519 = vunpack.c.l.b16 %v503
      %v520 = vunpack.c.l.b16 %v504
      %v521 = vunpack.c.l.b16 %v505
      %v522 = vunpack.c.l.b16 %v506
      %v523 = vunpack.c.l.b16 %v507
      %v524 = vpack.c.b16 %v517, %v516
      %v525 = vpack.c.b16 %v519, %v518
      %v526 = vpack.c.b16 %v521, %v520
      %v527 = vpack.c.b16 %v523, %v522
      %vm532 = vcmask 523264
      %v534 = vsel %vm532, %v499, 0
      %536 = vmatpush.bf16.msra.mxu0 0
      %537 = vmatpush.bf16.msra.mxu0 0
      %538 = vmatpush.bf16.msra.mxu0 0
      %539 = vmatpush.bf16.msra.mxu0 0
      %540 = vmatpush.bf16.msra.mxu0 %v527
      %541 = vmatpush.bf16.msra.mxu0 %v526
      %542 = vmatpush.bf16.msra.mxu0 %v525
      %543 = vmatpush.bf16.msra.mxu0 %v524
      %544 = vmatmul.bf16.gmra.mxu0 %v534
      %v545 = vpop.f32.mrf.mxu0
      %v546 = vadd.f32 0.0, %v545
      %v547 = vpop.f32.mrf.mxu0
      %548 = vdwg.mxu0
      %v549 = vadd.f32 %v447, %v546
      %v550 = vmul.f32 %v549, %v549
      %v551 = vsel %vm292, %v550, 0.0
      %552 = vadd.xlane.f32.xlu0 %v551
      %v553 = vpop.xlane.xlu0 %552
      %v554 = vmul.f32 %v553, %v302
      %v555 = vadd.f32 %v554, 1e-06
      %v556 = vrsqrt.pop %v555
      %v557 = vmul.f32 %v556, %v555
      %v558 = vmul.f32 %v557, %v556
      %v559 = vmul.f32 0.5, %v558
      %v560 = vsub.f32 1.5, %v559
      %v561 = vmul.f32 %v556, %v560
      %vm562 = vweird.f32 %v555
      %vm563 = vweird.f32 %v556
      %vm564 = vmor %vm562, %vm563
      %v565 = vsel %vm564, %v556, %v561
      %v566 = vmul.f32 %v549, %v565
      %v567 = vpack.c.bf16 %v566, %v566
      %v568 = vld [vmem:[%s6] sm:$0xf]
      %v569 = vld [vmem:[%s6 + $0x4] sm:$0xf]
      %v570 = vld [vmem:[%s6 + $0x8] sm:$0xf]
      %v571 = vld [vmem:[%s6 + $0xc] sm:$0xf]
      %v576 = vunpack.c.l.b16 %v568
      %v577 = vunpack.c.l.b16 %v569
      %v578 = vunpack.c.l.b16 %v570
      %v579 = vunpack.c.l.b16 %v571
      %v580 = vpack.c.b16 %v577, %v576
      %v581 = vpack.c.b16 %v579, %v578
      %v585 = vsel %vm292, %v567, 0
      %587 = vmatpush.bf16.msra.mxu0 0
      %588 = vmatpush.bf16.msra.mxu0 0
      %589 = vmatpush.bf16.msra.mxu0 0
      %590 = vmatpush.bf16.msra.mxu0 0
      %591 = vmatpush.bf16.msra.mxu0 0
      %592 = vmatpush.bf16.msra.mxu0 0
      %593 = vmatpush.bf16.msra.mxu0 %v581
      %594 = vmatpush.bf16.msra.mxu0 %v580
      %595 = vmatmul.bf16.gmra.mxu0 %v585
      %v596 = vpop.f32.mrf.mxu0
      %v597 = vadd.f32 0.0, %v596
      %v598 = vpop.f32.mrf.mxu0
      %599 = vdwg.mxu0
      %600 = vst.msk [vmem:[%s287] sm:$0xff] %vm532, %v597
      %p601 = scmp.lt.s32.totalorder %s18, 1
      %s602 = scalar_select %p601, %s18, 1
      %s603 = smul.addr %s602, 8
      %s604 = scalar_lea.vmem %s7, %s603
      // Predicated region
      $region49: #{t5_text_to_latex.4} parent=47 // pred_check
        %p605 = pneg %p193
      $region50: #{t5_text_to_latex.4} parent=47 // pred_check_branch
        %607 = sbr.rel (%p605) target = $region52
      $region51: #{t5_text_to_latex.4} parent=47 // pred_region
        _
      $region52: #{t5_text_to_latex.4} parent=47 // pred_fallthru
        _
    $region48: #{t5_text_to_latex.4} parent=5 // pred_fallthru
      _
    %p608 = scmp.le.s32.totalorder 2, %s13
    // Predicated region
    $region53: #{t5_text_to_latex.4} parent=5 // pred_check
      %p609 = pneg %p608
    $region54: #{t5_text_to_latex.4} parent=5 // pred_check_branch
      %611 = sbr.rel (%p609) target = $region56
    $region55: #{t5_text_to_latex.4} parent=5 // pred_region
      %s612 = ssub.s32 %s13, 2
      // Predicated region
      $region57: #{t5_text_to_latex.4} parent=55 // pred_check
        %p613 = pneg %p199
      $region58: #{t5_text_to_latex.4} parent=55 // pred_check_branch
        %615 = sbr.rel (%p613) target = $region60
      $region59: #{t5_text_to_latex.4} parent=55 // pred_region
        %p616 = scmp.lt.s32.totalorder %s19, 1
        %s617 = scalar_select %p616, %s19, 1
        %s618 = smul.addr %s617, 8
        %s619 = scalar_lea.vmem %s7, %s618
      $region60: #{t5_text_to_latex.4} parent=55 // pred_fallthru
        _
    $region56: #{t5_text_to_latex.4} parent=5 // pred_fallthru
      _
  $region6: #{t5_text_to_latex.4} parent=0 // loop_footer
    %s17 = sadd.s32 1, %s13
  $region7: #{t5_text_to_latex.4} parent=0 // loop_footer_branch
    %12 = sbr.rel target = $region3
  $region8: #{t5_text_to_latex.4} parent=0 // loop_exit
    _

// kernel: t5_text_to_latex.7
$region0: #{t5_text_to_latex.7}
  #allocation0 [shape = 'u32[]', space=smem, size = 0x4, offset = 0x4, fixed_abs, tag = 'smem constant byte address 0x4 - core index']
  #allocation1 [shape = 'u32[72,128]{1,0:T(1,128)}', space=vmem, size = 0x9000, scoped, tag = 'internal scratch']
  #allocation2 [shape = 'f32[2,32]{1,0:T(2,128)}', space=vmem, size = 0x400, scoped, tag = 'scratch operand']
  #allocation3 [shape = 'f32[2,128]{1,0:T(2,128)}', space=vmem, size = 0x400, scoped, tag = 'scratch operand']
  %s0 = inlined_call_operand.vmem [shape: f32[2,8], index: 0, kind: input, shape index: {}]
  %s1 = inlined_call_operand.vmem [shape: f32[2,8,64], index: 1, kind: input, shape index: {}]
  %s2 = inlined_call_operand.vmem [shape: bf16[32,32], index: 2, kind: input, shape index: {}]
  %s3 = inlined_call_operand.vmem [shape: bf16[32,32], index: 3, kind: input, shape index: {}]
  %s4 = inlined_call_operand.vmem [shape: bf16[32,64], index: 4, kind: input, shape index: {}]
  %s5 = inlined_call_operand.vmem [shape: bf16[64,32], index: 5, kind: input, shape index: {}]
  %s6 = inlined_call_operand.vmem [shape: bf16[128,32], index: 6, kind: input, shape index: {}]
  %s7 = inlined_call_operand.vmem [shape: bf16[32,128], index: 7, kind: input, shape index: {}]
  %s8 = inlined_call_operand.hbm [shape: s32[2,8], index: 8, kind: output, shape index: {}]
  %s9 = sld [smem:[#allocation0]]
  $region69: #{t5_text_to_latex.7} parent=0
    _
  %s11 = ssub.s32 1, %s9
  %s12 = scalar_select 0, %s11, %s9
  $region1: #{t5_text_to_latex.7} parent=0
    #allocation4 [shape = 'u8[1024]{0}', space=vmem, size = 0x400, scoped, tag = 'output window, operand 0, single buffered']
    #allocation5 [shape = 's32[2]{0}', space=sflag, size = 0x8, scoped, tag = 'scoped memory for t5_text_to_latex.7']
    %13 = vsyncpa [#allocation5], 0
    loop: start=0, step=1, limit=10
    $region2: #{t5_text_to_latex.7} parent=1 // loop_pre_header
      _
    $region3: #{t5_text_to_latex.7} parent=1 // loop_header
      %s15 = sphi 0, %s19
      %p16 = scmp.ge.s32.totalorder %s15, 10
      %s23 = sphi 0, %s23
      %s25 = sphi 0, %s23
      %s26 = sphi 0, %s25
      %s40 = sphi 0, %s26
      %s44 = sphi 0, %s44
      %s46 = sphi 0, %s44
      %s47 = sphi 0, %s46
      %s61 = sphi 0, %s47
      %s65 = sphi 0, %s65
      %s67 = sphi 0, %s65
      %s68 = sphi 0, %s67
      %s82 = sphi 0, %s68
      %s86 = sphi 0, %s86
      %s88 = sphi 0, %s86
      %s89 = sphi 0, %s88
      %s103 = sphi 0, %s89
      %s107 = sphi 0, %s107
      %s109 = sphi 0, %s107
      %s110 = sphi 0, %s109
      %s124 = sphi 0, %s110
      %s128 = sphi 0, %s128
      %s130 = sphi 0, %s128
      %s131 = sphi 0, %s130
      %s145 = sphi 0, %s131
      %s149 = sphi 0, %s149
      %s151 = sphi 0, %s149
      %s152 = sphi 0, %s151
      %s166 = sphi 0, %s152
      %s170 = sphi 0, %s170
      %s172 = sphi 0, %s170
      %s173 = sphi 0, %s172
      %s187 = sphi 0, %s173
      %s191 = sphi 0, %s191
      %s193 = sphi 0, %s191
      %s194 = sphi 0, %s193
      %s208 = sphi 0, %s194
    $region4: #{t5_text_to_latex.7} parent=1 // loop_header_branch
      %18 = sbr.rel (%p16) target = $region8
    $region5: #{t5_text_to_latex.7} parent=1 // loop_body
      %s20 = ssub.s32 %s15, 1
      %s21 = ssub.s32 %s15, 2
      %s22 = sadd.s32 %s15, 1
      %s24 = sadd.s32 %s23, 1
      %p27 = scmp.eq.s32.totalorder %s15, 7
      %p28 = scmp.ne.s32.totalorder %s23, %s25
      %p29 = scmp.eq.s32.totalorder %s15, 0
      %p30 = por %p28, %p29
      %p31 = scmp.ne.s32.totalorder %s23, %s25
      %p32 = scmp.eq.s32.totalorder %s20, 7
      %p33 = por %p31, %p32
      %p34 = scmp.ne.s32.totalorder %s25, %s26
      %p35 = scmp.eq.s32.totalorder %s20, 0
      %p36 = por %p34, %p35
      %p37 = scmp.ne.s32.totalorder %s25, %s26
      %p38 = scmp.eq.s32.totalorder %s21, 7
      %p39 = por %p37, %p38
      %p41 = scmp.ne.s32.totalorder %s26, %s40
      %p42 = scmp.eq.s32.totalorder %s21, 0
      %p43 = por %p41, %p42
      %s45 = sadd.s32 %s44, 1
      %p48 = scmp.eq.s32.totalorder %s15, 7
      %p49 = scmp.ne.s32.totalorder %s44, %s46
      %p50 = scmp.eq.s32.totalorder %s15, 0
      %p51 = por %p49, %p50
      %p52 = scmp.ne.s32.totalorder %s44, %s46
      %p53 = scmp.eq.s32.totalorder %s20, 7
      %p54 = por %p52, %p53
      %p55 = scmp.ne.s32.totalorder %s46, %s47
      %p56 = scmp.eq.s32.totalorder %s20, 0
      %p57 = por %p55, %p56
      %p58 = scmp.ne.s32.totalorder %s46, %s47
      %p59 = scmp.eq.s32.totalorder %s21, 7
      %p60 = por %p58, %p59
      %p62 = scmp.ne.s32.totalorder %s47, %s61
      %p63 = scmp.eq.s32.totalorder %s21, 0
      %p64 = por %p62, %p63
      %s66 = sadd.s32 %s65, 1
      %p69 = scmp.eq.s32.totalorder %s15, 7
      %p70 = scmp.ne.s32.totalorder %s65, %s67
      %p71 = scmp.eq.s32.totalorder %s15, 0
      %p72 = por %p70, %p71
      %p73 = scmp.ne.s32.totalorder %s65, %s67
      %p74 = scmp.eq.s32.totalorder %s20, 7
      %p75 = por %p73, %p74
      %p76 = scmp.ne.s32.totalorder %s67, %s68
      %p77 = scmp.eq.s32.totalorder %s20, 0
      %p78 = por %p76, %p77
      %p79 = scmp.ne.s32.totalorder %s67, %s68
      %p80 = scmp.eq.s32.totalorder %s21, 7
      %p81 = por %p79, %p80
      %p83 = scmp.ne.s32.totalorder %s68, %s82
      %p84 = scmp.eq.s32.totalorder %s21, 0
      %p85 = por %p83, %p84
      %s87 = sadd.s32 %s86, 1
      %p90 = scmp.eq.s32.totalorder %s15, 7
      %p91 = scmp.ne.s32.totalorder %s86, %s88
      %p92 = scmp.eq.s32.totalorder %s15, 0
      %p93 = por %p91, %p92
      %p94 = scmp.ne.s32.totalorder %s86, %s88
      %p95 = scmp.eq.s32.totalorder %s20, 7
      %p96 = por %p94, %p95
      %p97 = scmp.ne.s32.totalorder %s88, %s89
      %p98 = scmp.eq.s32.totalorder %s20, 0
      %p99 = por %p97, %p98
      %p100 = scmp.ne.s32.totalorder %s88, %s89
      %p101 = scmp.eq.s32.totalorder %s21, 7
      %p102 = por %p100, %p101
      %p104 = scmp.ne.s32.totalorder %s89, %s103
      %p105 = scmp.eq.s32.totalorder %s21, 0
      %p106 = por %p104, %p105
      %s108 = sadd.s32 %s107, 1
      %p111 = scmp.eq.s32.totalorder %s15, 7
      %p112 = scmp.ne.s32.totalorder %s107, %s109
      %p113 = scmp.eq.s32.totalorder %s15, 0
      %p114 = por %p112, %p113
      %p115 = scmp.ne.s32.totalorder %s107, %s109
      %p116 = scmp.eq.s32.totalorder %s20, 7
      %p117 = por %p115, %p116
      %p118 = scmp.ne.s32.totalorder %s109, %s110
      %p119 = scmp.eq.s32.totalorder %s20, 0
      %p120 = por %p118, %p119
      %p121 = scmp.ne.s32.totalorder %s109, %s110
      %p122 = scmp.eq.s32.totalorder %s21, 7
      %p123 = por %p121, %p122
      %p125 = scmp.ne.s32.totalorder %s110, %s124
      %p126 = scmp.eq.s32.totalorder %s21, 0
      %p127 = por %p125, %p126
      %s129 = sadd.s32 %s128, 1
      %p132 = scmp.eq.s32.totalorder %s15, 7
      %p133 = scmp.ne.s32.totalorder %s128, %s130
      %p134 = scmp.eq.s32.totalorder %s15, 0
      %p135 = por %p133, %p134
      %p136 = scmp.ne.s32.totalorder %s128, %s130
      %p137 = scmp.eq.s32.totalorder %s20, 7
      %p138 = por %p136, %p137
      %p139 = scmp.ne.s32.totalorder %s130, %s131
      %p140 = scmp.eq.s32.totalorder %s20, 0
      %p141 = por %p139, %p140
      %p142 = scmp.ne.s32.totalorder %s130, %s131
      %p143 = scmp.eq.s32.totalorder %s21, 7
      %p144 = por %p142, %p143
      %p146 = scmp.ne.s32.totalorder %s131, %s145
      %p147 = scmp.eq.s32.totalorder %s21, 0
      %p148 = por %p146, %p147
      %s150 = sadd.s32 %s149, 1
      %p153 = scmp.eq.s32.totalorder %s15, 7
      %p154 = scmp.ne.s32.totalorder %s149, %s151
      %p155 = scmp.eq.s32.totalorder %s15, 0
      %p156 = por %p154, %p155
      %p157 = scmp.ne.s32.totalorder %s149, %s151
      %p158 = scmp.eq.s32.totalorder %s20, 7
      %p159 = por %p157, %p158
      %p160 = scmp.ne.s32.totalorder %s151, %s152
      %p161 = scmp.eq.s32.totalorder %s20, 0
      %p162 = por %p160, %p161
      %p163 = scmp.ne.s32.totalorder %s151, %s152
      %p164 = scmp.eq.s32.totalorder %s21, 7
      %p165 = por %p163, %p164
      %p167 = scmp.ne.s32.totalorder %s152, %s166
      %p168 = scmp.eq.s32.totalorder %s21, 0
      %p169 = por %p167, %p168
      %s171 = sadd.s32 %s170, 1
      %p174 = scmp.eq.s32.totalorder %s15, 7
      %p175 = scmp.ne.s32.totalorder %s170, %s172
      %p176 = scmp.eq.s32.totalorder %s15, 0
      %p177 = por %p175, %p176
      %p178 = scmp.ne.s32.totalorder %s170, %s172
      %p179 = scmp.eq.s32.totalorder %s20, 7
      %p180 = por %p178, %p179
      %p181 = scmp.ne.s32.totalorder %s172, %s173
      %p182 = scmp.eq.s32.totalorder %s20, 0
      %p183 = por %p181, %p182
      %p184 = scmp.ne.s32.totalorder %s172, %s173
      %p185 = scmp.eq.s32.totalorder %s21, 7
      %p186 = por %p184, %p185
      %p188 = scmp.ne.s32.totalorder %s173, %s187
      %p189 = scmp.eq.s32.totalorder %s21, 0
      %p190 = por %p188, %p189
      %s192 = sadd.s32 %s191, 1
      %p195 = scmp.eq.s32.totalorder %s15, 7
      %p196 = scmp.ne.s32.totalorder %s191, %s193
      %p197 = scmp.eq.s32.totalorder %s15, 0
      %p198 = por %p196, %p197
      %p199 = scmp.ne.s32.totalorder %s191, %s193
      %p200 = scmp.eq.s32.totalorder %s20, 7
      %p201 = por %p199, %p200
      %p202 = scmp.ne.s32.totalorder %s193, %s194
      %p203 = scmp.eq.s32.totalorder %s20, 0
      %p204 = por %p202, %p203
      %p205 = scmp.ne.s32.totalorder %s193, %s194
      %p206 = scmp.eq.s32.totalorder %s21, 7
      %p207 = por %p205, %p206
      %p209 = scmp.ne.s32.totalorder %s194, %s208
      %p210 = scmp.eq.s32.totalorder %s21, 0
      %p211 = por %p209, %p210
      %p212 = scmp.le.s32.totalorder 1, %s15
      %p213 = scmp.lt.s32.totalorder %s15, 9
      %p214 = pnand %p212, %p213
      %p215 = pneg %p214
      // Predicated region
      $region9: #{t5_text_to_latex.7} parent=5 // pred_check
        _
      $region10: #{t5_text_to_latex.7} parent=5 // pred_check_branch
        %217 = sbr.rel (%p214) target = $region12
      $region11: #{t5_text_to_latex.7} parent=5 // pred_region
        %s218 = ssub.s32 %s15, 1
        // Predicated region
        $region13: #{t5_text_to_latex.7} parent=11 // pred_check
          %p219 = pneg %p36
        $region14: #{t5_text_to_latex.7} parent=11 // pred_check_branch
          %221 = sbr.rel (%p219) target = $region16
        $region15: #{t5_text_to_latex.7} parent=11 // pred_region
          _
        $region16: #{t5_text_to_latex.7} parent=11 // pred_fallthru
          _
        // Predicated region
        $region17: #{t5_text_to_latex.7} parent=11 // pred_check
          %p222 = pneg %p57
        $region18: #{t5_text_to_latex.7} parent=11 // pred_check_branch
          %224 = sbr.rel (%p222) target = $region20
        $region19: #{t5_text_to_latex.7} parent=11 // pred_region
          _
        $region20: #{t5_text_to_latex.7} parent=11 // pred_fallthru
          _
        // Predicated region
        $region21: #{t5_text_to_latex.7} parent=11 // pred_check
          %p225 = pneg %p78
        $region22: #{t5_text_to_latex.7} parent=11 // pred_check_branch
          %227 = sbr.rel (%p225) target = $region24
        $region23: #{t5_text_to_latex.7} parent=11 // pred_region
          _
        $region24: #{t5_text_to_latex.7} parent=11 // pred_fallthru
          _
        // Predicated region
        $region25: #{t5_text_to_latex.7} parent=11 // pred_check
          %p228 = pneg %p99
        $region26: #{t5_text_to_latex.7} parent=11 // pred_check_branch
          %230 = sbr.rel (%p228) target = $region28
        $region27: #{t5_text_to_latex.7} parent=11 // pred_region
          _
        $region28: #{t5_text_to_latex.7} parent=11 // pred_fallthru
          _
        // Predicated region
        $region29: #{t5_text_to_latex.7} parent=11 // pred_check
          %p231 = pneg %p120
        $region30: #{t5_text_to_latex.7} parent=11 // pred_check_branch
          %233 = sbr.rel (%p231) target = $region32
        $region31: #{t5_text_to_latex.7} parent=11 // pred_region
          _
        $region32: #{t5_text_to_latex.7} parent=11 // pred_fallthru
          _
        // Predicated region
        $region33: #{t5_text_to_latex.7} parent=11 // pred_check
          %p234 = pneg %p141
        $region34: #{t5_text_to_latex.7} parent=11 // pred_check_branch
          %236 = sbr.rel (%p234) target = $region36
        $region35: #{t5_text_to_latex.7} parent=11 // pred_region
          _
        $region36: #{t5_text_to_latex.7} parent=11 // pred_fallthru
          _
        // Predicated region
        $region37: #{t5_text_to_latex.7} parent=11 // pred_check
          %p237 = pneg %p162
        $region38: #{t5_text_to_latex.7} parent=11 // pred_check_branch
          %239 = sbr.rel (%p237) target = $region40
        $region39: #{t5_text_to_latex.7} parent=11 // pred_region
          _
        $region40: #{t5_text_to_latex.7} parent=11 // pred_fallthru
          _
        // Predicated region
        $region41: #{t5_text_to_latex.7} parent=11 // pred_check
          %p240 = pneg %p183
        $region42: #{t5_text_to_latex.7} parent=11 // pred_check_branch
          %242 = sbr.rel (%p240) target = $region44
        $region43: #{t5_text_to_latex.7} parent=11 // pred_region
          _
        $region44: #{t5_text_to_latex.7} parent=11 // pred_fallthru
          _
      $region12: #{t5_text_to_latex.7} parent=5 // pred_fallthru
        _
      %p243 = scmp.lt.s32.totalorder %s15, 8
      // Predicated region
      $region45: #{t5_text_to_latex.7} parent=5 // pred_check
        %p244 = pneg %p243
      $region46: #{t5_text_to_latex.7} parent=5 // pred_check_branch
        %246 = sbr.rel (%p244) target = $region48
      $region47: #{t5_text_to_latex.7} parent=5 // pred_region
        _
      $region48: #{t5_text_to_latex.7} parent=5 // pred_fallthru
        _
      %p247 = scmp.le.s32.totalorder 1, %s15
      %p248 = scmp.lt.s32.totalorder %s15, 9
      %p249 = pnand %p247, %p248
      %p250 = pneg %p249
      // Predicated region
      $region49: #{t5_text_to_latex.7} parent=5 // pred_check
        _
      $region50: #{t5_text_to_latex.7} parent=5 // pred_check_branch
        %252 = sbr.rel (%p249) target = $region52
      $region51: #{t5_text_to_latex.7} parent=5 // pred_region
        %s253 = ssub.s32 %s15, 1
        %p254 = pneg %p36
        %p255 = pneg %p33
        %p256 = pneg %p57
        %p257 = pneg %p54
        %p258 = pneg %p78
        %p259 = pneg %p75
        %p260 = pneg %p99
        %p261 = pneg %p96
        %p262 = pneg %p120
        %p263 = pneg %p117
        %p264 = pneg %p141
        %p265 = pneg %p138
        %p266 = pneg %p162
        %p267 = pneg %p159
        %p268 = pneg %p183
        %p269 = pneg %p180
        %p270 = pneg %p204
        %p271 = pneg %p201
        %v273 = vlaneseq
        %v274 = vand.u32 %v273, 127
        %p275 = scmp.eq.s32.totalorder %s20, 0
        // Predicated region
        $region53: #{t5_text_to_latex.7} parent=51 // pred_check
          %p276 = pneg %p275
        $region54: #{t5_text_to_latex.7} parent=51 // pred_check_branch
          %278 = sbr.rel (%p276) target = $region56
        $region55: #{t5_text_to_latex.7} parent=51 // pred_region
          %vm279 = vcmp.eq.s32.totalorder %v274, 0
          %v280 = vsel %vm279, 1, 0
          %v281 = vcvt.s32.f32 %v280
          %282 = vst [vmem:[#allocation3] sm:$0x3] %v281
          %v283 = vpack.c.bf16 %v281, %v281
          %v284 = vld [vmem:[%s6] sm:$0xf]
          %v285 = vld [vmem:[%s6 + $0x4] sm:$0xf]
          %v286 = vld [vmem:[%s6 + $0x8] sm:$0xf]
          %v287 = vld [vmem:[%s6 + $0xc] sm:$0xf]
          %v288 = vld [vmem:[%s6 + $0x10] sm:$0xf]
          %v289 = vld [vmem:[%s6 + $0x14] sm:$0xf]
          %v290 = vld [vmem:[%s6 + $0x18] sm:$0xf]
          %v291 = vld [vmem:[%s6 + $0x1c] sm:$0xf]
          %v292 = vld [vmem:[%s6 + $0x20] sm:$0xf]
          %v293 = vld [vmem:[%s6 + $0x24] sm:$0xf]
          %v294 = vld [vmem:[%s6 + $0x28] sm:$0xf]
          %v295 = vld [vmem:[%s6 + $0x2c] sm:$0xf]
          %v296 = vld [vmem:[%s6 + $0x30] sm:$0xf]
          %v297 = vld [vmem:[%s6 + $0x34] sm:$0xf]
          %v298 = vld [vmem:[%s6 + $0x38] sm:$0xf]
          %v299 = vld [vmem:[%s6 + $0x3c] sm:$0xf]
          %v316 = vunpack.c.l.b16 %v284
          %v317 = vunpack.c.l.b16 %v285
          %v318 = vunpack.c.l.b16 %v286
          %v319 = vunpack.c.l.b16 %v287
          %v320 = vunpack.c.l.b16 %v288
          %v321 = vunpack.c.l.b16 %v289
          %v322 = vunpack.c.l.b16 %v290
          %v323 = vunpack.c.l.b16 %v291
          %v324 = vunpack.c.l.b16 %v292
          %v325 = vunpack.c.l.b16 %v293
          %v326 = vunpack.c.l.b16 %v294
          %v327 = vunpack.c.l.b16 %v295
          %v328 = vunpack.c.l.b16 %v296
          %v329 = vunpack.c.l.b16 %v297
          %v330 = vunpack.c.l.b16 %v298
          %v331 = vunpack.c.l.b16 %v299
          %v332 = vpack.c.b16 %v317, %v316
          %v333 = vpack.c.b16 %v319, %v318
          %v334 = vpack.c.b16 %v321, %v320
          %v335 = vpack.c.b16 %v323, %v322
          %v336 = vpack.c.b16 %v325, %v324
          %v337 = vpack.c.b16 %v327, %v326
          %v338 = vpack.c.b16 %v329, %v328
          %v339 = vpack.c.b16 %v331, %v330
          %348 = vmatpush.bf16.msra.mxu0 %v339
          %349 = vmatpush.bf16.msra.mxu0 %v338
          %350 = vmatpush.bf16.msra.mxu0 %v337
          %351 = vmatpush.bf16.msra.mxu0 %v336
          %352 = vmatpush.bf16.msra.mxu0 %v335
          %353 = vmatpush.bf16.msra.mxu0 %v334
          %354 = vmatpush.bf16.msra.mxu0 %v333
          %355 = vmatpush.bf16.msra.mxu0 %v332
          %356 = vmatmul.bf16.gmra.mxu0 %v283
          %v357 = vpop.f32.mrf.mxu0
          %v358 = vadd.f32 0.0, %v357
          %v359 = vpop.f32.mrf.mxu0
          %360 = vdwg.mxu0
          %vm361 = vcmask 254976
          %362 = vst.msk [vmem:[#allocation2] sm:$0x3] %vm361, %v358
          %vm363 = vcmask 58368
          %364 = vst.msk [vmem:[#allocation4] sm:$0x3] %vm363, 0
        $region56: #{t5_text_to_latex.7} parent=51 // pred_fallthru
          _
        %v365 = vld [vmem:[#allocation2] sm:$0x3]
        %v366 = vld [vmem:[%s1] sm:$0xff]
        %v367 = vld [vmem:[%s1 + $0x8] sm:$0xff]
        %v368 = vld [vmem:[%s0] sm:$0x3]
        %v369 = vmul.f32 %v365, %v365
        %vm370 = vcmask 254976
        %v371 = vsel %vm370, %v369, 0.0
        %372 = vadd.xlane.f32.xlu0 %v371
        %v373 = vpop.xlane.xlu0 %372
        %v374 = vrcp.pop 32.0
        %v375 = vmul.f32 32.0, %v374
        %v376 = vsub.f32 1.0, %v375
        %v377 = vmul.f32 %v374, %v376
        %v378 = vadd.f32 %v374, %v377
        %vm379 = vweird.f32 %v374
        %v380 = vsel %vm379, %v374, %v378
        %v381 = vmul.f32 %v373, %v380
        %v382 = vadd.f32 %v381, 1e-06
        %v383 = vrsqrt.pop %v382
        %v384 = vmul.f32 %v383, %v382
        %v385 = vmul.f32 %v384, %v383
        %v386 = vmul.f32 0.5, %v385
        %v387 = vsub.f32 1.5, %v386
        %v388 = vmul.f32 %v383, %v387
        %vm389 = vweird.f32 %v382
        %vm390 = vweird.f32 %v383
        %vm391 = vmor %vm389, %vm390
        %v392 = vsel %vm391, %v383, %v388
        %v393 = vmul.f32 %v365, %v392
        %v394 = vpack.c.bf16 %v393, %v393
        %v395 = vld [vmem:[%s2] sm:$0xf]
        %v396 = vld [vmem:[%s2 + $0x4] sm:$0xf]
        %v397 = vld [vmem:[%s2 + $0x8] sm:$0xf]
        %v398 = vld [vmem:[%s2 + $0xc] sm:$0xf]
        %v403 = vunpack.c.l.b16 %v395
        %v404 = vunpack.c.l.b16 %v396
        %v405 = vunpack.c.l.b16 %v397
        %v406 = vunpack.c.l.b16 %v398
        %v407 = vpack.c.b16 %v404, %v403
        %v408 = vpack.c.b16 %v406, %v405
        %vm411 = vcmask 261120
        %v413 = vsel %vm411, %v394, 0
        %415 = vmatpush.bf16.msra.mxu0 0
        %416 = vmatpush.bf16.msra.mxu0 0
        %417 = vmatpush.bf16.msra.mxu0 0
        %418 = vmatpush.bf16.msra.mxu0 0
        %419 = vmatpush.bf16.msra.mxu0 0
        %420 = vmatpush.bf16.msra.mxu0 0
        %421 = vmatpush.bf16.msra.mxu0 %v408
        %422 = vmatpush.bf16.msra.mxu0 %v407
        %423 = vmatmul.bf16.gmra.mxu0 %v413
        %v424 = vpop.f32.mrf.mxu0
        %v425 = vadd.f32 0.0, %v424
        %v426 = vpop.f32.mrf.mxu0
        %427 = vdwg.mxu0
        %v429 = vrot.slane %v425, 1
        %v430 = vperm.slane %v425, 0
        %v431 = vperm.slane %v429, 0
        %v434 = vmul.f32 %v430, %v366
        %v435 = vmul.f32 %v431, %v367
        %v436 = vsel %vm411, %v434, 0.0
        %437 = vadd.xlane.f32.xlu0 %v436
        %v438 = vpop.xlane.xlu0 %437
        %v439 = vsel %vm411, %v435, 0.0
        %440 = vadd.xlane.f32.xlu0 %v439
        %v441 = vpop.xlane.xlu0 %440
        %v442 = vmul.f32 %v438, 0.17677669
        %v443 = vmul.f32 %v441, 0.17677669
        %v444 = vsub.f32 %v368, 1.0
        %v445 = vmul.f32 %v444, 1e+09
        %v447 = vperm.slane %v445, 0
        %v448 = vlaneseq
        %v449 = vshrl.u32 %v448, 7
        %451 = vset.pattern.permute.xlu0 %v449
        %452 = vperm.xlu0 %451, %v447
        %v453 = vpop.permute.xlu0 %452
        %v454 = vperm.slane %v445, 1
        %v455 = vlaneseq
        %v456 = vshrl.u32 %v455, 7
        %458 = vset.pattern.permute.xlu0 %v456
        %459 = vperm.xlu0 %458, %v454
        %v460 = vpop.permute.xlu0 %459
        %v463 = vadd.f32 %v442, %v453
        %v464 = vadd.f32 %v443, %v460
        %467 = vset.pattern.permute.xlu0 0
        %468 = vperm.xlu0 %467, %v463
        %v469 = vpop.permute.xlu0 %468
        %470 = vset.pattern.permute.xlu0 0
        %471 = vperm.xlu0 %470, %v464
        %v472 = vpop.permute.xlu0 %471
        %v473 = vperm.slane %v469, %v274
        %v474 = vperm.slane %v472, %v274
        %vm475 = vcmask 1041409
        %v476 = vsel %vm475, %v474, %v473
        %vm478 = vcmask 58368
        %v479 = vsel %vm478, %v476, -inf
        %480 = vmax.xlane.f32.xlu0 %v479
        %v481 = vpop.xlane.xlu0 %480
        %v483 = vperm.slane %v481, 0
        %v484 = vperm.slane %v481, 1
        %v487 = vsub.f32 %v463, %v483
        %v488 = vsub.f32 %v464, %v484
        %v489 = vmul.f32 %v487, 1.442695
        %v490 = vpow.pop %v489
        %v491 = vmul.f32 %v488, 1.442695
        %v492 = vpow.pop %v491
        %495 = vset.pattern.permute.xlu0 0
        %496 = vperm.xlu0 %495, %v490
        %v497 = vpop.permute.xlu0 %496
        %498 = vset.pattern.permute.xlu0 0
        %499 = vperm.xlu0 %498, %v492
        %v500 = vpop.permute.xlu0 %499
        %v501 = vperm.slane %v497, %v274
        %v502 = vperm.slane %v500, %v274
        %v503 = vsel %vm475, %v502, %v501
        %v505 = vsel %vm478, %v503, 0.0
        %506 = vadd.xlane.f32.xlu0 %v505
        %v507 = vpop.xlane.xlu0 %506
        %v508 = vrcp.pop %v507
        %v510 = vperm.slane %v508, 0
        %v511 = vperm.slane %v508, 1
        %v514 = vmul.f32 %v490, %v510
        %v515 = vmul.f32 %v492, %v511
        %517 = vset.pattern.permute.xlu0 0
        %518 = vperm.xlu0 %517, %v514
        %v519 = vpop.permute.xlu0 %518
        %522 = vset.pattern.permute.xlu0 0
        %523 = vperm.xlu0 %522, %v515
        %v524 = vpop.permute.xlu0 %523
        %v526 = vmul.f32 %v519, %v366
        %v527 = vmul.f32 %v524, %v367
        %vm528 = vcmask 523520
        %v529 = vsel %vm528, %v526, 0.0
        %v530 = vrot.slane %v529, 4
        %v531 = vadd.f32 %v529, %v530
        %v532 = vrot.slane %v531, 2
        %v533 = vadd.f32 %v531, %v532
        %v534 = vrot.slane %v533, 1
        %v535 = vadd.f32 %v533, %v534
        %v536 = vsel %vm528, %v527, 0.0
        %v537 = vrot.slane %v536, 4
        %v538 = vadd.f32 %v536, %v537
        %v539 = vrot.slane %v538, 2
        %v540 = vadd.f32 %v538, %v539
        %v541 = vrot.slane %v540, 1
        %v542 = vadd.f32 %v540, %v541
        %v543 = vpack.c.bf16 %v535, %v535
        %v544 = vpack.c.bf16 %v542, %v542
        %v545 = vld [vmem:[%s3] sm:$0xf]
        %v546 = vld [vmem:[%s3 + $0x4] sm:$0xf]
        %v547 = vld [vmem:[%s3 + $0x8] sm:$0xf]
        %v548 = vld [vmem:[%s3 + $0xc] sm:$0xf]
        %v551 = vunpack.c.l.b16 %v543
        %v552 = vunpack.c.l.b16 %v544
        %v553 = vsel %vm475, %v552, %v551
        %v554 = vpack.c.b16 %v553, %v553
        %555 = vrot.lane.b32.xlu0 %v554, 96
        %v556 = vpop.permute.xlu0 %555
        %v561 = vunpack.c.l.b16 %v545
        %v562 = vunpack.c.l.b16 %v546
        %v563 = vunpack.c.l.b16 %v547
        %v564 = vunpack.c.l.b16 %v548
        %v565 = vpack.c.b16 %v562, %v561
        %v566 = vpack.c.b16 %v564, %v563
        %v570 = vsel %vm411, %v556, 0
        %572 = vmatpush.bf16.msra.mxu0 0
        %573 = vmatpush.bf16.msra.mxu0 0
        %574 = vmatpush.bf16.msra.mxu0 0
        %575 = vmatpush.bf16.msra.mxu0 0
        %576 = vmatpush.bf16.msra.mxu0 0
        %577 = vmatpush.bf16.msra.mxu0 0
        %578 = vmatpush.bf16.msra.mxu0 %v566
        %579 = vmatpush.bf16.msra.mxu0 %v565
        %580 = vmatmul.bf16.gmra.mxu0 %v570
        %v581 = vpop.f32.mrf.mxu0
        %v582 = vadd.f32 0.0, %v581
        %v583 = vpop.f32.mrf.mxu0
        %584 = vdwg.mxu0
        %v585 = vadd.f32 %v365, %v582
        %v586 = vmul.f32 %v585, %v585
        %v587 = vsel %vm370, %v586, 0.0
        %588 = vadd.xlane.f32.xlu0 %v587
        %v589 = vpop.xlane.xlu0 %588
        %v590 = vmul.f32 %v589, %v380
        %v591 = vadd.f32 %v590, 1e-06
        %v592 = vrsqrt.pop %v591
        %v593 = vmul.f32 %v592, %v591
        %v594 = vmul.f32 %v593, %v592
        %v595 = vmul.f32 0.5, %v594
        %v596 = vsub.f32 1.5, %v595
        %v597 = vmul.f32 %v592, %v596
        %vm598 = vweird.f32 %v591
        %vm599 = vweird.f32 %v592
        %vm600 = vmor %vm598, %vm599
        %v601 = vsel %vm600, %v592, %v597
        %v602 = vmul.f32 %v585, %v601
        %v603 = vpack.c.bf16 %v602, %v602
        %v604 = vld [vmem:[%s4] sm:$0xf]
        %v605 = vld [vmem:[%s4 + $0x4] sm:$0xf]
        %v606 = vld [vmem:[%s4 + $0x8] sm:$0xf]
        %v607 = vld [vmem:[%s4 + $0xc] sm:$0xf]
        %v612 = vunpack.c.l.b16 %v604
        %v613 = vunpack.c.l.b16 %v605
        %v614 = vunpack.c.l.b16 %v606
        %v615 = vunpack.c.l.b16 %v607
        %v616 = vpack.c.b16 %v613, %v612
        %v617 = vpack.c.b16 %v615, %v614
        %v621 = vsel %vm411, %v603, 0
        %623 = vmatpush.bf16.msra.mxu0 0
        %624 = vmatpush.bf16.msra.mxu0 0
        %625 = vmatpush.bf16.msra.mxu0 0
        %626 = vmatpush.bf16.msra.mxu0 0
        %627 = vmatpush.bf16.msra.mxu0 0
        %628 = vmatpush.bf16.msra.mxu0 0
        %629 = vmatpush.bf16.msra.mxu0 %v617
        %630 = vmatpush.bf16.msra.mxu0 %v616
        %631 = vmatmul.bf16.gmra.mxu0 %v621
        %v632 = vpop.f32.mrf.mxu0
        %v633 = vadd.f32 0.0, %v632
        %v634 = vpop.f32.mrf.mxu0
        %635 = vdwg.mxu0
        %v636 = vmax.f32 %v633, 0.0
        %v637 = vpack.c.bf16 %v636, %v636
        %v638 = vld [vmem:[%s5] sm:$0xf]
        %v639 = vld [vmem:[%s5 + $0x4] sm:$0xf]
        %v640 = vld [vmem:[%s5 + $0x8] sm:$0xf]
        %v641 = vld [vmem:[%s5 + $0xc] sm:$0xf]
        %v642 = vld [vmem:[%s5 + $0x10] sm:$0xf]
        %v643 = vld [vmem:[%s5 + $0x14] sm:$0xf]
        %v644 = vld [vmem:[%s5 + $0x18] sm:$0xf]
        %v645 = vld [vmem:[%s5 + $0x1c] sm:$0xf]
        %v654 = vunpack.c.l.b16 %v638
        %v655 = vunpack.c.l.b16 %v639
        %v656 = vunpack.c.l.b16 %v640
        %v657 = vunpack.c.l.b16 %v641
        %v658 = vunpack.c.l.b16 %v642
        %v659 = vunpack.c.l.b16 %v643
        %v660 = vunpack.c.l.b16 %v644
        %v661 = vunpack.c.l.b16 %v645
        %v662 = vpack.c.b16 %v655, %v654
        %v663 = vpack.c.b16 %v657, %v656
        %v664 = vpack.c.b16 %v659, %v658
        %v665 = vpack.c.b16 %v661, %v660
        %vm670 = vcmask 523264
        %v672 = vsel %vm670, %v637, 0
        %674 = vmatpush.bf16.msra.mxu0 0
        %675 = vmatpush.bf16.msra.mxu0 0
        %676 = vmatpush.bf16.msra.mxu0 0
        %677 = vmatpush.bf16.msra.mxu0 0
        %678 = vmatpush.bf16.msra.mxu0 %v665
        %679 = vmatpush.bf16.msra.mxu0 %v664
        %680 = vmatpush.bf16.msra.mxu0 %v663
        %681 = vmatpush.bf16.msra.mxu0 %v662
        %682 = vmatmul.bf16.gmra.mxu0 %v672
        %v683 = vpop.f32.mrf.mxu0
        %v684 = vadd.f32 0.0, %v683
        %v685 = vpop.f32.mrf.mxu0
        %686 = vdwg.mxu0
        %v687 = vadd.f32 %v585, %v684
        %v688 = vpack.c.bf16 %v687, %v687
        %v689 = vld [vmem:[%s7] sm:$0xf]
        %v690 = vld [vmem:[%s7 + $0x4] sm:$0xf]
        %v691 = vld [vmem:[%s7 + $0x8] sm:$0xf]
        %v692 = vld [vmem:[%s7 + $0xc] sm:$0xf]
        %v697 = vunpack.c.l.b16 %v689
        %v698 = vunpack.c.l.b16 %v690
        %v699 = vunpack.c.l.b16 %v691
        %v700 = vunpack.c.l.b16 %v692
        %v701 = vpack.c.b16 %v698, %v697
        %v702 = vpack.c.b16 %v700, %v699
        %v706 = vsel %vm411, %v688, 0
        %708 = vmatpush.bf16.msra.mxu0 0
        %709 = vmatpush.bf16.msra.mxu0 0
        %710 = vmatpush.bf16.msra.mxu0 0
        %711 = vmatpush.bf16.msra.mxu0 0
        %712 = vmatpush.bf16.msra.mxu0 0
        %713 = vmatpush.bf16.msra.mxu0 0
        %714 = vmatpush.bf16.msra.mxu0 %v702
        %715 = vmatpush.bf16.msra.mxu0 %v701
        %716 = vmatmul.bf16.gmra.mxu0 %v706
        %v717 = vpop.f32.mrf.mxu0
        %v718 = vadd.f32 0.0, %v717
        %v719 = vpop.f32.mrf.mxu0
        %720 = vdwg.mxu0
        %vm721 = vcmp.lt.s32.totalorder %v274, 64
        %v722 = vsel %vm721, %v718, -1e+09
        %v723 = vld [vmem:[#allocation3] sm:$0x3]
        %vm724 = vcmp.gt.f32.partialorder %v722, 0.0
        %v725 = vmul.f32 %v722, 0.6666667
        %v726 = vmul.f32 %v722, 1.5
        %v727 = vsel %vm724, %v725, %v726
        %vm728 = vcmp.gt.f32.partialorder %v723, 0.0
        %v729 = vsel %vm728, %v727, %v722
        %vm730 = vcmask 1041408
        %v731 = vsel %vm730, %v729, -inf
        %732 = vmax.xlane.f32.xlu0 %v731
        %v733 = vpop.xlane.xlu0 %732
        %vm734 = vcmp.ge.f32.partialorder %v729, %v733
        %v735 = vsel %vm734, %v274, 128
        %v736 = vsel %vm730, %v735, 2147483647
        %v737 = vand.u32 %v736, 65535
        %v738 = vshra.s32 %v736, 16
        %v739 = vcvt.s32.f32 %v737
        %v740 = vcvt.s32.f32 %v738
        %741 = vmin.xlane.f32.xlu0 %v740
        %v742 = vpop.xlane.xlu0 %741
        %vm743 = vcmp.eq.f32.partialorder %v740, %v742
        %v744 = vsel %vm743, %v739, inf
        %745 = vmin.xlane.f32.xlu0 %v744
        %v746 = vpop.xlane.xlu0 %745
        %v747 = vcvt.f32.s32 %v746
        %v748 = vcvt.f32.s32 %v742
        %v749 = vshll.u32 %v748, 16
        %v750 = vadd.s32 %v749, %v747
        %vm751 = vcmp.eq.s32.totalorder %v274, %v750
        %v752 = vsel %vm751, 1, 0
        %v753 = vcvt.s32.f32 %v752
        %v754 = vmax.f32 %v723, %v753
        %755 = vst [vmem:[#allocation3] sm:$0x3] %v754
        %v756 = vpack.c.bf16 %v753, %v753
        %v757 = vld [vmem:[%s6] sm:$0xf]
        %v758 = vld [vmem:[%s6 + $0x4] sm:$0xf]
        %v759 = vld [vmem:[%s6 + $0x8] sm:$0xf]
        %v760 = vld [vmem:[%s6 + $0xc] sm:$0xf]
        %v761 = vld [vmem:[%s6 + $0x10] sm:$0xf]
        %v762 = vld [vmem:[%s6 + $0x14] sm:$0xf]
        %v763 = vld [vmem:[%s6 + $0x18] sm:$0xf]
        %v764 = vld [vmem:[%s6 + $0x1c] sm:$0xf]
        %v765 = vld [vmem:[%s6 + $0x20] sm:$0xf]
        %v766 = vld [vmem:[%s6 + $0x24] sm:$0xf]
        %v767 = vld [vmem:[%s6 + $0x28] sm:$0xf]
        %v768 = vld [vmem:[%s6 + $0x2c] sm:$0xf]
        %v769 = vld [vmem:[%s6 + $0x30] sm:$0xf]
        %v770 = vld [vmem:[%s6 + $0x34] sm:$0xf]
        %v771 = vld [vmem:[%s6 + $0x38] sm:$0xf]
        %v772 = vld [vmem:[%s6 + $0x3c] sm:$0xf]
        %v789 = vunpack.c.l.b16 %v757
        %v790 = vunpack.c.l.b16 %v758
        %v791 = vunpack.c.l.b16 %v759
        %v792 = vunpack.c.l.b16 %v760
        %v793 = vunpack.c.l.b16 %v761
        %v794 = vunpack.c.l.b16 %v762
        %v795 = vunpack.c.l.b16 %v763
        %v796 = vunpack.c.l.b16 %v764
        %v797 = vunpack.c.l.b16 %v765
        %v798 = vunpack.c.l.b16 %v766
        %v799 = vunpack.c.l.b16 %v767
        %v800 = vunpack.c.l.b16 %v768
        %v801 = vunpack.c.l.b16 %v769
        %v802 = vunpack.c.l.b16 %v770
        %v803 = vunpack.c.l.b16 %v771
        %v804 = vunpack.c.l.b16 %v772
        %v805 = vpack.c.b16 %v790, %v789
        %v806 = vpack.c.b16 %v792, %v791
        %v807 = vpack.c.b16 %v794, %v793
        %v808 = vpack.c.b16 %v796, %v795
        %v809 = vpack.c.b16 %v798, %v797
        %v810 = vpack.c.b16 %v800, %v799
        %v811 = vpack.c.b16 %v802, %v801
        %v812 = vpack.c.b16 %v804, %v803
        %821 = vmatpush.bf16.msra.mxu0 %v812
        %822 = vmatpush.bf16.msra.mxu0 %v811
        %823 = vmatpush.bf16.msra.mxu0 %v810
        %824 = vmatpush.bf16.msra.mxu0 %v809
        %825 = vmatpush.bf16.msra.mxu0 %v808
        %826 = vmatpush.bf16.msra.mxu0 %v807
        %827 = vmatpush.bf16.msra.mxu0 %v806
        %828 = vmatpush.bf16.msra.mxu0 %v805
        %829 = vmatmul.bf16.gmra.mxu0 %v756
        %v830 = vpop.f32.mrf.mxu0
        %v831 = vadd.f32 0.0, %v830
        %v832 = vpop.f32.mrf.mxu0
        %833 = vdwg.mxu0
        %834 = vst.msk [vmem:[#allocation2] sm:$0x3] %vm370, %v831
        %v835 = vstv %s20
        %vm836 = vcmp.eq.s32.totalorder %v274, %v835
        %v837 = vld [vmem:[#allocation4] sm:$0x3]
        %v838 = vsel %vm836, %v750, %v837
        %839 = vst.msk [vmem:[#allocation4] sm:$0x3] %vm478, %v838
        // Predicated region
        $region57: #{t5_text_to_latex.7} parent=51 // pred_check
          %p840 = pneg %p201
        $region58: #{t5_text_to_latex.7} parent=51 // pred_check_branch
          %842 = sbr.rel (%p840) target = $region60
        $region59: #{t5_text_to_latex.7} parent=51 // pred_region
          %844 = vsyncadd [#allocation5], 0
          %s846 = sshll.u32 [#allocation4], 4
          %s847 = int_to_ptr.vmem [resolvable:$true] %s846
          %s848 = sshll.u32 %s8, 4
          %s849 = int_to_ptr.hbm [resolvable:$true] %s848
          %851 = dma.vmem_to_hbm [thread:$0]  %s847, 32, %s849, [#allocation5]
        $region60: #{t5_text_to_latex.7} parent=51 // pred_fallthru
          _
        // Predicated region
        $region61: #{t5_text_to_latex.7} parent=51 // pred_check
          %p852 = pneg %p201
        $region62: #{t5_text_to_latex.7} parent=51 // pred_check_branch
          %854 = sbr.rel (%p852) target = $region64
        $region63: #{t5_text_to_latex.7} parent=51 // pred_region
          %856 = dma.done [#allocation5], 32
        $region64: #{t5_text_to_latex.7} parent=51 // pred_fallthru
          _
      $region52: #{t5_text_to_latex.7} parent=5 // pred_fallthru
        _
      %p857 = scmp.le.s32.totalorder 2, %s15
      // Predicated region
      $region65: #{t5_text_to_latex.7} parent=5 // pred_check
        %p858 = pneg %p857
      $region66: #{t5_text_to_latex.7} parent=5 // pred_check_branch
        %860 = sbr.rel (%p858) target = $region68
      $region67: #{t5_text_to_latex.7} parent=5 // pred_region
        %s861 = ssub.s32 %s15, 2
      $region68: #{t5_text_to_latex.7} parent=5 // pred_fallthru
        _
    $region6: #{t5_text_to_latex.7} parent=1 // loop_footer
      %s19 = sadd.s32 1, %s15
    $region7: #{t5_text_to_latex.7} parent=1 // loop_footer_branch
      %14 = sbr.rel target = $region3
    $region8: #{t5_text_to_latex.7} parent=1 // loop_exit
      _
    %862 = vsyncpa [#allocation5], 1
    %s863 = scalar_lea.sflag [#allocation5], 1
    %864 = vsyncpa %s863, 1

// kernel: t5_text_to_latex.5
$region0: #{t5_text_to_latex.5}
  #allocation0 [shape = 'u32[]', space=smem, size = 0x4, offset = 0x4, fixed_abs, tag = 'smem constant byte address 0x4 - core index']
  #allocation1 [shape = 'u32[72,128]{1,0:T(1,128)}', space=vmem, size = 0x9000, scoped, tag = 'internal scratch']
  #allocation2 [shape = 'f32[2,32]{1,0:T(2,128)}', space=vmem, size = 0x400, scoped, tag = 'scratch operand']
  #allocation3 [shape = 'f32[2,128]{1,0:T(2,128)}', space=vmem, size = 0x400, scoped, tag = 'scratch operand']
  %s0 = inlined_call_operand.vmem [shape: f32[2,8], index: 0, kind: input, shape index: {}]
  %s1 = inlined_call_operand.vmem [shape: f32[2,8,64], index: 1, kind: input, shape index: {}]
  %s2 = inlined_call_operand.vmem [shape: bf16[32,32], index: 2, kind: input, shape index: {}]
  %s3 = inlined_call_operand.vmem [shape: bf16[32,32], index: 3, kind: input, shape index: {}]
  %s4 = inlined_call_operand.vmem [shape: bf16[32,64], index: 4, kind: input, shape index: {}]
  %s5 = inlined_call_operand.vmem [shape: bf16[64,32], index: 5, kind: input, shape index: {}]
  %s6 = inlined_call_operand.vmem [shape: bf16[128,32], index: 6, kind: input, shape index: {}]
  %s7 = inlined_call_operand.vmem [shape: bf16[32,128], index: 7, kind: input, shape index: {}]
  %s8 = inlined_call_operand.vmem [shape: s32[2,8], index: 8, kind: output, shape index: {}]
  %s9 = sld [smem:[#allocation0]]
  $region69: #{t5_text_to_latex.5} parent=0
    _
  %s11 = ssub.s32 1, %s9
  %s12 = scalar_select 0, %s11, %s9
  loop: start=0, step=1, limit=10
  $region2: #{t5_text_to_latex.5} parent=0 // loop_pre_header
    _
  $region3: #{t5_text_to_latex.5} parent=0 // loop_header
    %s14 = sphi 0, %s18
    %p15 = scmp.ge.s32.totalorder %s14, 10
    %s22 = sphi 0, %s22
    %s24 = sphi 0, %s22
    %s25 = sphi 0, %s24
    %s39 = sphi 0, %s25
    %s43 = sphi 0, %s43
    %s45 = sphi 0, %s43
    %s46 = sphi 0, %s45
    %s60 = sphi 0, %s46
    %s64 = sphi 0, %s64
    %s66 = sphi 0, %s64
    %s67 = sphi 0, %s66
    %s81 = sphi 0, %s67
    %s85 = sphi 0, %s85
    %s87 = sphi 0, %s85
    %s88 = sphi 0, %s87
    %s102 = sphi 0, %s88
    %s106 = sphi 0, %s106
    %s108 = sphi 0, %s106
    %s109 = sphi 0, %s108
    %s123 = sphi 0, %s109
    %s127 = sphi 0, %s127
    %s129 = sphi 0, %s127
    %s130 = sphi 0, %s129
    %s144 = sphi 0, %s130
    %s148 = sphi 0, %s148
    %s150 = sphi 0, %s148
    %s151 = sphi 0, %s150
    %s165 = sphi 0, %s151
    %s169 = sphi 0, %s169
    %s171 = sphi 0, %s169
    %s172 = sphi 0, %s171
    %s186 = sphi 0, %s172
    %s190 = sphi 0, %s190
    %s192 = sphi 0, %s190
    %s193 = sphi 0, %s192
    %s207 = sphi 0, %s193
  $region4: #{t5_text_to_latex.5} parent=0 // loop_header_branch
    %17 = sbr.rel (%p15) target = $region8
  $region5: #{t5_text_to_latex.5} parent=0 // loop_body
    %s19 = ssub.s32 %s14, 1
    %s20 = ssub.s32 %s14, 2
    %s21 = sadd.s32 %s14, 1
    %s23 = sadd.s32 %s22, 1
    %p26 = scmp.eq.s32.totalorder %s14, 7
    %p27 = scmp.ne.s32.totalorder %s22, %s24
    %p28 = scmp.eq.s32.totalorder %s14, 0
    %p29 = por %p27, %p28
    %p30 = scmp.ne.s32.totalorder %s22, %s24
    %p31 = scmp.eq.s32.totalorder %s19, 7
    %p32 = por %p30, %p31
    %p33 = scmp.ne.s32.totalorder %s24, %s25
    %p34 = scmp.eq.s32.totalorder %s19, 0
    %p35 = por %p33, %p34
    %p36 = scmp.ne.s32.totalorder %s24, %s25
    %p37 = scmp.eq.s32.totalorder %s20, 7
    %p38 = por %p36, %p37
    %p40 = scmp.ne.s32.totalorder %s25, %s39
    %p41 = scmp.eq.s32.totalorder %s20, 0
    %p42 = por %p40, %p41
    %s44 = sadd.s32 %s43, 1
    %p47 = scmp.eq.s32.totalorder %s14, 7
    %p48 = scmp.ne.s32.totalorder %s43, %s45
    %p49 = scmp.eq.s32.totalorder %s14, 0
    %p50 = por %p48, %p49
    %p51 = scmp.ne.s32.totalorder %s43, %s45
    %p52 = scmp.eq.s32.totalorder %s19, 7
    %p53 = por %p51, %p52
    %p54 = scmp.ne.s32.totalorder %s45, %s46
    %p55 = scmp.eq.s32.totalorder %s19, 0
    %p56 = por %p54, %p55
    %p57 = scmp.ne.s32.totalorder %s45, %s46
    %p58 = scmp.eq.s32.totalorder %s20, 7
    %p59 = por %p57, %p58
    %p61 = scmp.ne.s32.totalorder %s46, %s60
    %p62 = scmp.eq.s32.totalorder %s20, 0
    %p63 = por %p61, %p62
    %s65 = sadd.s32 %s64, 1
    %p68 = scmp.eq.s32.totalorder %s14, 7
    %p69 = scmp.ne.s32.totalorder %s64, %s66
    %p70 = scmp.eq.s32.totalorder %s14, 0
    %p71 = por %p69, %p70
    %p72 = scmp.ne.s32.totalorder %s64, %s66
    %p73 = scmp.eq.s32.totalorder %s19, 7
    %p74 = por %p72, %p73
    %p75 = scmp.ne.s32.totalorder %s66, %s67
    %p76 = scmp.eq.s32.totalorder %s19, 0
    %p77 = por %p75, %p76
    %p78 = scmp.ne.s32.totalorder %s66, %s67
    %p79 = scmp.eq.s32.totalorder %s20, 7
    %p80 = por %p78, %p79
    %p82 = scmp.ne.s32.totalorder %s67, %s81
    %p83 = scmp.eq.s32.totalorder %s20, 0
    %p84 = por %p82, %p83
    %s86 = sadd.s32 %s85, 1
    %p89 = scmp.eq.s32.totalorder %s14, 7
    %p90 = scmp.ne.s32.totalorder %s85, %s87
    %p91 = scmp.eq.s32.totalorder %s14, 0
    %p92 = por %p90, %p91
    %p93 = scmp.ne.s32.totalorder %s85, %s87
    %p94 = scmp.eq.s32.totalorder %s19, 7
    %p95 = por %p93, %p94
    %p96 = scmp.ne.s32.totalorder %s87, %s88
    %p97 = scmp.eq.s32.totalorder %s19, 0
    %p98 = por %p96, %p97
    %p99 = scmp.ne.s32.totalorder %s87, %s88
    %p100 = scmp.eq.s32.totalorder %s20, 7
    %p101 = por %p99, %p100
    %p103 = scmp.ne.s32.totalorder %s88, %s102
    %p104 = scmp.eq.s32.totalorder %s20, 0
    %p105 = por %p103, %p104
    %s107 = sadd.s32 %s106, 1
    %p110 = scmp.eq.s32.totalorder %s14, 7
    %p111 = scmp.ne.s32.totalorder %s106, %s108
    %p112 = scmp.eq.s32.totalorder %s14, 0
    %p113 = por %p111, %p112
    %p114 = scmp.ne.s32.totalorder %s106, %s108
    %p115 = scmp.eq.s32.totalorder %s19, 7
    %p116 = por %p114, %p115
    %p117 = scmp.ne.s32.totalorder %s108, %s109
    %p118 = scmp.eq.s32.totalorder %s19, 0
    %p119 = por %p117, %p118
    %p120 = scmp.ne.s32.totalorder %s108, %s109
    %p121 = scmp.eq.s32.totalorder %s20, 7
    %p122 = por %p120, %p121
    %p124 = scmp.ne.s32.totalorder %s109, %s123
    %p125 = scmp.eq.s32.totalorder %s20, 0
    %p126 = por %p124, %p125
    %s128 = sadd.s32 %s127, 1
    %p131 = scmp.eq.s32.totalorder %s14, 7
    %p132 = scmp.ne.s32.totalorder %s127, %s129
    %p133 = scmp.eq.s32.totalorder %s14, 0
    %p134 = por %p132, %p133
    %p135 = scmp.ne.s32.totalorder %s127, %s129
    %p136 = scmp.eq.s32.totalorder %s19, 7
    %p137 = por %p135, %p136
    %p138 = scmp.ne.s32.totalorder %s129, %s130
    %p139 = scmp.eq.s32.totalorder %s19, 0
    %p140 = por %p138, %p139
    %p141 = scmp.ne.s32.totalorder %s129, %s130
    %p142 = scmp.eq.s32.totalorder %s20, 7
    %p143 = por %p141, %p142
    %p145 = scmp.ne.s32.totalorder %s130, %s144
    %p146 = scmp.eq.s32.totalorder %s20, 0
    %p147 = por %p145, %p146
    %s149 = sadd.s32 %s148, 1
    %p152 = scmp.eq.s32.totalorder %s14, 7
    %p153 = scmp.ne.s32.totalorder %s148, %s150
    %p154 = scmp.eq.s32.totalorder %s14, 0
    %p155 = por %p153, %p154
    %p156 = scmp.ne.s32.totalorder %s148, %s150
    %p157 = scmp.eq.s32.totalorder %s19, 7
    %p158 = por %p156, %p157
    %p159 = scmp.ne.s32.totalorder %s150, %s151
    %p160 = scmp.eq.s32.totalorder %s19, 0
    %p161 = por %p159, %p160
    %p162 = scmp.ne.s32.totalorder %s150, %s151
    %p163 = scmp.eq.s32.totalorder %s20, 7
    %p164 = por %p162, %p163
    %p166 = scmp.ne.s32.totalorder %s151, %s165
    %p167 = scmp.eq.s32.totalorder %s20, 0
    %p168 = por %p166, %p167
    %s170 = sadd.s32 %s169, 1
    %p173 = scmp.eq.s32.totalorder %s14, 7
    %p174 = scmp.ne.s32.totalorder %s169, %s171
    %p175 = scmp.eq.s32.totalorder %s14, 0
    %p176 = por %p174, %p175
    %p177 = scmp.ne.s32.totalorder %s169, %s171
    %p178 = scmp.eq.s32.totalorder %s19, 7
    %p179 = por %p177, %p178
    %p180 = scmp.ne.s32.totalorder %s171, %s172
    %p181 = scmp.eq.s32.totalorder %s19, 0
    %p182 = por %p180, %p181
    %p183 = scmp.ne.s32.totalorder %s171, %s172
    %p184 = scmp.eq.s32.totalorder %s20, 7
    %p185 = por %p183, %p184
    %p187 = scmp.ne.s32.totalorder %s172, %s186
    %p188 = scmp.eq.s32.totalorder %s20, 0
    %p189 = por %p187, %p188
    %s191 = sadd.s32 %s190, 1
    %p194 = scmp.eq.s32.totalorder %s14, 7
    %p195 = scmp.ne.s32.totalorder %s190, %s192
    %p196 = scmp.eq.s32.totalorder %s14, 0
    %p197 = por %p195, %p196
    %p198 = scmp.ne.s32.totalorder %s190, %s192
    %p199 = scmp.eq.s32.totalorder %s19, 7
    %p200 = por %p198, %p199
    %p201 = scmp.ne.s32.totalorder %s192, %s193
    %p202 = scmp.eq.s32.totalorder %s19, 0
    %p203 = por %p201, %p202
    %p204 = scmp.ne.s32.totalorder %s192, %s193
    %p205 = scmp.eq.s32.totalorder %s20, 7
    %p206 = por %p204, %p205
    %p208 = scmp.ne.s32.totalorder %s193, %s207
    %p209 = scmp.eq.s32.totalorder %s20, 0
    %p210 = por %p208, %p209
    %p211 = scmp.le.s32.totalorder 1, %s14
    %p212 = scmp.lt.s32.totalorder %s14, 9
    %p213 = pnand %p211, %p212
    %p214 = pneg %p213
    // Predicated region
    $region9: #{t5_text_to_latex.5} parent=5 // pred_check
      _
    $region10: #{t5_text_to_latex.5} parent=5 // pred_check_branch
      %216 = sbr.rel (%p213) target = $region12
    $region11: #{t5_text_to_latex.5} parent=5 // pred_region
      %s217 = ssub.s32 %s14, 1
      // Predicated region
      $region13: #{t5_text_to_latex.5} parent=11 // pred_check
        %p218 = pneg %p35
      $region14: #{t5_text_to_latex.5} parent=11 // pred_check_branch
        %220 = sbr.rel (%p218) target = $region16
      $region15: #{t5_text_to_latex.5} parent=11 // pred_region
        _
      $region16: #{t5_text_to_latex.5} parent=11 // pred_fallthru
        _
      // Predicated region
      $region17: #{t5_text_to_latex.5} parent=11 // pred_check
        %p221 = pneg %p56
      $region18: #{t5_text_to_latex.5} parent=11 // pred_check_branch
        %223 = sbr.rel (%p221) target = $region20
      $region19: #{t5_text_to_latex.5} parent=11 // pred_region
        _
      $region20: #{t5_text_to_latex.5} parent=11 // pred_fallthru
        _
      // Predicated region
      $region21: #{t5_text_to_latex.5} parent=11 // pred_check
        %p224 = pneg %p77
      $region22: #{t5_text_to_latex.5} parent=11 // pred_check_branch
        %226 = sbr.rel (%p224) target = $region24
      $region23: #{t5_text_to_latex.5} parent=11 // pred_region
        _
      $region24: #{t5_text_to_latex.5} parent=11 // pred_fallthru
        _
      // Predicated region
      $region25: #{t5_text_to_latex.5} parent=11 // pred_check
        %p227 = pneg %p98
      $region26: #{t5_text_to_latex.5} parent=11 // pred_check_branch
        %229 = sbr.rel (%p227) target = $region28
      $region27: #{t5_text_to_latex.5} parent=11 // pred_region
        _
      $region28: #{t5_text_to_latex.5} parent=11 // pred_fallthru
        _
      // Predicated region
      $region29: #{t5_text_to_latex.5} parent=11 // pred_check
        %p230 = pneg %p119
      $region30: #{t5_text_to_latex.5} parent=11 // pred_check_branch
        %232 = sbr.rel (%p230) target = $region32
      $region31: #{t5_text_to_latex.5} parent=11 // pred_region
        _
      $region32: #{t5_text_to_latex.5} parent=11 // pred_fallthru
        _
      // Predicated region
      $region33: #{t5_text_to_latex.5} parent=11 // pred_check
        %p233 = pneg %p140
      $region34: #{t5_text_to_latex.5} parent=11 // pred_check_branch
        %235 = sbr.rel (%p233) target = $region36
      $region35: #{t5_text_to_latex.5} parent=11 // pred_region
        _
      $region36: #{t5_text_to_latex.5} parent=11 // pred_fallthru
        _
      // Predicated region
      $region37: #{t5_text_to_latex.5} parent=11 // pred_check
        %p236 = pneg %p161
      $region38: #{t5_text_to_latex.5} parent=11 // pred_check_branch
        %238 = sbr.rel (%p236) target = $region40
      $region39: #{t5_text_to_latex.5} parent=11 // pred_region
        _
      $region40: #{t5_text_to_latex.5} parent=11 // pred_fallthru
        _
      // Predicated region
      $region41: #{t5_text_to_latex.5} parent=11 // pred_check
        %p239 = pneg %p182
      $region42: #{t5_text_to_latex.5} parent=11 // pred_check_branch
        %241 = sbr.rel (%p239) target = $region44
      $region43: #{t5_text_to_latex.5} parent=11 // pred_region
        _
      $region44: #{t5_text_to_latex.5} parent=11 // pred_fallthru
        _
    $region12: #{t5_text_to_latex.5} parent=5 // pred_fallthru
      _
    %p242 = scmp.lt.s32.totalorder %s14, 8
    // Predicated region
    $region45: #{t5_text_to_latex.5} parent=5 // pred_check
      %p243 = pneg %p242
    $region46: #{t5_text_to_latex.5} parent=5 // pred_check_branch
      %245 = sbr.rel (%p243) target = $region48
    $region47: #{t5_text_to_latex.5} parent=5 // pred_region
      _
    $region48: #{t5_text_to_latex.5} parent=5 // pred_fallthru
      _
    %p246 = scmp.le.s32.totalorder 1, %s14
    %p247 = scmp.lt.s32.totalorder %s14, 9
    %p248 = pnand %p246, %p247
    %p249 = pneg %p248
    // Predicated region
    $region49: #{t5_text_to_latex.5} parent=5 // pred_check
      _
    $region50: #{t5_text_to_latex.5} parent=5 // pred_check_branch
      %251 = sbr.rel (%p248) target = $region52
    $region51: #{t5_text_to_latex.5} parent=5 // pred_region
      %s252 = ssub.s32 %s14, 1
      %p253 = pneg %p35
      %p254 = pneg %p32
      %p255 = pneg %p56
      %p256 = pneg %p53
      %p257 = pneg %p77
      %p258 = pneg %p74
      %p259 = pneg %p98
      %p260 = pneg %p95
      %p261 = pneg %p119
      %p262 = pneg %p116
      %p263 = pneg %p140
      %p264 = pneg %p137
      %p265 = pneg %p161
      %p266 = pneg %p158
      %p267 = pneg %p182
      %p268 = pneg %p179
      %p269 = pneg %p203
      %p270 = pneg %p200
      %v272 = vlaneseq
      %v273 = vand.u32 %v272, 127
      %p274 = scmp.eq.s32.totalorder %s19, 0
      // Predicated region
      $region53: #{t5_text_to_latex.5} parent=51 // pred_check
        %p275 = pneg %p274
      $region54: #{t5_text_to_latex.5} parent=51 // pred_check_branch
        %277 = sbr.rel (%p275) target = $region56
      $region55: #{t5_text_to_latex.5} parent=51 // pred_region
        %vm278 = vcmp.eq.s32.totalorder %v273, 0
        %v279 = vsel %vm278, 1, 0
        %v280 = vcvt.s32.f32 %v279
        %281 = vst [vmem:[#allocation3] sm:$0x3] %v280
        %v282 = vpack.c.bf16 %v280, %v280
        %v283 = vld [vmem:[%s6] sm:$0xf]
        %v284 = vld [vmem:[%s6 + $0x4] sm:$0xf]
        %v285 = vld [vmem:[%s6 + $0x8] sm:$0xf]
        %v286 = vld [vmem:[%s6 + $0xc] sm:$0xf]
        %v287 = vld [vmem:[%s6 + $0x10] sm:$0xf]
        %v288 = vld [vmem:[%s6 + $0x14] sm:$0xf]
        %v289 = vld [vmem:[%s6 + $0x18] sm:$0xf]
        %v290 = vld [vmem:[%s6 + $0x1c] sm:$0xf]
        %v291 = vld [vmem:[%s6 + $0x20] sm:$0xf]
        %v292 = vld [vmem:[%s6 + $0x24] sm:$0xf]
        %v293 = vld [vmem:[%s6 + $0x28] sm:$0xf]
        %v294 = vld [vmem:[%s6 + $0x2c] sm:$0xf]
        %v295 = vld [vmem:[%s6 + $0x30] sm:$0xf]
        %v296 = vld [vmem:[%s6 + $0x34] sm:$0xf]
        %v297 = vld [vmem:[%s6 + $0x38] sm:$0xf]
        %v298 = vld [vmem:[%s6 + $0x3c] sm:$0xf]
        %v315 = vunpack.c.l.b16 %v283
        %v316 = vunpack.c.l.b16 %v284
        %v317 = vunpack.c.l.b16 %v285
        %v318 = vunpack.c.l.b16 %v286
        %v319 = vunpack.c.l.b16 %v287
        %v320 = vunpack.c.l.b16 %v288
        %v321 = vunpack.c.l.b16 %v289
        %v322 = vunpack.c.l.b16 %v290
        %v323 = vunpack.c.l.b16 %v291
        %v324 = vunpack.c.l.b16 %v292
        %v325 = vunpack.c.l.b16 %v293
        %v326 = vunpack.c.l.b16 %v294
        %v327 = vunpack.c.l.b16 %v295
        %v328 = vunpack.c.l.b16 %v296
        %v329 = vunpack.c.l.b16 %v297
        %v330 = vunpack.c.l.b16 %v298
        %v331 = vpack.c.b16 %v316, %v315
        %v332 = vpack.c.b16 %v318, %v317
        %v333 = vpack.c.b16 %v320, %v319
        %v334 = vpack.c.b16 %v322, %v321
        %v335 = vpack.c.b16 %v324, %v323
        %v336 = vpack.c.b16 %v326, %v325
        %v337 = vpack.c.b16 %v328, %v327
        %v338 = vpack.c.b16 %v330, %v329
        %347 = vmatpush.bf16.msra.mxu0 %v338
        %348 = vmatpush.bf16.msra.mxu0 %v337
        %349 = vmatpush.bf16.msra.mxu0 %v336
        %350 = vmatpush.bf16.msra.mxu0 %v335
        %351 = vmatpush.bf16.msra.mxu0 %v334
        %352 = vmatpush.bf16.msra.mxu0 %v333
        %353 = vmatpush.bf16.msra.mxu0 %v332
        %354 = vmatpush.bf16.msra.mxu0 %v331
        %355 = vmatmul.bf16.gmra.mxu0 %v282
        %v356 = vpop.f32.mrf.mxu0
        %v357 = vadd.f32 0.0, %v356
        %v358 = vpop.f32.mrf.mxu0
        %359 = vdwg.mxu0
        %vm360 = vcmask 254976
        %361 = vst.msk [vmem:[#allocation2] sm:$0x3] %vm360, %v357
        %vm362 = vcmask 58368
        %363 = vst.msk [vmem:[%s8] sm:$0x3] %vm362, 0
      $region56: #{t5_text_to_latex.5} parent=51 // pred_fallthru
        _
      %v364 = vld [vmem:[#allocation2] sm:$0x3]
      %v365 = vld [vmem:[%s1] sm:$0xff]
      %v366 = vld [vmem:[%s1 + $0x8] sm:$0xff]
      %v367 = vld [vmem:[%s0] sm:$0x3]
      %v368 = vmul.f32 %v364, %v364
      %vm369 = vcmask 254976
      %v370 = vsel %vm369, %v368, 0.0
      %371 = vadd.xlane.f32.xlu0 %v370
      %v372 = vpop.xlane.xlu0 %371
      %v373 = vrcp.pop 32.0
      %v374 = vmul.f32 32.0, %v373
      %v375 = vsub.f32 1.0, %v374
      %v376 = vmul.f32 %v373, %v375
      %v377 = vadd.f32 %v373, %v376
      %vm378 = vweird.f32 %v373
      %v379 = vsel %vm378, %v373, %v377
      %v380 = vmul.f32 %v372, %v379
      %v381 = vadd.f32 %v380, 1e-06
      %v382 = vrsqrt.pop %v381
      %v383 = vmul.f32 %v382, %v381
      %v384 = vmul.f32 %v383, %v382
      %v385 = vmul.f32 0.5, %v384
      %v386 = vsub.f32 1.5, %v385
      %v387 = vmul.f32 %v382, %v386
      %vm388 = vweird.f32 %v381
      %vm389 = vweird.f32 %v382
      %vm390 = vmor %vm388, %vm389
      %v391 = vsel %vm390, %v382, %v387
      %v392 = vmul.f32 %v364, %v391
      %v393 = vpack.c.bf16 %v392, %v392
      %v394 = vld [vmem:[%s2] sm:$0xf]
      %v395 = vld [vmem:[%s2 + $0x4] sm:$0xf]
      %v396 = vld [vmem:[%s2 + $0x8] sm:$0xf]
      %v397 = vld [vmem:[%s2 + $0xc] sm:$0xf]
      %v402 = vunpack.c.l.b16 %v394
      %v403 = vunpack.c.l.b16 %v395
      %v404 = vunpack.c.l.b16 %v396
      %v405 = vunpack.c.l.b16 %v397
      %v406 = vpack.c.b16 %v403, %v402
      %v407 = vpack.c.b16 %v405, %v404
      %vm410 = vcmask 261120
      %v412 = vsel %vm410, %v393, 0
      %414 = vmatpush.bf16.msra.mxu0 0
      %415 = vmatpush.bf16.msra.mxu0 0
      %416 = vmatpush.bf16.msra.mxu0 0
      %417 = vmatpush.bf16.msra.mxu0 0
      %418 = vmatpush.bf16.msra.mxu0 0
      %419 = vmatpush.bf16.msra.mxu0 0
      %420 = vmatpush.bf16.msra.mxu0 %v407
      %421 = vmatpush.bf16.msra.mxu0 %v406
      %422 = vmatmul.bf16.gmra.mxu0 %v412
      %v423 = vpop.f32.mrf.mxu0
      %v424 = vadd.f32 0.0, %v423
      %v425 = vpop.f32.mrf.mxu0
      %426 = vdwg.mxu0
      %v428 = vrot.slane %v424, 1
      %v429 = vperm.slane %v424, 0
      %v430 = vperm.slane %v428, 0
      %v433 = vmul.f32 %v429, %v365
      %v434 = vmul.f32 %v430, %v366
      %v435 = vsel %vm410, %v433, 0.0
      %436 = vadd.xlane.f32.xlu0 %v435
      %v437 = vpop.xlane.xlu0 %436
      %v438 = vsel %vm410, %v434, 0.0
      %439 = vadd.xlane.f32.xlu0 %v438
      %v440 = vpop.xlane.xlu0 %439
      %v441 = vmul.f32 %v437, 0.17677669
      %v442 = vmul.f32 %v440, 0.17677669
      %v443 = vsub.f32 %v367, 1.0
      %v444 = vmul.f32 %v443, 1e+09
      %v446 = vperm.slane %v444, 0
      %v447 = vlaneseq
      %v448 = vshrl.u32 %v447, 7
      %450 = vset.pattern.permute.xlu0 %v448
      %451 = vperm.xlu0 %450, %v446
      %v452 = vpop.permute.xlu0 %451
      %v453 = vperm.slane %v444, 1
      %v454 = vlaneseq
      %v455 = vshrl.u32 %v454, 7
      %457 = vset.pattern.permute.xlu0 %v455
      %458 = vperm.xlu0 %457, %v453
      %v459 = vpop.permute.xlu0 %458
      %v462 = vadd.f32 %v441, %v452
      %v463 = vadd.f32 %v442, %v459
      %466 = vset.pattern.permute.xlu0 0
      %467 = vperm.xlu0 %466, %v462
      %v468 = vpop.permute.xlu0 %467
      %469 = vset.pattern.permute.xlu0 0
      %470 = vperm.xlu0 %469, %v463
      %v471 = vpop.permute.xlu0 %470
      %v472 = vperm.slane %v468, %v273
      %v473 = vperm.slane %v471, %v273
      %vm474 = vcmask 1041409
      %v475 = vsel %vm474, %v473, %v472
      %vm477 = vcmask 58368
      %v478 = vsel %vm477, %v475, -inf
      %479 = vmax.xlane.f32.xlu0 %v478
      %v480 = vpop.xlane.xlu0 %479
      %v482 = vperm.slane %v480, 0
      %v483 = vperm.slane %v480, 1
      %v486 = vsub.f32 %v462, %v482
      %v487 = vsub.f32 %v463, %v483
      %v488 = vmul.f32 %v486, 1.442695
      %v489 = vpow.pop %v488
      %v490 = vmul.f32 %v487, 1.442695
      %v491 = vpow.pop %v490
      %494 = vset.pattern.permute.xlu0 0
      %495 = vperm.xlu0 %494, %v489
      %v496 = vpop.permute.xlu0 %495
      %497 = vset.pattern.permute.xlu0 0
      %498 = vperm.xlu0 %497, %v491
      %v499 = vpop.permute.xlu0 %498
      %v500 = vperm.slane %v496, %v273
      %v501 = vperm.slane %v499, %v273
      %v502 = vsel %vm474, %v501, %v500
      %v504 = vsel %vm477, %v502, 0.0
      %505 = vadd.xlane.f32.xlu0 %v504
      %v506 = vpop.xlane.xlu0 %505
      %v507 = vrcp.pop %v506
      %v509 = vperm.slane %v507, 0
      %v510 = vperm.slane %v507, 1
      %v513 = vmul.f32 %v489, %v509
      %v514 = vmul.f32 %v491, %v510
      %516 = vset.pattern.permute.xlu0 0
      %517 = vperm.xlu0 %516, %v513
      %v518 = vpop.permute.xlu0 %517
      %521 = vset.pattern.permute.xlu0 0
      %522 = vperm.xlu0 %521, %v514
      %v523 = vpop.permute.xlu0 %522
      %v525 = vmul.f32 %v518, %v365
      %v526 = vmul.f32 %v523, %v366
      %vm527 = vcmask 523520
      %v528 = vsel %vm527, %v525, 0.0
      %v529 = vrot.slane %v528, 4
      %v530 = vadd.f32 %v528, %v529
      %v531 = vrot.slane %v530, 2
      %v532 = vadd.f32 %v530, %v531
      %v533 = vrot.slane %v532, 1
      %v534 = vadd.f32 %v532, %v533
      %v535 = vsel %vm527, %v526, 0.0
      %v536 = vrot.slane %v535, 4
      %v537 = vadd.f32 %v535, %v536
      %v538 = vrot.slane %v537, 2
      %v539 = vadd.f32 %v537, %v538
      %v540 = vrot.slane %v539, 1
      %v541 = vadd.f32 %v539, %v540
      %v542 = vpack.c.bf16 %v534, %v534
      %v543 = vpack.c.bf16 %v541, %v541
      %v544 = vld [vmem:[%s3] sm:$0xf]
      %v545 = vld [vmem:[%s3 + $0x4] sm:$0xf]
      %v546 = vld [vmem:[%s3 + $0x8] sm:$0xf]
      %v547 = vld [vmem:[%s3 + $0xc] sm:$0xf]
      %v550 = vunpack.c.l.b16 %v542
      %v551 = vunpack.c.l.b16 %v543
      %v552 = vsel %vm474, %v551, %v550
      %v553 = vpack.c.b16 %v552, %v552
      %554 = vrot.lane.b32.xlu0 %v553, 96
      %v555 = vpop.permute.xlu0 %554
      %v560 = vunpack.c.l.b16 %v544
      %v561 = vunpack.c.l.b16 %v545
      %v562 = vunpack.c.l.b16 %v546
      %v563 = vunpack.c.l.b16 %v547
      %v564 = vpack.c.b16 %v561, %v560
      %v565 = vpack.c.b16 %v563, %v562
      %v569 = vsel %vm410, %v555, 0
      %571 = vmatpush.bf16.msra.mxu0 0
      %572 = vmatpush.bf16.msra.mxu0 0
      %573 = vmatpush.bf16.msra.mxu0 0
      %574 = vmatpush.bf16.msra.mxu0 0
      %575 = vmatpush.bf16.msra.mxu0 0
      %576 = vmatpush.bf16.msra.mxu0 0
      %577 = vmatpush.bf16.msra.mxu0 %v565
      %578 = vmatpush.bf16.msra.mxu0 %v564
      %579 = vmatmul.bf16.gmra.mxu0 %v569
      %v580 = vpop.f32.mrf.mxu0
      %v581 = vadd.f32 0.0, %v580
      %v582 = vpop.f32.mrf.mxu0
      %583 = vdwg.mxu0
      %v584 = vadd.f32 %v364, %v581
      %v585 = vmul.f32 %v584, %v584
      %v586 = vsel %vm369, %v585, 0.0
      %587 = vadd.xlane.f32.xlu0 %v586
      %v588 = vpop.xlane.xlu0 %587
      %v589 = vmul.f32 %v588, %v379
      %v590 = vadd.f32 %v589, 1e-06
      %v591 = vrsqrt.pop %v590
      %v592 = vmul.f32 %v591, %v590
      %v593 = vmul.f32 %v592, %v591
      %v594 = vmul.f32 0.5, %v593
      %v595 = vsub.f32 1.5, %v594
      %v596 = vmul.f32 %v591, %v595
      %vm597 = vweird.f32 %v590
      %vm598 = vweird.f32 %v591
      %vm599 = vmor %vm597, %vm598
      %v600 = vsel %vm599, %v591, %v596
      %v601 = vmul.f32 %v584, %v600
      %v602 = vpack.c.bf16 %v601, %v601
      %v603 = vld [vmem:[%s4] sm:$0xf]
      %v604 = vld [vmem:[%s4 + $0x4] sm:$0xf]
      %v605 = vld [vmem:[%s4 + $0x8] sm:$0xf]
      %v606 = vld [vmem:[%s4 + $0xc] sm:$0xf]
      %v611 = vunpack.c.l.b16 %v603
      %v612 = vunpack.c.l.b16 %v604
      %v613 = vunpack.c.l.b16 %v605
      %v614 = vunpack.c.l.b16 %v606
      %v615 = vpack.c.b16 %v612, %v611
      %v616 = vpack.c.b16 %v614, %v613
      %v620 = vsel %vm410, %v602, 0
      %622 = vmatpush.bf16.msra.mxu0 0
      %623 = vmatpush.bf16.msra.mxu0 0
      %624 = vmatpush.bf16.msra.mxu0 0
      %625 = vmatpush.bf16.msra.mxu0 0
      %626 = vmatpush.bf16.msra.mxu0 0
      %627 = vmatpush.bf16.msra.mxu0 0
      %628 = vmatpush.bf16.msra.mxu0 %v616
      %629 = vmatpush.bf16.msra.mxu0 %v615
      %630 = vmatmul.bf16.gmra.mxu0 %v620
      %v631 = vpop.f32.mrf.mxu0
      %v632 = vadd.f32 0.0, %v631
      %v633 = vpop.f32.mrf.mxu0
      %634 = vdwg.mxu0
      %v635 = vmax.f32 %v632, 0.0
      %v636 = vpack.c.bf16 %v635, %v635
      %v637 = vld [vmem:[%s5] sm:$0xf]
      %v638 = vld [vmem:[%s5 + $0x4] sm:$0xf]
      %v639 = vld [vmem:[%s5 + $0x8] sm:$0xf]
      %v640 = vld [vmem:[%s5 + $0xc] sm:$0xf]
      %v641 = vld [vmem:[%s5 + $0x10] sm:$0xf]
      %v642 = vld [vmem:[%s5 + $0x14] sm:$0xf]
      %v643 = vld [vmem:[%s5 + $0x18] sm:$0xf]
      %v644 = vld [vmem:[%s5 + $0x1c] sm:$0xf]
      %v653 = vunpack.c.l.b16 %v637
      %v654 = vunpack.c.l.b16 %v638
      %v655 = vunpack.c.l.b16 %v639
      %v656 = vunpack.c.l.b16 %v640
      %v657 = vunpack.c.l.b16 %v641
      %v658 = vunpack.c.l.b16 %v642
      %v659 = vunpack.c.l.b16 %v643
      %v660 = vunpack.c.l.b16 %v644
      %v661 = vpack.c.b16 %v654, %v653
      %v662 = vpack.c.b16 %v656, %v655
      %v663 = vpack.c.b16 %v658, %v657
      %v664 = vpack.c.b16 %v660, %v659
      %vm669 = vcmask 523264
      %v671 = vsel %vm669, %v636, 0
      %673 = vmatpush.bf16.msra.mxu0 0
      %674 = vmatpush.bf16.msra.mxu0 0
      %675 = vmatpush.bf16.msra.mxu0 0
      %676 = vmatpush.bf16.msra.mxu0 0
      %677 = vmatpush.bf16.msra.mxu0 %v664
      %678 = vmatpush.bf16.msra.mxu0 %v663
      %679 = vmatpush.bf16.msra.mxu0 %v662
      %680 = vmatpush.bf16.msra.mxu0 %v661
      %681 = vmatmul.bf16.gmra.mxu0 %v671
      %v682 = vpop.f32.mrf.mxu0
      %v683 = vadd.f32 0.0, %v682
      %v684 = vpop.f32.mrf.mxu0
      %685 = vdwg.mxu0
      %v686 = vadd.f32 %v584, %v683
      %v687 = vpack.c.bf16 %v686, %v686
      %v688 = vld [vmem:[%s7] sm:$0xf]
      %v689 = vld [vmem:[%s7 + $0x4] sm:$0xf]
      %v690 = vld [vmem:[%s7 + $0x8] sm:$0xf]
      %v691 = vld [vmem:[%s7 + $0xc] sm:$0xf]
      %v696 = vunpack.c.l.b16 %v688
      %v697 = vunpack.c.l.b16 %v689
      %v698 = vunpack.c.l.b16 %v690
      %v699 = vunpack.c.l.b16 %v691
      %v700 = vpack.c.b16 %v697, %v696
      %v701 = vpack.c.b16 %v699, %v698
      %v705 = vsel %vm410, %v687, 0
      %707 = vmatpush.bf16.msra.mxu0 0
      %708 = vmatpush.bf16.msra.mxu0 0
      %709 = vmatpush.bf16.msra.mxu0 0
      %710 = vmatpush.bf16.msra.mxu0 0
      %711 = vmatpush.bf16.msra.mxu0 0
      %712 = vmatpush.bf16.msra.mxu0 0
      %713 = vmatpush.bf16.msra.mxu0 %v701
      %714 = vmatpush.bf16.msra.mxu0 %v700
      %715 = vmatmul.bf16.gmra.mxu0 %v705
      %v716 = vpop.f32.mrf.mxu0
      %v717 = vadd.f32 0.0, %v716
      %v718 = vpop.f32.mrf.mxu0
      %719 = vdwg.mxu0
      %vm720 = vcmp.lt.s32.totalorder %v273, 64
      %v721 = vsel %vm720, %v717, -1e+09
      %v722 = vld [vmem:[#allocation3] sm:$0x3]
      %vm723 = vcmp.gt.f32.partialorder %v721, 0.0
      %v724 = vmul.f32 %v721, 0.6666667
      %v725 = vmul.f32 %v721, 1.5
      %v726 = vsel %vm723, %v724, %v725
      %vm727 = vcmp.gt.f32.partialorder %v722, 0.0
      %v728 = vsel %vm727, %v726, %v721
      %vm729 = vcmask 1041408
      %v730 = vsel %vm729, %v728, -inf
      %731 = vmax.xlane.f32.xlu0 %v730
      %v732 = vpop.xlane.xlu0 %731
      %vm733 = vcmp.ge.f32.partialorder %v728, %v732
      %v734 = vsel %vm733, %v273, 128
      %v735 = vsel %vm729, %v734, 2147483647
      %v736 = vand.u32 %v735, 65535
      %v737 = vshra.s32 %v735, 16
      %v738 = vcvt.s32.f32 %v736
      %v739 = vcvt.s32.f32 %v737
      %740 = vmin.xlane.f32.xlu0 %v739
      %v741 = vpop.xlane.xlu0 %740
      %vm742 = vcmp.eq.f32.partialorder %v739, %v741
      %v743 = vsel %vm742, %v738, inf
      %744 = vmin.xlane.f32.xlu0 %v743
      %v745 = vpop.xlane.xlu0 %744
      %v746 = vcvt.f32.s32 %v745
      %v747 = vcvt.f32.s32 %v741
      %v748 = vshll.u32 %v747, 16
      %v749 = vadd.s32 %v748, %v746
      %vm750 = vcmp.eq.s32.totalorder %v273, %v749
      %v751 = vsel %vm750, 1, 0
      %v752 = vcvt.s32.f32 %v751
      %v753 = vmax.f32 %v722, %v752
      %754 = vst [vmem:[#allocation3] sm:$0x3] %v753
      %v755 = vpack.c.bf16 %v752, %v752
      %v756 = vld [vmem:[%s6] sm:$0xf]
      %v757 = vld [vmem:[%s6 + $0x4] sm:$0xf]
      %v758 = vld [vmem:[%s6 + $0x8] sm:$0xf]
      %v759 = vld [vmem:[%s6 + $0xc] sm:$0xf]
      %v760 = vld [vmem:[%s6 + $0x10] sm:$0xf]
      %v761 = vld [vmem:[%s6 + $0x14] sm:$0xf]
      %v762 = vld [vmem:[%s6 + $0x18] sm:$0xf]
      %v763 = vld [vmem:[%s6 + $0x1c] sm:$0xf]
      %v764 = vld [vmem:[%s6 + $0x20] sm:$0xf]
      %v765 = vld [vmem:[%s6 + $0x24] sm:$0xf]
      %v766 = vld [vmem:[%s6 + $0x28] sm:$0xf]
      %v767 = vld [vmem:[%s6 + $0x2c] sm:$0xf]
      %v768 = vld [vmem:[%s6 + $0x30] sm:$0xf]
      %v769 = vld [vmem:[%s6 + $0x34] sm:$0xf]
      %v770 = vld [vmem:[%s6 + $0x38] sm:$0xf]
      %v771 = vld [vmem:[%s6 + $0x3c] sm:$0xf]
      %v788 = vunpack.c.l.b16 %v756
      %v789 = vunpack.c.l.b16 %v757
      %v790 = vunpack.c.l.b16 %v758
      %v791 = vunpack.c.l.b16 %v759
      %v792 = vunpack.c.l.b16 %v760
      %v793 = vunpack.c.l.b16 %v761
      %v794 = vunpack.c.l.b16 %v762
      %v795 = vunpack.c.l.b16 %v763
      %v796 = vunpack.c.l.b16 %v764
      %v797 = vunpack.c.l.b16 %v765
      %v798 = vunpack.c.l.b16 %v766
      %v799 = vunpack.c.l.b16 %v767
      %v800 = vunpack.c.l.b16 %v768
      %v801 = vunpack.c.l.b16 %v769
      %v802 = vunpack.c.l.b16 %v770
      %v803 = vunpack.c.l.b16 %v771
      %v804 = vpack.c.b16 %v789, %v788
      %v805 = vpack.c.b16 %v791, %v790
      %v806 = vpack.c.b16 %v793, %v792
      %v807 = vpack.c.b16 %v795, %v794
      %v808 = vpack.c.b16 %v797, %v796
      %v809 = vpack.c.b16 %v799, %v798
      %v810 = vpack.c.b16 %v801, %v800
      %v811 = vpack.c.b16 %v803, %v802
      %820 = vmatpush.bf16.msra.mxu0 %v811
      %821 = vmatpush.bf16.msra.mxu0 %v810
      %822 = vmatpush.bf16.msra.mxu0 %v809
      %823 = vmatpush.bf16.msra.mxu0 %v808
      %824 = vmatpush.bf16.msra.mxu0 %v807
      %825 = vmatpush.bf16.msra.mxu0 %v806
      %826 = vmatpush.bf16.msra.mxu0 %v805
      %827 = vmatpush.bf16.msra.mxu0 %v804
      %828 = vmatmul.bf16.gmra.mxu0 %v755
      %v829 = vpop.f32.mrf.mxu0
      %v830 = vadd.f32 0.0, %v829
      %v831 = vpop.f32.mrf.mxu0
      %832 = vdwg.mxu0
      %833 = vst.msk [vmem:[#allocation2] sm:$0x3] %vm369, %v830
      %v834 = vstv %s19
      %vm835 = vcmp.eq.s32.totalorder %v273, %v834
      %v836 = vld [vmem:[%s8] sm:$0x3]
      %v837 = vsel %vm835, %v749, %v836
      %838 = vst.msk [vmem:[%s8] sm:$0x3] %vm477, %v837
      // Predicated region
      $region57: #{t5_text_to_latex.5} parent=51 // pred_check
        %p839 = pneg %p200
      $region58: #{t5_text_to_latex.5} parent=51 // pred_check_branch
        %841 = sbr.rel (%p839) target = $region60
      $region59: #{t5_text_to_latex.5} parent=51 // pred_region
        _
      $region60: #{t5_text_to_latex.5} parent=51 // pred_fallthru
        _
      // Predicated region
      $region61: #{t5_text_to_latex.5} parent=51 // pred_check
        %p842 = pneg %p200
      $region62: #{t5_text_to_latex.5} parent=51 // pred_check_branch
        %844 = sbr.rel (%p842) target = $region64
      $region63: #{t5_text_to_latex.5} parent=51 // pred_region
        _
      $region64: #{t5_text_to_latex.5} parent=51 // pred_fallthru
        _
    $region52: #{t5_text_to_latex.5} parent=5 // pred_fallthru
      _
    %p845 = scmp.le.s32.totalorder 2, %s14
    // Predicated region
    $region65: #{t5_text_to_latex.5} parent=5 // pred_check
      %p846 = pneg %p845
    $region66: #{t5_text_to_latex.5} parent=5 // pred_check_branch
      %848 = sbr.rel (%p846) target = $region68
    $region67: #{t5_text_to_latex.5} parent=5 // pred_region
      %s849 = ssub.s32 %s14, 2
    $region68: #{t5_text_to_latex.5} parent=5 // pred_fallthru
      _
  $region6: #{t5_text_to_latex.5} parent=0 // loop_footer
    %s18 = sadd.s32 1, %s14
  $region7: #{t5_text_to_latex.5} parent=0 // loop_footer_branch
    %13 = sbr.rel target = $region3
  $region8: #{t5_text_to_latex.5} parent=0 // loop_exit
    _

</llo_original>
